<compile_context>
chip_gen: v6e
topology: v6e:2x2x1
jax: 0.10.0
libtpu: 0.0.40
codegen_flags: <defaults>
</compile_context>

<pallas_src>
import functools
import math

import jax
import jax.numpy as jnp
from jax import lax
from jax.experimental import pallas as pl
from jax.experimental.pallas import tpu as pltpu


# ----------------------------------------------------------------------------
# tiling helpers
# ----------------------------------------------------------------------------
_TM_TARGET = 256                      # token (sublane) tile target
_VMEM_LIMIT = 32 * 1024 * 1024        # fits scoped VMEM on v5e / v6e / v7x
# TODO(synk): on v6e the limit could be raised to 64-100 MiB for even larger
# activation tiles; kept at 32 MiB so one code path is safe on v7x (64 MiB phys).


def _round_up(x, m):
    return (x + m - 1) // m * m


def _pick_m_tile(M, target=_TM_TARGET):
    """Largest multiple of 16 that divides M and is <= target (M is 16-aligned)."""
    if M <= target:
        return M
    t = (target // 16) * 16
    while t >= 16:
        if M % t == 0:
            return t
        t -= 16
    return M


def _pick_n_tile(tm, K, N, out_bytes=2):
    """Largest tn (N itself preferred) whose double-buffered blocks fit VMEM."""
    def fits(tn):
        w = K * tn * 2 * 2                      # bf16 weight block, double-buffered
        x = tm * K * 2 * 2                      # bf16 activation block
        o = tm * tn * out_bytes * 2             # output block
        misc = tn * 4 * 4 + K * 4 * 4           # bias / gamma / beta blocks
        return w + x + o + misc <= int(_VMEM_LIMIT * 0.85)

    if N % 128 != 0 or fits(N):                 # full-N required if not 128-aligned
        return N
    tn = (N // 2 // 128) * 128
    while tn >= 128:
        if N % tn == 0 and fits(tn):
            return tn
        tn -= 128
    return 128


def _cparams(semantics):
    return pltpu.CompilerParams(dimension_semantics=semantics,
                                vmem_limit_bytes=_VMEM_LIMIT)


def _apply_act(y, act):
    """Activation on fp32 values (epilogue math stays fp32)."""
    if act == "gelu_tanh":
        # TODO(synk): nn.GELU() is erf-form; tanh formulation used (max abs err ~3e-4).
        c = jnp.float32(math.sqrt(2.0 / math.pi))
        return 0.5 * y * (1.0 + jnp.tanh(c * (y + 0.044715 * y * y * y)))
    if act == "quick_gelu":                     # OpenAI-CLIP QuickGELU in the MLP
        return y * jax.nn.sigmoid(1.702 * y)
    return y


# ----------------------------------------------------------------------------
# weight-resident matmul with fused bias / activation / residual epilogue
# (tk = K always for this model, so no K grid axis and no accumulator scratch)
# ----------------------------------------------------------------------------
def _matmul_kernel(*refs, act, has_bias, has_res):
    x_ref, w_ref = refs[0], refs[1]
    i = 2
    bias_ref = res_ref = None
    if has_bias:
        bias_ref = refs[i]; i += 1
    if has_res:
        res_ref = refs[i]; i += 1
    o_ref = refs[i]

    y = jnp.dot(x_ref[...], w_ref[...], preferred_element_type=jnp.float32)
    if has_bias:
        y = y + bias_ref[...]
    y = _apply_act(y, act)
    if has_res:
        y = y + res_ref[...].astype(jnp.float32)
    o_ref[...] = y.astype(o_ref.dtype)


def matmul(x, w, bias=None, residual=None, act="none", out_dtype=jnp.bfloat16):
    """y = act(x @ w + bias) + residual.  x:(M,K) bf16, w:(K,N) bf16 (pre-transposed)."""
    M, K = x.shape
    K2, N = w.shape
    assert K == K2
    tm = _pick_m_tile(M)
    tn = _pick_n_tile(tm, K, N, out_bytes=max(jnp.dtype(out_dtype).itemsize, 2))
    grid = (M // tm, N // tn)
    # TODO(synk): add a K-tiled accumulator fallback if a contraction ever exceeds VMEM.

    in_specs = [pl.BlockSpec((tm, K), lambda i, j: (i, 0)),
                pl.BlockSpec((K, tn), lambda i, j: (0, j))]   # constant index when tn=N
    args = [x, w]
    if bias is not None:
        in_specs.append(pl.BlockSpec((1, tn), lambda i, j: (0, j)))
        args.append(bias)
    if residual is not None:
        in_specs.append(pl.BlockSpec((tm, tn), lambda i, j: (i, j)))
        args.append(residual)

    kernel = functools.partial(_matmul_kernel, act=act,
                               has_bias=bias is not None,
                               has_res=residual is not None)
    return pl.pallas_call(
        kernel,
        grid=grid,
        in_specs=in_specs,
        out_specs=pl.BlockSpec((tm, tn), lambda i, j: (i, j)),
        out_shape=jax.ShapeDtypeStruct((M, N), out_dtype),
        compiler_params=_cparams(("parallel", "parallel")),
    )(*args)


# ----------------------------------------------------------------------------
# LayerNorm prologue fused into a weight-resident matmul
# ----------------------------------------------------------------------------
def _ln_matmul_kernel(x_ref, g_ref, b_ref, w_ref, bias_ref, o_ref, *, act, eps):
    xf = x_ref[...].astype(jnp.float32)
    mu = jnp.mean(xf, axis=-1, keepdims=True)
    xc = xf - mu
    var = jnp.mean(xc * xc, axis=-1, keepdims=True)
    xn = xc * lax.rsqrt(var + eps) * g_ref[...] + b_ref[...]
    y = jnp.dot(xn.astype(w_ref.dtype), w_ref[...],
                preferred_element_type=jnp.float32)
    y = _apply_act(y + bias_ref[...], act)
    o_ref[...] = y.astype(o_ref.dtype)


def ln_matmul(x, gamma, beta, w, bias, act="none", eps=1e-5,
              out_dtype=jnp.bfloat16):
    M, K = x.shape
    _, N = w.shape
    tm = _pick_m_tile(M)
    tn = _pick_n_tile(tm, K, N)
    # TODO(synk): if tn < N ever triggers, hoist the LN into a (tm, K) VMEM scratch
    # reused across j; with the weight-resident sizes here tn == N always.
    return pl.pallas_call(
        functools.partial(_ln_matmul_kernel, act=act, eps=eps),
        grid=(M // tm, N // tn),
        in_specs=[pl.BlockSpec((tm, K), lambda i, j: (i, 0)),
                  pl.BlockSpec((1, K), lambda i, j: (0, 0)),
                  pl.BlockSpec((1, K), lambda i, j: (0, 0)),
                  pl.BlockSpec((K, tn), lambda i, j: (0, j)),
                  pl.BlockSpec((1, tn), lambda i, j: (0, j))],
        out_specs=pl.BlockSpec((tm, tn), lambda i, j: (i, j)),
        out_shape=jax.ShapeDtypeStruct((M, N), out_dtype),
        compiler_params=_cparams(("parallel", "parallel")),
    )(x, gamma, beta, w, bias)


# ----------------------------------------------------------------------------
# conv1 (patchify matmul, bias=False) with ln_pre fused into the epilogue
# ----------------------------------------------------------------------------
def _conv_ln_kernel(p_ref, w_ref, g_ref, b_ref, o_ref, *, eps):
    y = jnp.dot(p_ref[...], w_ref[...], preferred_element_type=jnp.float32)
    mu = jnp.mean(y, axis=-1, keepdims=True)
    yc = y - mu
    var = jnp.mean(yc * yc, axis=-1, keepdims=True)
    o_ref[...] = (yc * lax.rsqrt(var + eps) * g_ref[...] + b_ref[...]).astype(o_ref.dtype)


def conv_ln(patches, w, gamma, beta, eps=1e-5, out_dtype=jnp.bfloat16):
    M, K = patches.shape
    _, D = w.shape
    tm = _pick_m_tile(M)
    return pl.pallas_call(
        functools.partial(_conv_ln_kernel, eps=eps),
        grid=(M // tm,),
        in_specs=[pl.BlockSpec((tm, K), lambda i: (i, 0)),
                  pl.BlockSpec((K, D), lambda i: (0, 0)),
                  pl.BlockSpec((1, D), lambda i: (0, 0)),
                  pl.BlockSpec((1, D), lambda i: (0, 0))],
        out_specs=pl.BlockSpec((tm, D), lambda i: (i, 0)),
        out_shape=jax.ShapeDtypeStruct((M, D), out_dtype),
        compiler_params=_cparams(("parallel",)),
    )(patches, w, gamma, beta)


# ----------------------------------------------------------------------------
# multi-head attention: grid over (batch, head_group); q/k/v fetched as
# 128-lane head-group slabs; per-head direct stores; post-PV normalization
# ----------------------------------------------------------------------------
def _attention_kernel(q_ref, k_ref, v_ref, o_ref, *, hpg, dh, scale, L_valid, L):
    if L_valid < L:
        kmask = lax.broadcasted_iota(jnp.int32, (L, L), 1) < L_valid
    for h in range(hpg):                         # static unroll; independent MXU work
        sl = slice(h * dh, (h + 1) * dh)
        q = q_ref[0, :, sl]
        k = k_ref[0, :, sl]
        v = v_ref[0, :, sl]
        # s = q @ k^T via NT dot_general (no explicit transpose), fp32 scores
        s = lax.dot_general(q, k, (((1,), (1,)), ((), ())),
                            preferred_element_type=jnp.float32)
        s = s * jnp.float32(scale)
        if L_valid < L:
            s = jnp.where(kmask, s, jnp.float32(-1e30))
        s = s - jnp.max(s, axis=-1, keepdims=True)
        p = jnp.exp(s)
        inv = pl.reciprocal(jnp.sum(p, axis=-1, keepdims=True), approx=True)
        o_h = jnp.dot(p.astype(v.dtype), v, preferred_element_type=jnp.float32)
        o_ref[0, :, sl] = (o_h * inv).astype(o_ref.dtype)   # direct lane-dense store


def attention(qkv, batch, seq, heads, head_dim, valid_len, out_dtype=jnp.bfloat16):
    """qkv: (B*L, 3D) packed [q|k|v], heads as contiguous dh chunks in each D block."""
    D = heads * head_dim
    hpg = 1
    if head_dim < 128 and 128 % head_dim == 0 and heads % (128 // head_dim) == 0:
        hpg = 128 // head_dim                    # 128-lane head groups
    gw = hpg * head_dim
    HG = heads // hpg
    assert gw % 128 == 0, "head-group lane width must be 128-aligned"
    # TODO(synk): for MXU-util, batch the hpg heads into one 128-wide dot per group;
    # TODO(synk): for very long sequences switch to a flash-style KV-tile loop.
    qkv3 = qkv.reshape(batch, seq, 3 * D)        # free row-major reshape
    kernel = functools.partial(_attention_kernel, hpg=hpg, dh=head_dim,
                               scale=1.0 / math.sqrt(head_dim),
                               L_valid=valid_len, L=seq)
    out = pl.pallas_call(
        kernel,
        grid=(batch, HG),
        in_specs=[pl.BlockSpec((1, seq, gw), lambda b, g: (b, 0, g)),
                  pl.BlockSpec((1, seq, gw), lambda b, g: (b, 0, HG + g)),
                  pl.BlockSpec((1, seq, gw), lambda b, g: (b, 0, 2 * HG + g))],
        out_specs=pl.BlockSpec((1, seq, gw), lambda b, g: (b, 0, g)),
        out_shape=jax.ShapeDtypeStruct((batch, seq, D), out_dtype),
        compiler_params=_cparams(("parallel", "parallel")),
    )(qkv3, qkv3, qkv3)
    return out.reshape(batch * seq, D)


# ----------------------------------------------------------------------------
# parameter init (synthetic "CLIP visual" weights, already in kernel layout)
# ----------------------------------------------------------------------------
def init_params(key, cfg):
    D, C, P = cfg["width"], cfg["in_ch"], cfg["patch"]
    Hn, O, F = cfg["hidden_dim"], cfg["output_dim"], 4 * cfg["width"]
    keys = iter(jax.random.split(key, 4 + 4 * cfg["layers"]))

    def w(shape, scale=0.02):
        # Pre-transposed to (in, out) and pre-cast to bf16 so the forward pass
        # never materializes `.T` / cast copies (a real port would do
        # `torch_weight.T.bfloat16()` once at load time).
        return (scale * jax.random.normal(next(keys), shape)).astype(jnp.bfloat16)

    def b(n):
        return jnp.zeros((1, n), jnp.float32)

    def ones(n):
        return jnp.ones((1, n), jnp.float32)

    params = {
        "conv1_w": w((C * P * P, D)),               # CLIP conv1 has bias=False
        "ln_pre_g": ones(D), "ln_pre_b": b(D),
        "layers": [],
        "proj1_w": w((D, Hn)), "proj1_b": b(Hn),
        "proj2_w": w((Hn, O)), "proj2_b": b(O),
    }
    for _ in range(cfg["layers"]):
        params["layers"].append({
            "ln1_g": ones(D), "ln1_b": b(D),
            "in_proj_w": w((D, 3 * D)), "in_proj_b": b(3 * D),
            "out_proj_w": w((D, D)),    "out_proj_b": b(D),
            "ln2_g": ones(D), "ln2_b": b(D),
            "c_fc_w": w((D, F)),   "c_fc_b": b(F),
            "c_proj_w": w((F, D)), "c_proj_b": b(D),
        })
    return params


# ----------------------------------------------------------------------------
# Encoder forward
# ----------------------------------------------------------------------------
def encoder_forward(params, images, cfg):
    B, C, H, W = images.shape
    P, D, Hd, O = cfg["patch"], cfg["width"], cfg["heads"], cfg["output_dim"]
    gh, gwp = H // P, W // P
    L = gh * gwp
    dh = D // Hd
    Lp = _round_up(L, 16)                        # bf16 sublane packing / tm legality

    # ---- conv1 (kernel=stride=patch, bias=False) == patchify + matmul (bf16) ----
    x = images.astype(jnp.bfloat16)
    patches = x.reshape(B, C, gh, P, gwp, P)
    patches = patches.transpose(0, 2, 4, 1, 3, 5).reshape(B, L, C * P * P)
    # TODO(synk): for large images fold the strided patchify into the conv1
    # BlockSpec index_map instead of materializing the transposed array.
    if Lp != L:
        patches = jnp.pad(patches, ((0, 0), (0, Lp - L), (0, 0)))   # zero pad tokens
    patches = patches.reshape(B * Lp, C * P * P)

    # ---- conv1 matmul with ln_pre fused into the epilogue (residual stream) ----
    # row ordering matches x.reshape(B, Cout, -1).permute(0, 2, 1)
    x = conv_ln(patches, params["conv1_w"], params["ln_pre_g"], params["ln_pre_b"])

    # ---- pre-LN residual attention blocks ----
    for lyr in params["layers"]:
        # LN1 fused into the QKV projection (weight-resident)
        qkv = ln_matmul(x, lyr["ln1_g"], lyr["ln1_b"],
                        lyr["in_proj_w"], lyr["in_proj_b"])      # (B*Lp, 3D)
        a = attention(qkv, B, Lp, Hd, dh, valid_len=L)           # (B*Lp, D)
        # out_proj with bias + residual add fused in the epilogue
        x = matmul(a, lyr["out_proj_w"], bias=lyr["out_proj_b"], residual=x)
        # LN2 + c_fc + QuickGELU fused; c_proj with bias + residual fused
        h = ln_matmul(x, lyr["ln2_g"], lyr["ln2_b"],
                      lyr["c_fc_w"], lyr["c_fc_b"], act="quick_gelu")
        x = matmul(h, lyr["c_proj_w"], bias=lyr["c_proj_b"], residual=x)

    # ---- projection head: Linear -> GELU -> Dropout -> Linear ----
    y = matmul(x, params["proj1_w"], bias=params["proj1_b"], act="gelu_tanh")
    # TODO(synk): nn.Dropout(0.1) is the identity at inference; no-op here.
    y = matmul(y, params["proj2_w"], bias=params["proj2_b"], out_dtype=jnp.float32)
    y = y.reshape(B, Lp, O)[:, :L, :]            # strip token padding
    return y


# ----------------------------------------------------------------------------
if __name__ == "__main__":
    cfg = dict(in_ch=3, img=16, patch=8, width=128, layers=2, heads=2,
               hidden_dim=128, output_dim=128)
    key = jax.random.PRNGKey(0)
    pkey, xkey = jax.random.split(key)
    params = init_params(pkey, cfg)

    images = jax.random.normal(
        xkey, (2, cfg["in_ch"], cfg["img"], cfg["img"]), jnp.float32)

    fwd = jax.jit(functools.partial(encoder_forward, cfg=cfg))
    out = jax.block_until_ready(fwd(params, images))

    L = (cfg["img"] // cfg["patch"]) ** 2
    assert out.shape == (2, L, cfg["output_dim"]), out.shape
    assert out.dtype == jnp.float32
    assert bool(jnp.all(jnp.isfinite(out)))
    print("KERNEL_OK")
</pallas_src>

<mosaic_0001>
module attributes {stable_mosaic.version = 11 : i64} {
  func.func @_attention_kernel(%arg0: i32, %arg1: i32, %arg2: memref<1x16x128xbf16, #tpu.memory_space<vmem>>, %arg3: memref<1x16x128xbf16, #tpu.memory_space<vmem>>, %arg4: memref<1x16x128xbf16, #tpu.memory_space<vmem>>, %arg5: memref<1x16x128xbf16, #tpu.memory_space<vmem>>) attributes {dimension_semantics = [#tpu.dimension_semantics<parallel>, #tpu.dimension_semantics<parallel>], iteration_bounds = array<i64: 2, 1>, scalar_prefetch = 0 : i64, scratch_operands = 0 : i64, tpu.core_type = #tpu.core_type<tc>, window_params = [{transform_indices = @transform_0, window_bounds = array<i64: 1, 16, 128>}, {transform_indices = @transform_1, window_bounds = array<i64: 1, 16, 128>}, {transform_indices = @transform_2, window_bounds = array<i64: 1, 16, 128>}, {transform_indices = @transform_3, window_bounds = array<i64: 1, 16, 128>}]} {
    %0 = tpu.iota {dimensions = array<i32: 1>} : vector<16x16xi32>
    %c4_i32 = arith.constant 4 : i32
    %1 = vector.broadcast %c4_i32 : i32 to vector<16x16xi32>
    %2 = arith.cmpi slt, %0, %1 : vector<16x16xi32>
    %c0 = arith.constant 0 : index
    %c0_0 = arith.constant 0 : index
    %c0_1 = arith.constant 0 : index
    %3 = vector.load %arg2[%c0, %c0_0, %c0_1] : memref<1x16x128xbf16, #tpu.memory_space<vmem>>, vector<1x16x64xbf16>
    %4 = vector.shape_cast %3 : vector<1x16x64xbf16> to vector<16x64xbf16>
    %c0_2 = arith.constant 0 : index
    %c0_3 = arith.constant 0 : index
    %c0_4 = arith.constant 0 : index
    %5 = vector.load %arg3[%c0_2, %c0_3, %c0_4] : memref<1x16x128xbf16, #tpu.memory_space<vmem>>, vector<1x16x64xbf16>
    %6 = vector.shape_cast %5 : vector<1x16x64xbf16> to vector<16x64xbf16>
    %c0_5 = arith.constant 0 : index
    %c0_6 = arith.constant 0 : index
    %c0_7 = arith.constant 0 : index
    %7 = vector.load %arg4[%c0_5, %c0_6, %c0_7] : memref<1x16x128xbf16, #tpu.memory_space<vmem>>, vector<1x16x64xbf16>
    %8 = vector.shape_cast %7 : vector<1x16x64xbf16> to vector<16x64xbf16>
    %cst = arith.constant dense<0.000000e+00> : vector<16x16xf32>
    %9 = tpu.matmul %4, %6, %cst {dimension_numbers = #tpu.dot_dimension_numbers<[1], [1], [0], [0], [0, 0, 1, 0], [], []>} : vector<16x64xbf16>, vector<16x64xbf16>, vector<16x16xf32> -> vector<16x16xf32>
    %cst_8 = arith.constant 1.250000e-01 : f32
    %10 = vector.broadcast %cst_8 : f32 to vector<16x16xf32>
    %11 = arith.mulf %9, %10 : vector<16x16xf32>
    %cst_9 = arith.constant -1.000000e+30 : f32
    %12 = vector.broadcast %cst_9 : f32 to vector<16x16xf32>
    %13 = arith.select %2, %11, %12 : vector<16x16xi1>, vector<16x16xf32>
    %cst_10 = arith.constant dense<0xFF800000> : vector<16xf32>
    %14 = vector.multi_reduction <maximumf>, %13, %cst_10 [1] : vector<16x16xf32> to vector<16xf32>
    %15 = vector.shape_cast %14 : vector<16xf32> to vector<16x1xf32>
    %16 = vector.broadcast %15 : vector<16x1xf32> to vector<16x16xf32>
    %17 = arith.subf %13, %16 : vector<16x16xf32>
    %18 = math.exp %17 : vector<16x16xf32>
    %cst_11 = arith.constant dense<0.000000e+00> : vector<16xf32>
    %19 = vector.multi_reduction <add>, %18, %cst_11 [1] : vector<16x16xf32> to vector<16xf32>
    %20 = vector.shape_cast %19 : vector<16xf32> to vector<16x1xf32>
    %21 = tpu.reciprocal %20 {approx = true} : vector<16x1xf32> -> vector<16x1xf32>
    %22 = arith.truncf %18 : vector<16x16xf32> to vector<16x16xbf16>
    %cst_12 = arith.constant dense<0.000000e+00> : vector<16x64xf32>
    %23 = tpu.matmul %22, %8, %cst_12 {dimension_numbers = #tpu.dot_dimension_numbers<[1], [0], [0], [1], [0, 0, 1, 1], [], []>} : vector<16x16xbf16>, vector<16x64xbf16>, vector<16x64xf32> -> vector<16x64xf32>
    %24 = vector.broadcast %21 : vector<16x1xf32> to vector<16x64xf32>
    %25 = arith.mulf %23, %24 : vector<16x64xf32>
    %26 = arith.truncf %25 : vector<16x64xf32> to vector<16x64xbf16>
    %c0_13 = arith.constant 0 : index
    %c0_14 = arith.constant 0 : index
    %c0_15 = arith.constant 0 : index
    %27 = vector.load %arg5[%c0_13, %c0_14, %c0_15] : memref<1x16x128xbf16, #tpu.memory_space<vmem>>, vector<1x16x64xbf16>
    %28 = vector.shape_cast %27 : vector<1x16x64xbf16> to vector<16x64xbf16>
    %29 = vector.shape_cast %26 : vector<16x64xbf16> to vector<1x16x64xbf16>
    tpu.vector_store %arg5[%c0_13, %c0_14, %c0_15], %29 {strides = array<i32>} : memref<1x16x128xbf16, #tpu.memory_space<vmem>>, vector<1x16x64xbf16>,
    %c0_16 = arith.constant 0 : index
    %c0_17 = arith.constant 0 : index
    %c64 = arith.constant 64 : index
    %30 = vector.load %arg2[%c0_16, %c0_17, %c64] : memref<1x16x128xbf16, #tpu.memory_space<vmem>>, vector<1x16x64xbf16>
    %31 = vector.shape_cast %30 : vector<1x16x64xbf16> to vector<16x64xbf16>
    %c0_18 = arith.constant 0 : index
    %c0_19 = arith.constant 0 : index
    %c64_20 = arith.constant 64 : index
    %32 = vector.load %arg3[%c0_18, %c0_19, %c64_20] : memref<1x16x128xbf16, #tpu.memory_space<vmem>>, vector<1x16x64xbf16>
    %33 = vector.shape_cast %32 : vector<1x16x64xbf16> to vector<16x64xbf16>
    %c0_21 = arith.constant 0 : index
    %c0_22 = arith.constant 0 : index
    %c64_23 = arith.constant 64 : index
    %34 = vector.load %arg4[%c0_21, %c0_22, %c64_23] : memref<1x16x128xbf16, #tpu.memory_space<vmem>>, vector<1x16x64xbf16>
    %35 = vector.shape_cast %34 : vector<1x16x64xbf16> to vector<16x64xbf16>
    %cst_24 = arith.constant dense<0.000000e+00> : vector<16x16xf32>
    %36 = tpu.matmul %31, %33, %cst_24 {dimension_numbers = #tpu.dot_dimension_numbers<[1], [1], [0], [0], [0, 0, 1, 0], [], []>} : vector<16x64xbf16>, vector<16x64xbf16>, vector<16x16xf32> -> vector<16x16xf32>
    %cst_25 = arith.constant 1.250000e-01 : f32
    %37 = vector.broadcast %cst_25 : f32 to vector<16x16xf32>
    %38 = arith.mulf %36, %37 : vector<16x16xf32>
    %cst_26 = arith.constant -1.000000e+30 : f32
    %39 = vector.broadcast %cst_26 : f32 to vector<16x16xf32>
    %40 = arith.select %2, %38, %39 : vector<16x16xi1>, vector<16x16xf32>
    %cst_27 = arith.constant dense<0xFF800000> : vector<16xf32>
    %41 = vector.multi_reduction <maximumf>, %40, %cst_27 [1] : vector<16x16xf32> to vector<16xf32>
    %42 = vector.shape_cast %41 : vector<16xf32> to vector<16x1xf32>
    %43 = vector.broadcast %42 : vector<16x1xf32> to vector<16x16xf32>
    %44 = arith.subf %40, %43 : vector<16x16xf32>
    %45 = math.exp %44 : vector<16x16xf32>
    %cst_28 = arith.constant dense<0.000000e+00> : vector<16xf32>
    %46 = vector.multi_reduction <add>, %45, %cst_28 [1] : vector<16x16xf32> to vector<16xf32>
    %47 = vector.shape_cast %46 : vector<16xf32> to vector<16x1xf32>
    %48 = tpu.reciprocal %47 {approx = true} : vector<16x1xf32> -> vector<16x1xf32>
    %49 = arith.truncf %45 : vector<16x16xf32> to vector<16x16xbf16>
    %cst_29 = arith.constant dense<0.000000e+00> : vector<16x64xf32>
    %50 = tpu.matmul %49, %35, %cst_29 {dimension_numbers = #tpu.dot_dimension_numbers<[1], [0], [0], [1], [0, 0, 1, 1], [], []>} : vector<16x16xbf16>, vector<16x64xbf16>, vector<16x64xf32> -> vector<16x64xf32>
    %51 = vector.broadcast %48 : vector<16x1xf32> to vector<16x64xf32>
    %52 = arith.mulf %50, %51 : vector<16x64xf32>
    %53 = arith.truncf %52 : vector<16x64xf32> to vector<16x64xbf16>
    %c0_30 = arith.constant 0 : index
    %c0_31 = arith.constant 0 : index
    %c64_32 = arith.constant 64 : index
    %54 = vector.load %arg5[%c0_30, %c0_31, %c64_32] : memref<1x16x128xbf16, #tpu.memory_space<vmem>>, vector<1x16x64xbf16>
    %55 = vector.shape_cast %54 : vector<1x16x64xbf16> to vector<16x64xbf16>
    %56 = vector.shape_cast %53 : vector<16x64xbf16> to vector<1x16x64xbf16>
    tpu.vector_store %arg5[%c0_30, %c0_31, %c64_32], %56 {strides = array<i32>} : memref<1x16x128xbf16, #tpu.memory_space<vmem>>, vector<1x16x64xbf16>,
    return
  }
  func.func @transform_0(%arg0: i32, %arg1: i32) -> (i32, i32, i32) {
    %c0_i32 = arith.constant 0 : i32
    %c0_i32_0 = arith.constant 0 : i32
    return %arg0, %c0_i32, %arg1 : i32, i32, i32
  }
  func.func @transform_1(%arg0: i32, %arg1: i32) -> (i32, i32, i32) {
    %c1_i32 = arith.constant 1 : i32
    %0 = arith.addi %c1_i32, %arg1 : i32
    %c0_i32 = arith.constant 0 : i32
    %c0_i32_0 = arith.constant 0 : i32
    return %arg0, %c0_i32, %0 : i32, i32, i32
  }
  func.func @transform_2(%arg0: i32, %arg1: i32) -> (i32, i32, i32) {
    %c2_i32 = arith.constant 2 : i32
    %0 = arith.addi %c2_i32, %arg1 : i32
    %c0_i32 = arith.constant 0 : i32
    %c0_i32_0 = arith.constant 0 : i32
    return %arg0, %c0_i32, %0 : i32, i32, i32
  }
  func.func @transform_3(%arg0: i32, %arg1: i32) -> (i32, i32, i32) {
    %c0_i32 = arith.constant 0 : i32
    %c0_i32_0 = arith.constant 0 : i32
    return %arg0, %c0_i32, %arg1 : i32, i32, i32
  }
}

module attributes {stable_mosaic.version = 11 : i64} {
  func.func @_conv_ln_kernel(%arg0: i32, %arg1: memref<32x192xbf16, #tpu.memory_space<vmem>>, %arg2: memref<192x128xbf16, #tpu.memory_space<vmem>>, %arg3: memref<1x128xf32, #tpu.memory_space<vmem>>, %arg4: memref<1x128xf32, #tpu.memory_space<vmem>>, %arg5: memref<32x128xbf16, #tpu.memory_space<vmem>>) attributes {dimension_semantics = [#tpu.dimension_semantics<parallel>], iteration_bounds = array<i64: 1>, scalar_prefetch = 0 : i64, scratch_operands = 0 : i64, tpu.core_type = #tpu.core_type<tc>, window_params = [{transform_indices = @transform_0, window_bounds = array<i64: 32, 192>}, {pipeline_mode = #tpu.pipeline_mode<synchronous>, transform_indices = @transform_1, window_bounds = array<i64: 192, 128>}, {pipeline_mode = #tpu.pipeline_mode<synchronous>, transform_indices = @transform_2, window_bounds = array<i64: 1, 128>}, {pipeline_mode = #tpu.pipeline_mode<synchronous>, transform_indices = @transform_3, window_bounds = array<i64: 1, 128>}, {transform_indices = @transform_4, window_bounds = array<i64: 32, 128>}]} {
    %c0 = arith.constant 0 : index
    %c0_0 = arith.constant 0 : index
    %0 = vector.load %arg1[%c0, %c0_0] : memref<32x192xbf16, #tpu.memory_space<vmem>>, vector<32x192xbf16>
    %c0_1 = arith.constant 0 : index
    %c0_2 = arith.constant 0 : index
    %1 = vector.load %arg2[%c0_1, %c0_2] : memref<192x128xbf16, #tpu.memory_space<vmem>>, vector<192x128xbf16>
    %cst = arith.constant dense<0.000000e+00> : vector<32x128xf32>
    %2 = tpu.matmul %0, %1, %cst {dimension_numbers = #tpu.dot_dimension_numbers<[1], [0], [0], [1], [0, 0, 1, 1], [], []>} : vector<32x192xbf16>, vector<192x128xbf16>, vector<32x128xf32> -> vector<32x128xf32>
    %cst_3 = arith.constant dense<0.000000e+00> : vector<32xf32>
    %3 = vector.multi_reduction <add>, %2, %cst_3 [1] : vector<32x128xf32> to vector<32xf32>
    %4 = vector.shape_cast %3 : vector<32xf32> to vector<32x1xf32>
    %cst_4 = arith.constant 1.280000e+02 : f32
    %5 = vector.broadcast %cst_4 : f32 to vector<32x1xf32>
    %6 = arith.divf %4, %5 : vector<32x1xf32>
    %7 = vector.broadcast %6 : vector<32x1xf32> to vector<32x128xf32>
    %8 = arith.subf %2, %7 : vector<32x128xf32>
    %9 = arith.mulf %8, %8 : vector<32x128xf32>
    %cst_5 = arith.constant dense<0.000000e+00> : vector<32xf32>
    %10 = vector.multi_reduction <add>, %9, %cst_5 [1] : vector<32x128xf32> to vector<32xf32>
    %11 = vector.shape_cast %10 : vector<32xf32> to vector<32x1xf32>
    %cst_6 = arith.constant 1.280000e+02 : f32
    %12 = vector.broadcast %cst_6 : f32 to vector<32x1xf32>
    %13 = arith.divf %11, %12 : vector<32x1xf32>
    %cst_7 = arith.constant 9.99999974E-6 : f32
    %14 = vector.broadcast %cst_7 : f32 to vector<32x1xf32>
    %15 = arith.addf %13, %14 : vector<32x1xf32>
    %16 = math.rsqrt %15 : vector<32x1xf32>
    %17 = vector.broadcast %16 : vector<32x1xf32> to vector<32x128xf32>
    %18 = arith.mulf %8, %17 : vector<32x128xf32>
    %c0_8 = arith.constant 0 : index
    %c0_9 = arith.constant 0 : index
    %19 = vector.load %arg3[%c0_8, %c0_9] : memref<1x128xf32, #tpu.memory_space<vmem>>, vector<1x128xf32>
    %20 = vector.broadcast %19 : vector<1x128xf32> to vector<32x128xf32>
    %21 = arith.mulf %18, %20 : vector<32x128xf32>
    %c0_10 = arith.constant 0 : index
    %c0_11 = arith.constant 0 : index
    %22 = vector.load %arg4[%c0_10, %c0_11] : memref<1x128xf32, #tpu.memory_space<vmem>>, vector<1x128xf32>
    %23 = vector.broadcast %22 : vector<1x128xf32> to vector<32x128xf32>
    %24 = arith.addf %21, %23 : vector<32x128xf32>
    %25 = arith.truncf %24 : vector<32x128xf32> to vector<32x128xbf16>
    %c0_12 = arith.constant 0 : index
    %c0_13 = arith.constant 0 : index
    %26 = vector.load %arg5[%c0_12, %c0_13] : memref<32x128xbf16, #tpu.memory_space<vmem>>, vector<32x128xbf16>
    tpu.vector_store %arg5[%c0_12, %c0_13], %25 {strides = array<i32>} : memref<32x128xbf16, #tpu.memory_space<vmem>>, vector<32x128xbf16>,
    return
  }
  func.func @transform_0(%arg0: i32) -> (i32, i32) {
    %c0_i32 = arith.constant 0 : i32
    %c0_i32_0 = arith.constant 0 : i32
    return %arg0, %c0_i32 : i32, i32
  }
  func.func @transform_1(%arg0: i32) -> (i32, i32) {
    %c0_i32 = arith.constant 0 : i32
    %c0_i32_0 = arith.constant 0 : i32
    %c0_i32_1 = arith.constant 0 : i32
    return %c0_i32, %c0_i32_0 : i32, i32
  }
  func.func @transform_2(%arg0: i32) -> (i32, i32) {
    %c0_i32 = arith.constant 0 : i32
    %c0_i32_0 = arith.constant 0 : i32
    %c0_i32_1 = arith.constant 0 : i32
    return %c0_i32, %c0_i32_0 : i32, i32
  }
  func.func @transform_3(%arg0: i32) -> (i32, i32) {
    %c0_i32 = arith.constant 0 : i32
    %c0_i32_0 = arith.constant 0 : i32
    %c0_i32_1 = arith.constant 0 : i32
    return %c0_i32, %c0_i32_0 : i32, i32
  }
  func.func @transform_4(%arg0: i32) -> (i32, i32) {
    %c0_i32 = arith.constant 0 : i32
    %c0_i32_0 = arith.constant 0 : i32
    return %arg0, %c0_i32 : i32, i32
  }
}

module attributes {stable_mosaic.version = 11 : i64} {
  func.func @_ln_matmul_kernel(%arg0: i32, %arg1: i32, %arg2: memref<32x128xbf16, #tpu.memory_space<vmem>>, %arg3: memref<1x128xf32, #tpu.memory_space<vmem>>, %arg4: memref<1x128xf32, #tpu.memory_space<vmem>>, %arg5: memref<128x384xbf16, #tpu.memory_space<vmem>>, %arg6: memref<1x384xf32, #tpu.memory_space<vmem>>, %arg7: memref<32x384xbf16, #tpu.memory_space<vmem>>) attributes {dimension_semantics = [#tpu.dimension_semantics<parallel>, #tpu.dimension_semantics<parallel>], iteration_bounds = array<i64: 1, 1>, scalar_prefetch = 0 : i64, scratch_operands = 0 : i64, tpu.core_type = #tpu.core_type<tc>, window_params = [{transform_indices = @transform_0, window_bounds = array<i64: 32, 128>}, {pipeline_mode = #tpu.pipeline_mode<synchronous>, transform_indices = @transform_1, window_bounds = array<i64: 1, 128>}, {pipeline_mode = #tpu.pipeline_mode<synchronous>, transform_indices = @transform_2, window_bounds = array<i64: 1, 128>}, {transform_indices = @transform_3, window_bounds = array<i64: 128, 384>}, {transform_indices = @transform_4, window_bounds = array<i64: 1, 384>}, {transform_indices = @transform_5, window_bounds = array<i64: 32, 384>}]} {
    %c0 = arith.constant 0 : index
    %c0_0 = arith.constant 0 : index
    %0 = vector.load %arg2[%c0, %c0_0] : memref<32x128xbf16, #tpu.memory_space<vmem>>, vector<32x128xbf16>
    %1 = arith.extf %0 : vector<32x128xbf16> to vector<32x128xf32>
    %cst = arith.constant dense<0.000000e+00> : vector<32xf32>
    %2 = vector.multi_reduction <add>, %1, %cst [1] : vector<32x128xf32> to vector<32xf32>
    %3 = vector.shape_cast %2 : vector<32xf32> to vector<32x1xf32>
    %cst_1 = arith.constant 1.280000e+02 : f32
    %4 = vector.broadcast %cst_1 : f32 to vector<32x1xf32>
    %5 = arith.divf %3, %4 : vector<32x1xf32>
    %6 = vector.broadcast %5 : vector<32x1xf32> to vector<32x128xf32>
    %7 = arith.subf %1, %6 : vector<32x128xf32>
    %8 = arith.mulf %7, %7 : vector<32x128xf32>
    %cst_2 = arith.constant dense<0.000000e+00> : vector<32xf32>
    %9 = vector.multi_reduction <add>, %8, %cst_2 [1] : vector<32x128xf32> to vector<32xf32>
    %10 = vector.shape_cast %9 : vector<32xf32> to vector<32x1xf32>
    %cst_3 = arith.constant 1.280000e+02 : f32
    %11 = vector.broadcast %cst_3 : f32 to vector<32x1xf32>
    %12 = arith.divf %10, %11 : vector<32x1xf32>
    %cst_4 = arith.constant 9.99999974E-6 : f32
    %13 = vector.broadcast %cst_4 : f32 to vector<32x1xf32>
    %14 = arith.addf %12, %13 : vector<32x1xf32>
    %15 = math.rsqrt %14 : vector<32x1xf32>
    %16 = vector.broadcast %15 : vector<32x1xf32> to vector<32x128xf32>
    %17 = arith.mulf %7, %16 : vector<32x128xf32>
    %c0_5 = arith.constant 0 : index
    %c0_6 = arith.constant 0 : index
    %18 = vector.load %arg3[%c0_5, %c0_6] : memref<1x128xf32, #tpu.memory_space<vmem>>, vector<1x128xf32>
    %19 = vector.broadcast %18 : vector<1x128xf32> to vector<32x128xf32>
    %20 = arith.mulf %17, %19 : vector<32x128xf32>
    %c0_7 = arith.constant 0 : index
    %c0_8 = arith.constant 0 : index
    %21 = vector.load %arg4[%c0_7, %c0_8] : memref<1x128xf32, #tpu.memory_space<vmem>>, vector<1x128xf32>
    %22 = vector.broadcast %21 : vector<1x128xf32> to vector<32x128xf32>
    %23 = arith.addf %20, %22 : vector<32x128xf32>
    %24 = arith.truncf %23 : vector<32x128xf32> to vector<32x128xbf16>
    %c0_9 = arith.constant 0 : index
    %c0_10 = arith.constant 0 : index
    %25 = vector.load %arg5[%c0_9, %c0_10] : memref<128x384xbf16, #tpu.memory_space<vmem>>, vector<128x384xbf16>
    %cst_11 = arith.constant dense<0.000000e+00> : vector<32x384xf32>
    %26 = tpu.matmul %24, %25, %cst_11 {dimension_numbers = #tpu.dot_dimension_numbers<[1], [0], [0], [1], [0, 0, 1, 1], [], []>} : vector<32x128xbf16>, vector<128x384xbf16>, vector<32x384xf32> -> vector<32x384xf32>
    %c0_12 = arith.constant 0 : index
    %c0_13 = arith.constant 0 : index
    %27 = vector.load %arg6[%c0_12, %c0_13] : memref<1x384xf32, #tpu.memory_space<vmem>>, vector<1x384xf32>
    %28 = vector.broadcast %27 : vector<1x384xf32> to vector<32x384xf32>
    %29 = arith.addf %26, %28 : vector<32x384xf32>
    %30 = arith.truncf %29 : vector<32x384xf32> to vector<32x384xbf16>
    %c0_14 = arith.constant 0 : index
    %c0_15 = arith.constant 0 : index
    %31 = vector.load %arg7[%c0_14, %c0_15] : memref<32x384xbf16, #tpu.memory_space<vmem>>, vector<32x384xbf16>
    tpu.vector_store %arg7[%c0_14, %c0_15], %30 {strides = array<i32>} : memref<32x384xbf16, #tpu.memory_space<vmem>>, vector<32x384xbf16>,
    return
  }
  func.func @transform_0(%arg0: i32, %arg1: i32) -> (i32, i32) {
    %c0_i32 = arith.constant 0 : i32
    %c0_i32_0 = arith.constant 0 : i32
    return %arg0, %c0_i32 : i32, i32
  }
  func.func @transform_1(%arg0: i32, %arg1: i32) -> (i32, i32) {
    %c0_i32 = arith.constant 0 : i32
    %c0_i32_0 = arith.constant 0 : i32
    %c0_i32_1 = arith.constant 0 : i32
    return %c0_i32, %c0_i32_0 : i32, i32
  }
  func.func @transform_2(%arg0: i32, %arg1: i32) -> (i32, i32) {
    %c0_i32 = arith.constant 0 : i32
    %c0_i32_0 = arith.constant 0 : i32
    %c0_i32_1 = arith.constant 0 : i32
    return %c0_i32, %c0_i32_0 : i32, i32
  }
  func.func @transform_3(%arg0: i32, %arg1: i32) -> (i32, i32) {
    %c0_i32 = arith.constant 0 : i32
    %c0_i32_0 = arith.constant 0 : i32
    return %c0_i32, %arg1 : i32, i32
  }
  func.func @transform_4(%arg0: i32, %arg1: i32) -> (i32, i32) {
    %c0_i32 = arith.constant 0 : i32
    %c0_i32_0 = arith.constant 0 : i32
    return %c0_i32, %arg1 : i32, i32
  }
  func.func @transform_5(%arg0: i32, %arg1: i32) -> (i32, i32) {
    %c0_i32 = arith.constant 0 : i32
    return %arg0, %arg1 : i32, i32
  }
}

module attributes {stable_mosaic.version = 11 : i64} {
  func.func @_matmul_kernel(%arg0: i32, %arg1: i32, %arg2: memref<32x128xbf16, #tpu.memory_space<vmem>>, %arg3: memref<128x128xbf16, #tpu.memory_space<vmem>>, %arg4: memref<1x128xf32, #tpu.memory_space<vmem>>, %arg5: memref<32x128xbf16, #tpu.memory_space<vmem>>, %arg6: memref<32x128xbf16, #tpu.memory_space<vmem>>) attributes {dimension_semantics = [#tpu.dimension_semantics<parallel>, #tpu.dimension_semantics<parallel>], iteration_bounds = array<i64: 1, 1>, scalar_prefetch = 0 : i64, scratch_operands = 0 : i64, tpu.core_type = #tpu.core_type<tc>, window_params = [{transform_indices = @transform_0, window_bounds = array<i64: 32, 128>}, {transform_indices = @transform_1, window_bounds = array<i64: 128, 128>}, {transform_indices = @transform_2, window_bounds = array<i64: 1, 128>}, {transform_indices = @transform_3, window_bounds = array<i64: 32, 128>}, {transform_indices = @transform_4, window_bounds = array<i64: 32, 128>}]} {
    %c0 = arith.constant 0 : index
    %c0_0 = arith.constant 0 : index
    %0 = vector.load %arg2[%c0, %c0_0] : memref<32x128xbf16, #tpu.memory_space<vmem>>, vector<32x128xbf16>
    %c0_1 = arith.constant 0 : index
    %c0_2 = arith.constant 0 : index
    %1 = vector.load %arg3[%c0_1, %c0_2] : memref<128x128xbf16, #tpu.memory_space<vmem>>, vector<128x128xbf16>
    %cst = arith.constant dense<0.000000e+00> : vector<32x128xf32>
    %2 = tpu.matmul %0, %1, %cst {dimension_numbers = #tpu.dot_dimension_numbers<[1], [0], [0], [1], [0, 0, 1, 1], [], []>} : vector<32x128xbf16>, vector<128x128xbf16>, vector<32x128xf32> -> vector<32x128xf32>
    %c0_3 = arith.constant 0 : index
    %c0_4 = arith.constant 0 : index
    %3 = vector.load %arg4[%c0_3, %c0_4] : memref<1x128xf32, #tpu.memory_space<vmem>>, vector<1x128xf32>
    %4 = vector.broadcast %3 : vector<1x128xf32> to vector<32x128xf32>
    %5 = arith.addf %2, %4 : vector<32x128xf32>
    %c0_5 = arith.constant 0 : index
    %c0_6 = arith.constant 0 : index
    %6 = vector.load %arg5[%c0_5, %c0_6] : memref<32x128xbf16, #tpu.memory_space<vmem>>, vector<32x128xbf16>
    %7 = arith.extf %6 : vector<32x128xbf16> to vector<32x128xf32>
    %8 = arith.addf %5, %7 : vector<32x128xf32>
    %9 = arith.truncf %8 : vector<32x128xf32> to vector<32x128xbf16>
    %c0_7 = arith.constant 0 : index
    %c0_8 = arith.constant 0 : index
    %10 = vector.load %arg6[%c0_7, %c0_8] : memref<32x128xbf16, #tpu.memory_space<vmem>>, vector<32x128xbf16>
    tpu.vector_store %arg6[%c0_7, %c0_8], %9 {strides = array<i32>} : memref<32x128xbf16, #tpu.memory_space<vmem>>, vector<32x128xbf16>,
    return
  }
  func.func @transform_0(%arg0: i32, %arg1: i32) -> (i32, i32) {
    %c0_i32 = arith.constant 0 : i32
    %c0_i32_0 = arith.constant 0 : i32
    return %arg0, %c0_i32 : i32, i32
  }
  func.func @transform_1(%arg0: i32, %arg1: i32) -> (i32, i32) {
    %c0_i32 = arith.constant 0 : i32
    %c0_i32_0 = arith.constant 0 : i32
    return %c0_i32, %arg1 : i32, i32
  }
  func.func @transform_2(%arg0: i32, %arg1: i32) -> (i32, i32) {
    %c0_i32 = arith.constant 0 : i32
    %c0_i32_0 = arith.constant 0 : i32
    return %c0_i32, %arg1 : i32, i32
  }
  func.func @transform_3(%arg0: i32, %arg1: i32) -> (i32, i32) {
    %c0_i32 = arith.constant 0 : i32
    return %arg0, %arg1 : i32, i32
  }
  func.func @transform_4(%arg0: i32, %arg1: i32) -> (i32, i32) {
    %c0_i32 = arith.constant 0 : i32
    return %arg0, %arg1 : i32, i32
  }
}

module attributes {stable_mosaic.version = 11 : i64} {
  func.func @_matmul_kernel(%arg0: i32, %arg1: i32, %arg2: memref<32x512xbf16, #tpu.memory_space<vmem>>, %arg3: memref<512x128xbf16, #tpu.memory_space<vmem>>, %arg4: memref<1x128xf32, #tpu.memory_space<vmem>>, %arg5: memref<32x128xbf16, #tpu.memory_space<vmem>>, %arg6: memref<32x128xbf16, #tpu.memory_space<vmem>>) attributes {dimension_semantics = [#tpu.dimension_semantics<parallel>, #tpu.dimension_semantics<parallel>], iteration_bounds = array<i64: 1, 1>, scalar_prefetch = 0 : i64, scratch_operands = 0 : i64, tpu.core_type = #tpu.core_type<tc>, window_params = [{transform_indices = @transform_0, window_bounds = array<i64: 32, 512>}, {transform_indices = @transform_1, window_bounds = array<i64: 512, 128>}, {transform_indices = @transform_2, window_bounds = array<i64: 1, 128>}, {transform_indices = @transform_3, window_bounds = array<i64: 32, 128>}, {transform_indices = @transform_4, window_bounds = array<i64: 32, 128>}]} {
    %c0 = arith.constant 0 : index
    %c0_0 = arith.constant 0 : index
    %0 = vector.load %arg2[%c0, %c0_0] : memref<32x512xbf16, #tpu.memory_space<vmem>>, vector<32x512xbf16>
    %c0_1 = arith.constant 0 : index
    %c0_2 = arith.constant 0 : index
    %1 = vector.load %arg3[%c0_1, %c0_2] : memref<512x128xbf16, #tpu.memory_space<vmem>>, vector<512x128xbf16>
    %cst = arith.constant dense<0.000000e+00> : vector<32x128xf32>
    %2 = tpu.matmul %0, %1, %cst {dimension_numbers = #tpu.dot_dimension_numbers<[1], [0], [0], [1], [0, 0, 1, 1], [], []>} : vector<32x512xbf16>, vector<512x128xbf16>, vector<32x128xf32> -> vector<32x128xf32>
    %c0_3 = arith.constant 0 : index
    %c0_4 = arith.constant 0 : index
    %3 = vector.load %arg4[%c0_3, %c0_4] : memref<1x128xf32, #tpu.memory_space<vmem>>, vector<1x128xf32>
    %4 = vector.broadcast %3 : vector<1x128xf32> to vector<32x128xf32>
    %5 = arith.addf %2, %4 : vector<32x128xf32>
    %c0_5 = arith.constant 0 : index
    %c0_6 = arith.constant 0 : index
    %6 = vector.load %arg5[%c0_5, %c0_6] : memref<32x128xbf16, #tpu.memory_space<vmem>>, vector<32x128xbf16>
    %7 = arith.extf %6 : vector<32x128xbf16> to vector<32x128xf32>
    %8 = arith.addf %5, %7 : vector<32x128xf32>
    %9 = arith.truncf %8 : vector<32x128xf32> to vector<32x128xbf16>
    %c0_7 = arith.constant 0 : index
    %c0_8 = arith.constant 0 : index
    %10 = vector.load %arg6[%c0_7, %c0_8] : memref<32x128xbf16, #tpu.memory_space<vmem>>, vector<32x128xbf16>
    tpu.vector_store %arg6[%c0_7, %c0_8], %9 {strides = array<i32>} : memref<32x128xbf16, #tpu.memory_space<vmem>>, vector<32x128xbf16>,
    return
  }
  func.func @transform_0(%arg0: i32, %arg1: i32) -> (i32, i32) {
    %c0_i32 = arith.constant 0 : i32
    %c0_i32_0 = arith.constant 0 : i32
    return %arg0, %c0_i32 : i32, i32
  }
  func.func @transform_1(%arg0: i32, %arg1: i32) -> (i32, i32) {
    %c0_i32 = arith.constant 0 : i32
    %c0_i32_0 = arith.constant 0 : i32
    return %c0_i32, %arg1 : i32, i32
  }
  func.func @transform_2(%arg0: i32, %arg1: i32) -> (i32, i32) {
    %c0_i32 = arith.constant 0 : i32
    %c0_i32_0 = arith.constant 0 : i32
    return %c0_i32, %arg1 : i32, i32
  }
  func.func @transform_3(%arg0: i32, %arg1: i32) -> (i32, i32) {
    %c0_i32 = arith.constant 0 : i32
    return %arg0, %arg1 : i32, i32
  }
  func.func @transform_4(%arg0: i32, %arg1: i32) -> (i32, i32) {
    %c0_i32 = arith.constant 0 : i32
    return %arg0, %arg1 : i32, i32
  }
}

module attributes {stable_mosaic.version = 11 : i64} {
  func.func @_ln_matmul_kernel(%arg0: i32, %arg1: i32, %arg2: memref<32x128xbf16, #tpu.memory_space<vmem>>, %arg3: memref<1x128xf32, #tpu.memory_space<vmem>>, %arg4: memref<1x128xf32, #tpu.memory_space<vmem>>, %arg5: memref<128x512xbf16, #tpu.memory_space<vmem>>, %arg6: memref<1x512xf32, #tpu.memory_space<vmem>>, %arg7: memref<32x512xbf16, #tpu.memory_space<vmem>>) attributes {dimension_semantics = [#tpu.dimension_semantics<parallel>, #tpu.dimension_semantics<parallel>], iteration_bounds = array<i64: 1, 1>, scalar_prefetch = 0 : i64, scratch_operands = 0 : i64, tpu.core_type = #tpu.core_type<tc>, window_params = [{transform_indices = @transform_0, window_bounds = array<i64: 32, 128>}, {pipeline_mode = #tpu.pipeline_mode<synchronous>, transform_indices = @transform_1, window_bounds = array<i64: 1, 128>}, {pipeline_mode = #tpu.pipeline_mode<synchronous>, transform_indices = @transform_2, window_bounds = array<i64: 1, 128>}, {transform_indices = @transform_3, window_bounds = array<i64: 128, 512>}, {transform_indices = @transform_4, window_bounds = array<i64: 1, 512>}, {transform_indices = @transform_5, window_bounds = array<i64: 32, 512>}]} {
    %c0 = arith.constant 0 : index
    %c0_0 = arith.constant 0 : index
    %0 = vector.load %arg2[%c0, %c0_0] : memref<32x128xbf16, #tpu.memory_space<vmem>>, vector<32x128xbf16>
    %1 = arith.extf %0 : vector<32x128xbf16> to vector<32x128xf32>
    %cst = arith.constant dense<0.000000e+00> : vector<32xf32>
    %2 = vector.multi_reduction <add>, %1, %cst [1] : vector<32x128xf32> to vector<32xf32>
    %3 = vector.shape_cast %2 : vector<32xf32> to vector<32x1xf32>
    %cst_1 = arith.constant 1.280000e+02 : f32
    %4 = vector.broadcast %cst_1 : f32 to vector<32x1xf32>
    %5 = arith.divf %3, %4 : vector<32x1xf32>
    %6 = vector.broadcast %5 : vector<32x1xf32> to vector<32x128xf32>
    %7 = arith.subf %1, %6 : vector<32x128xf32>
    %8 = arith.mulf %7, %7 : vector<32x128xf32>
    %cst_2 = arith.constant dense<0.000000e+00> : vector<32xf32>
    %9 = vector.multi_reduction <add>, %8, %cst_2 [1] : vector<32x128xf32> to vector<32xf32>
    %10 = vector.shape_cast %9 : vector<32xf32> to vector<32x1xf32>
    %cst_3 = arith.constant 1.280000e+02 : f32
    %11 = vector.broadcast %cst_3 : f32 to vector<32x1xf32>
    %12 = arith.divf %10, %11 : vector<32x1xf32>
    %cst_4 = arith.constant 9.99999974E-6 : f32
    %13 = vector.broadcast %cst_4 : f32 to vector<32x1xf32>
    %14 = arith.addf %12, %13 : vector<32x1xf32>
    %15 = math.rsqrt %14 : vector<32x1xf32>
    %16 = vector.broadcast %15 : vector<32x1xf32> to vector<32x128xf32>
    %17 = arith.mulf %7, %16 : vector<32x128xf32>
    %c0_5 = arith.constant 0 : index
    %c0_6 = arith.constant 0 : index
    %18 = vector.load %arg3[%c0_5, %c0_6] : memref<1x128xf32, #tpu.memory_space<vmem>>, vector<1x128xf32>
    %19 = vector.broadcast %18 : vector<1x128xf32> to vector<32x128xf32>
    %20 = arith.mulf %17, %19 : vector<32x128xf32>
    %c0_7 = arith.constant 0 : index
    %c0_8 = arith.constant 0 : index
    %21 = vector.load %arg4[%c0_7, %c0_8] : memref<1x128xf32, #tpu.memory_space<vmem>>, vector<1x128xf32>
    %22 = vector.broadcast %21 : vector<1x128xf32> to vector<32x128xf32>
    %23 = arith.addf %20, %22 : vector<32x128xf32>
    %24 = arith.truncf %23 : vector<32x128xf32> to vector<32x128xbf16>
    %c0_9 = arith.constant 0 : index
    %c0_10 = arith.constant 0 : index
    %25 = vector.load %arg5[%c0_9, %c0_10] : memref<128x512xbf16, #tpu.memory_space<vmem>>, vector<128x512xbf16>
    %cst_11 = arith.constant dense<0.000000e+00> : vector<32x512xf32>
    %26 = tpu.matmul %24, %25, %cst_11 {dimension_numbers = #tpu.dot_dimension_numbers<[1], [0], [0], [1], [0, 0, 1, 1], [], []>} : vector<32x128xbf16>, vector<128x512xbf16>, vector<32x512xf32> -> vector<32x512xf32>
    %c0_12 = arith.constant 0 : index
    %c0_13 = arith.constant 0 : index
    %27 = vector.load %arg6[%c0_12, %c0_13] : memref<1x512xf32, #tpu.memory_space<vmem>>, vector<1x512xf32>
    %28 = vector.broadcast %27 : vector<1x512xf32> to vector<32x512xf32>
    %29 = arith.addf %26, %28 : vector<32x512xf32>
    %cst_14 = arith.constant 1.702000e+00 : f32
    %30 = vector.broadcast %cst_14 : f32 to vector<32x512xf32>
    %31 = arith.mulf %30, %29 : vector<32x512xf32>
    %32 = arith.negf %31 : vector<32x512xf32>
    %33 = math.exp %32 : vector<32x512xf32>
    %cst_15 = arith.constant 1.000000e+00 : f32
    %34 = vector.broadcast %cst_15 : f32 to vector<32x512xf32>
    %35 = arith.addf %34, %33 : vector<32x512xf32>
    %36 = arith.divf %34, %35 : vector<32x512xf32>
    %37 = arith.mulf %29, %36 : vector<32x512xf32>
    %38 = arith.truncf %37 : vector<32x512xf32> to vector<32x512xbf16>
    %c0_16 = arith.constant 0 : index
    %c0_17 = arith.constant 0 : index
    %39 = vector.load %arg7[%c0_16, %c0_17] : memref<32x512xbf16, #tpu.memory_space<vmem>>, vector<32x512xbf16>
    tpu.vector_store %arg7[%c0_16, %c0_17], %38 {strides = array<i32>} : memref<32x512xbf16, #tpu.memory_space<vmem>>, vector<32x512xbf16>,
    return
  }
  func.func @transform_0(%arg0: i32, %arg1: i32) -> (i32, i32) {
    %c0_i32 = arith.constant 0 : i32
    %c0_i32_0 = arith.constant 0 : i32
    return %arg0, %c0_i32 : i32, i32
  }
  func.func @transform_1(%arg0: i32, %arg1: i32) -> (i32, i32) {
    %c0_i32 = arith.constant 0 : i32
    %c0_i32_0 = arith.constant 0 : i32
    %c0_i32_1 = arith.constant 0 : i32
    return %c0_i32, %c0_i32_0 : i32, i32
  }
  func.func @transform_2(%arg0: i32, %arg1: i32) -> (i32, i32) {
    %c0_i32 = arith.constant 0 : i32
    %c0_i32_0 = arith.constant 0 : i32
    %c0_i32_1 = arith.constant 0 : i32
    return %c0_i32, %c0_i32_0 : i32, i32
  }
  func.func @transform_3(%arg0: i32, %arg1: i32) -> (i32, i32) {
    %c0_i32 = arith.constant 0 : i32
    %c0_i32_0 = arith.constant 0 : i32
    return %c0_i32, %arg1 : i32, i32
  }
  func.func @transform_4(%arg0: i32, %arg1: i32) -> (i32, i32) {
    %c0_i32 = arith.constant 0 : i32
    %c0_i32_0 = arith.constant 0 : i32
    return %c0_i32, %arg1 : i32, i32
  }
  func.func @transform_5(%arg0: i32, %arg1: i32) -> (i32, i32) {
    %c0_i32 = arith.constant 0 : i32
    return %arg0, %arg1 : i32, i32
  }
}

module attributes {stable_mosaic.version = 11 : i64} {
  func.func @_matmul_kernel(%arg0: i32, %arg1: i32, %arg2: memref<32x128xbf16, #tpu.memory_space<vmem>>, %arg3: memref<128x128xbf16, #tpu.memory_space<vmem>>, %arg4: memref<1x128xf32, #tpu.memory_space<vmem>>, %arg5: memref<32x128xf32, #tpu.memory_space<vmem>>) attributes {dimension_semantics = [#tpu.dimension_semantics<parallel>, #tpu.dimension_semantics<parallel>], iteration_bounds = array<i64: 1, 1>, scalar_prefetch = 0 : i64, scratch_operands = 0 : i64, tpu.core_type = #tpu.core_type<tc>, window_params = [{transform_indices = @transform_0, window_bounds = array<i64: 32, 128>}, {transform_indices = @transform_1, window_bounds = array<i64: 128, 128>}, {transform_indices = @transform_2, window_bounds = array<i64: 1, 128>}, {transform_indices = @transform_3, window_bounds = array<i64: 32, 128>}]} {
    %c0 = arith.constant 0 : index
    %c0_0 = arith.constant 0 : index
    %0 = vector.load %arg2[%c0, %c0_0] : memref<32x128xbf16, #tpu.memory_space<vmem>>, vector<32x128xbf16>
    %c0_1 = arith.constant 0 : index
    %c0_2 = arith.constant 0 : index
    %1 = vector.load %arg3[%c0_1, %c0_2] : memref<128x128xbf16, #tpu.memory_space<vmem>>, vector<128x128xbf16>
    %cst = arith.constant dense<0.000000e+00> : vector<32x128xf32>
    %2 = tpu.matmul %0, %1, %cst {dimension_numbers = #tpu.dot_dimension_numbers<[1], [0], [0], [1], [0, 0, 1, 1], [], []>} : vector<32x128xbf16>, vector<128x128xbf16>, vector<32x128xf32> -> vector<32x128xf32>
    %c0_3 = arith.constant 0 : index
    %c0_4 = arith.constant 0 : index
    %3 = vector.load %arg4[%c0_3, %c0_4] : memref<1x128xf32, #tpu.memory_space<vmem>>, vector<1x128xf32>
    %4 = vector.broadcast %3 : vector<1x128xf32> to vector<32x128xf32>
    %5 = arith.addf %2, %4 : vector<32x128xf32>
    %c0_5 = arith.constant 0 : index
    %c0_6 = arith.constant 0 : index
    %6 = vector.load %arg5[%c0_5, %c0_6] : memref<32x128xf32, #tpu.memory_space<vmem>>, vector<32x128xf32>
    tpu.vector_store %arg5[%c0_5, %c0_6], %5 {strides = array<i32>} : memref<32x128xf32, #tpu.memory_space<vmem>>, vector<32x128xf32>,
    return
  }
  func.func @transform_0(%arg0: i32, %arg1: i32) -> (i32, i32) {
    %c0_i32 = arith.constant 0 : i32
    %c0_i32_0 = arith.constant 0 : i32
    return %arg0, %c0_i32 : i32, i32
  }
  func.func @transform_1(%arg0: i32, %arg1: i32) -> (i32, i32) {
    %c0_i32 = arith.constant 0 : i32
    %c0_i32_0 = arith.constant 0 : i32
    return %c0_i32, %arg1 : i32, i32
  }
  func.func @transform_2(%arg0: i32, %arg1: i32) -> (i32, i32) {
    %c0_i32 = arith.constant 0 : i32
    %c0_i32_0 = arith.constant 0 : i32
    return %c0_i32, %arg1 : i32, i32
  }
  func.func @transform_3(%arg0: i32, %arg1: i32) -> (i32, i32) {
    %c0_i32 = arith.constant 0 : i32
    return %arg0, %arg1 : i32, i32
  }
}

module attributes {stable_mosaic.version = 11 : i64} {
  func.func @_matmul_kernel(%arg0: i32, %arg1: i32, %arg2: memref<32x128xbf16, #tpu.memory_space<vmem>>, %arg3: memref<128x128xbf16, #tpu.memory_space<vmem>>, %arg4: memref<1x128xf32, #tpu.memory_space<vmem>>, %arg5: memref<32x128xbf16, #tpu.memory_space<vmem>>) attributes {dimension_semantics = [#tpu.dimension_semantics<parallel>, #tpu.dimension_semantics<parallel>], iteration_bounds = array<i64: 1, 1>, scalar_prefetch = 0 : i64, scratch_operands = 0 : i64, tpu.core_type = #tpu.core_type<tc>, window_params = [{transform_indices = @transform_0, window_bounds = array<i64: 32, 128>}, {transform_indices = @transform_1, window_bounds = array<i64: 128, 128>}, {transform_indices = @transform_2, window_bounds = array<i64: 1, 128>}, {transform_indices = @transform_3, window_bounds = array<i64: 32, 128>}]} {
    %c0 = arith.constant 0 : index
    %c0_0 = arith.constant 0 : index
    %0 = vector.load %arg2[%c0, %c0_0] : memref<32x128xbf16, #tpu.memory_space<vmem>>, vector<32x128xbf16>
    %c0_1 = arith.constant 0 : index
    %c0_2 = arith.constant 0 : index
    %1 = vector.load %arg3[%c0_1, %c0_2] : memref<128x128xbf16, #tpu.memory_space<vmem>>, vector<128x128xbf16>
    %cst = arith.constant dense<0.000000e+00> : vector<32x128xf32>
    %2 = tpu.matmul %0, %1, %cst {dimension_numbers = #tpu.dot_dimension_numbers<[1], [0], [0], [1], [0, 0, 1, 1], [], []>} : vector<32x128xbf16>, vector<128x128xbf16>, vector<32x128xf32> -> vector<32x128xf32>
    %c0_3 = arith.constant 0 : index
    %c0_4 = arith.constant 0 : index
    %3 = vector.load %arg4[%c0_3, %c0_4] : memref<1x128xf32, #tpu.memory_space<vmem>>, vector<1x128xf32>
    %4 = vector.broadcast %3 : vector<1x128xf32> to vector<32x128xf32>
    %5 = arith.addf %2, %4 : vector<32x128xf32>
    %cst_5 = arith.constant 5.000000e-01 : f32
    %6 = vector.broadcast %cst_5 : f32 to vector<32x128xf32>
    %7 = arith.mulf %6, %5 : vector<32x128xf32>
    %cst_6 = arith.constant 4.471500e-02 : f32
    %8 = vector.broadcast %cst_6 : f32 to vector<32x128xf32>
    %9 = arith.mulf %8, %5 : vector<32x128xf32>
    %10 = arith.mulf %9, %5 : vector<32x128xf32>
    %11 = arith.mulf %10, %5 : vector<32x128xf32>
    %12 = arith.addf %5, %11 : vector<32x128xf32>
    %cst_7 = arith.constant 0.797884583 : f32
    %13 = vector.broadcast %cst_7 : f32 to vector<32x128xf32>
    %14 = arith.mulf %13, %12 : vector<32x128xf32>
    %15 = math.tanh %14 : vector<32x128xf32>
    %cst_8 = arith.constant 1.000000e+00 : f32
    %16 = vector.broadcast %cst_8 : f32 to vector<32x128xf32>
    %17 = arith.addf %16, %15 : vector<32x128xf32>
    %18 = arith.mulf %7, %17 : vector<32x128xf32>
    %19 = arith.truncf %18 : vector<32x128xf32> to vector<32x128xbf16>
    %c0_9 = arith.constant 0 : index
    %c0_10 = arith.constant 0 : index
    %20 = vector.load %arg5[%c0_9, %c0_10] : memref<32x128xbf16, #tpu.memory_space<vmem>>, vector<32x128xbf16>
    tpu.vector_store %arg5[%c0_9, %c0_10], %19 {strides = array<i32>} : memref<32x128xbf16, #tpu.memory_space<vmem>>, vector<32x128xbf16>,
    return
  }
  func.func @transform_0(%arg0: i32, %arg1: i32) -> (i32, i32) {
    %c0_i32 = arith.constant 0 : i32
    %c0_i32_0 = arith.constant 0 : i32
    return %arg0, %c0_i32 : i32, i32
  }
  func.func @transform_1(%arg0: i32, %arg1: i32) -> (i32, i32) {
    %c0_i32 = arith.constant 0 : i32
    %c0_i32_0 = arith.constant 0 : i32
    return %c0_i32, %arg1 : i32, i32
  }
  func.func @transform_2(%arg0: i32, %arg1: i32) -> (i32, i32) {
    %c0_i32 = arith.constant 0 : i32
    %c0_i32_0 = arith.constant 0 : i32
    return %c0_i32, %arg1 : i32, i32
  }
  func.func @transform_3(%arg0: i32, %arg1: i32) -> (i32, i32) {
    %c0_i32 = arith.constant 0 : i32
    return %arg0, %arg1 : i32, i32
  }
}

</mosaic_0001>

<llo_original>
// kernel: encoder_forward.15
$region0: #{encoder_forward.15}
  #allocation0 [shape = 'u32[]', space=smem, size = 0x4, offset = 0x4, fixed_abs, tag = 'smem constant byte address 0x4 - core index']
  #allocation1 [shape = 'u32[144,128]{1,0:T(1,128)}', space=vmem, size = 0x12000, scoped, tag = 'internal scratch']
  %s0 = inlined_call_operand.vmem [shape: bf16[2,16,384], index: 0, kind: input, shape index: {}, may-alias: {0,1,2}]
  %s1 = inlined_call_operand.vmem [shape: bf16[2,16,384], index: 1, kind: input, shape index: {}, may-alias: {0,1,2}]
  %s2 = inlined_call_operand.vmem [shape: bf16[2,16,384], index: 2, kind: input, shape index: {}, may-alias: {0,1,2}]
  %s3 = inlined_call_operand.vmem [shape: bf16[2,16,128], index: 3, kind: output, shape index: {}]
  %s4 = sld [smem:[#allocation0]]
  $region168: #{encoder_forward.15} parent=0
    _
  %s6 = ssub.s32 1, %s4
  %s7 = scalar_select 0, %s6, %s4
  $region1: #{encoder_forward.15} parent=0
    #allocation2 [shape = 'u8[8192]{0}', space=vmem, size = 0x2000, scoped, tag = 'input window, operand 0']
    #allocation3 [shape = 'u8[8192]{0}', space=vmem, size = 0x2000, scoped, tag = 'input window, operand 1']
    #allocation4 [shape = 'u8[8192]{0}', space=vmem, size = 0x2000, scoped, tag = 'input window, operand 2']
    loop: start=0, step=1, limit=4
    $region2: #{encoder_forward.15} parent=1 // loop_pre_header
      _
    $region3: #{encoder_forward.15} parent=1 // loop_header
      %s9 = sphi 0, %s13
      %p10 = scmp.ge.s32.totalorder %s9, 4
      %s16 = sphi 0, %s28
      %s17 = sphi 0, %s24
      %s18 = sphi 0, %s16
      %s19 = sphi 0, %s17
      %s20 = sphi 0, %s18
      %s21 = sphi 0, %s19
      %s33 = sphi 0, %s35
      %s36 = sphi 0, %s33
      %s37 = sphi 0, %s36
      %s53 = sphi 0, %s37
      %s63 = sphi 0, %s65
      %s66 = sphi 0, %s63
      %s67 = sphi 0, %s66
      %s83 = sphi 0, %s67
      %s93 = sphi 0, %s95
      %s96 = sphi 0, %s93
      %s97 = sphi 0, %s96
      %s113 = sphi 0, %s97
      %s121 = sphi 0, %s123
      %s124 = sphi 0, %s121
      %s125 = sphi 0, %s124
      %s141 = sphi 0, %s125
    $region4: #{encoder_forward.15} parent=1 // loop_header_branch
      %12 = sbr.rel (%p10) target = $region8
    $region5: #{encoder_forward.15} parent=1 // loop_body
      %s14 = ssub.s32 %s9, 1
      %s15 = ssub.s32 %s9, 2
      %s22 = sadd.s32 1, %s17
      %p23 = scmp.ge.s32.totalorder %s22, 1
      %s24 = scalar_select %p23, 0, %s22
      %s25 = sadd.s32 1, %s16
      %s26 = scalar_select %p23, %s25, %s16
      %p27 = scmp.ge.s32.totalorder %s26, 2
      %s28 = scalar_select %p27, 0, %s26
      %s29 = ssub.s32 %s16, %s28
      %s30 = ssub.s32 %s17, %s24
      %s31 = sor.u32 %s29, %s30
      %p32 = scmp.eq.s32.totalorder %s31, 0
      %s34 = sadd.s32 %s33, 1
      %s35 = scalar_select %p32, %s33, %s34
      %p38 = pneg %p32
      %p39 = scmp.eq.s32.totalorder %s9, 1
      %p40 = por %p38, %p39
      %p41 = scmp.ne.s32.totalorder %s33, %s36
      %p42 = scmp.eq.s32.totalorder %s9, 0
      %p43 = por %p41, %p42
      %p44 = scmp.ne.s32.totalorder %s33, %s36
      %p45 = scmp.eq.s32.totalorder %s14, 1
      %p46 = por %p44, %p45
      %p47 = scmp.ne.s32.totalorder %s36, %s37
      %p48 = scmp.eq.s32.totalorder %s14, 0
      %p49 = por %p47, %p48
      %p50 = scmp.ne.s32.totalorder %s36, %s37
      %p51 = scmp.eq.s32.totalorder %s15, 1
      %p52 = por %p50, %p51
      %p54 = scmp.ne.s32.totalorder %s37, %s53
      %p55 = scmp.eq.s32.totalorder %s15, 0
      %p56 = por %p54, %p55
      %s57 = sadd.s32 %s17, 1
      %s58 = sadd.s32 %s24, 1
      %s59 = ssub.s32 %s16, %s28
      %s60 = ssub.s32 %s57, %s58
      %s61 = sor.u32 %s59, %s60
      %p62 = scmp.eq.s32.totalorder %s61, 0
      %s64 = sadd.s32 %s63, 1
      %s65 = scalar_select %p62, %s63, %s64
      %p68 = pneg %p62
      %p69 = scmp.eq.s32.totalorder %s9, 1
      %p70 = por %p68, %p69
      %p71 = scmp.ne.s32.totalorder %s63, %s66
      %p72 = scmp.eq.s32.totalorder %s9, 0
      %p73 = por %p71, %p72
      %p74 = scmp.ne.s32.totalorder %s63, %s66
      %p75 = scmp.eq.s32.totalorder %s14, 1
      %p76 = por %p74, %p75
      %p77 = scmp.ne.s32.totalorder %s66, %s67
      %p78 = scmp.eq.s32.totalorder %s14, 0
      %p79 = por %p77, %p78
      %p80 = scmp.ne.s32.totalorder %s66, %s67
      %p81 = scmp.eq.s32.totalorder %s15, 1
      %p82 = por %p80, %p81
      %p84 = scmp.ne.s32.totalorder %s67, %s83
      %p85 = scmp.eq.s32.totalorder %s15, 0
      %p86 = por %p84, %p85
      %s87 = sadd.s32 %s17, 2
      %s88 = sadd.s32 %s24, 2
      %s89 = ssub.s32 %s16, %s28
      %s90 = ssub.s32 %s87, %s88
      %s91 = sor.u32 %s89, %s90
      %p92 = scmp.eq.s32.totalorder %s91, 0
      %s94 = sadd.s32 %s93, 1
      %s95 = scalar_select %p92, %s93, %s94
      %p98 = pneg %p92
      %p99 = scmp.eq.s32.totalorder %s9, 1
      %p100 = por %p98, %p99
      %p101 = scmp.ne.s32.totalorder %s93, %s96
      %p102 = scmp.eq.s32.totalorder %s9, 0
      %p103 = por %p101, %p102
      %p104 = scmp.ne.s32.totalorder %s93, %s96
      %p105 = scmp.eq.s32.totalorder %s14, 1
      %p106 = por %p104, %p105
      %p107 = scmp.ne.s32.totalorder %s96, %s97
      %p108 = scmp.eq.s32.totalorder %s14, 0
      %p109 = por %p107, %p108
      %p110 = scmp.ne.s32.totalorder %s96, %s97
      %p111 = scmp.eq.s32.totalorder %s15, 1
      %p112 = por %p110, %p111
      %p114 = scmp.ne.s32.totalorder %s97, %s113
      %p115 = scmp.eq.s32.totalorder %s15, 0
      %p116 = por %p114, %p115
      %s117 = ssub.s32 %s16, %s28
      %s118 = ssub.s32 %s17, %s24
      %s119 = sor.u32 %s117, %s118
      %p120 = scmp.eq.s32.totalorder %s119, 0
      %s122 = sadd.s32 %s121, 1
      %s123 = scalar_select %p120, %s121, %s122
      %p126 = pneg %p120
      %p127 = scmp.eq.s32.totalorder %s9, 1
      %p128 = por %p126, %p127
      %p129 = scmp.ne.s32.totalorder %s121, %s124
      %p130 = scmp.eq.s32.totalorder %s9, 0
      %p131 = por %p129, %p130
      %p132 = scmp.ne.s32.totalorder %s121, %s124
      %p133 = scmp.eq.s32.totalorder %s14, 1
      %p134 = por %p132, %p133
      %p135 = scmp.ne.s32.totalorder %s124, %s125
      %p136 = scmp.eq.s32.totalorder %s14, 0
      %p137 = por %p135, %p136
      %p138 = scmp.ne.s32.totalorder %s124, %s125
      %p139 = scmp.eq.s32.totalorder %s15, 1
      %p140 = por %p138, %p139
      %p142 = scmp.ne.s32.totalorder %s125, %s141
      %p143 = scmp.eq.s32.totalorder %s15, 0
      %p144 = por %p142, %p143
      %p145 = scmp.le.s32.totalorder 1, %s9
      %p146 = scmp.lt.s32.totalorder %s9, 3
      %p147 = pnand %p145, %p146
      %p148 = pneg %p147
      // Predicated region
      $region9: #{encoder_forward.15} parent=5 // pred_check
        _
      $region10: #{encoder_forward.15} parent=5 // pred_check_branch
        %150 = sbr.rel (%p147) target = $region12
      $region11: #{encoder_forward.15} parent=5 // pred_region
        %s151 = ssub.s32 %s9, 1
      $region12: #{encoder_forward.15} parent=5 // pred_fallthru
        _
      %p152 = scmp.lt.s32.totalorder %s9, 2
      // Predicated region
      $region13: #{encoder_forward.15} parent=5 // pred_check
        %p153 = pneg %p152
      $region14: #{encoder_forward.15} parent=5 // pred_check_branch
        %155 = sbr.rel (%p153) target = $region16
      $region15: #{encoder_forward.15} parent=5 // pred_region
        // Predicated region
        $region17: #{encoder_forward.15} parent=15 // pred_check
          %p156 = pneg %p43
        $region18: #{encoder_forward.15} parent=15 // pred_check_branch
          %158 = sbr.rel (%p156) target = $region20
        $region19: #{encoder_forward.15} parent=15 // pred_region
          %s159 = sand.u32 %s33, 1
          %s160 = sand.u32 %s33, 1
          %s161 = smul.addr %s160, 8
          %s162 = scalar_lea.vmem [#allocation2], %s161
          %s163 = smul.addr %s16, 6
          %s164 = sadd.s32 %s17, %s163
          %s165 = smul.addr %s164, 4
          %s166 = scalar_lea.vmem %s0, %s165
          // Predicated region
          $region21: #{encoder_forward.15} parent=19 // pred_check
            _
          $region22: #{encoder_forward.15} parent=19 // pred_check_branch
            %168 = sbr.rel (0) target = $region24
          $region23: #{encoder_forward.15} parent=19 // pred_region
            // Predicated region
            $region25: #{encoder_forward.15} parent=23 // pred_check
              _
            $region26: #{encoder_forward.15} parent=23 // pred_check_branch
              %170 = sbr.rel target = $region28
            $region27: #{encoder_forward.15} parent=23 // pred_region
              // Predicated region
              $region40: #{encoder_forward.15} parent=27 // pred_check
                _
              $region41: #{encoder_forward.15} parent=27 // pred_check_branch
                %188 = sbr.rel (0) target = $region43
              $region42: #{encoder_forward.15} parent=27 // pred_region
                loop: start=0, step=1, limit=1
                $region44: #{encoder_forward.15} parent=42 // loop_pre_header
                  _
                $region45: #{encoder_forward.15} parent=42 // loop_header
                  %s190 = sphi 0, %s194
                  %p191 = scmp.ge.s32.totalorder %s190, 1
                  %s195 = sphi %s166, %s166
                  %s196 = sphi %s162, %s162
                $region46: #{encoder_forward.15} parent=42 // loop_header_branch
                  %193 = sbr.rel (%p191) target = $region50
                $region47: #{encoder_forward.15} parent=42 // loop_body
                  _
                $region48: #{encoder_forward.15} parent=42 // loop_footer
                  %s194 = sadd.s32 1, %s190
                $region49: #{encoder_forward.15} parent=42 // loop_footer_branch
                  %189 = sbr.rel target = $region45
                $region50: #{encoder_forward.15} parent=42 // loop_exit
                  _
                %s198 = ssub.s32 16, 1
                loop: start=0, step=1, limit=1
                $region51: #{encoder_forward.15} parent=42 // loop_pre_header
                  _
                $region52: #{encoder_forward.15} parent=42 // loop_header
                  %s200 = sphi 0, %s204
                  %p201 = scmp.ge.s32.totalorder %s200, 1
                  %s205 = sphi %s166, %s166
                  %s206 = sphi %s162, %s162
                $region53: #{encoder_forward.15} parent=42 // loop_header_branch
                  %203 = sbr.rel (%p201) target = $region57
                $region54: #{encoder_forward.15} parent=42 // loop_body
                  %v207 = vld [vmem:[%s205] sm:%s198]
                  %208 = vst [vmem:[%s206] sm:%s198] %v207
                  %v209 = vld [vmem:[%s205 + $0xc] sm:%s198]
                  %210 = vst [vmem:[%s206 + $0x4] sm:%s198] %v209
                $region55: #{encoder_forward.15} parent=42 // loop_footer
                  %s204 = sadd.s32 1, %s200
                $region56: #{encoder_forward.15} parent=42 // loop_footer_branch
                  %199 = sbr.rel target = $region52
                $region57: #{encoder_forward.15} parent=42 // loop_exit
                  _
              $region43: #{encoder_forward.15} parent=27 // pred_fallthru
                _
            $region28: #{encoder_forward.15} parent=23 // pred_fallthru
              _
            // Predicated region
            $region29: #{encoder_forward.15} parent=23 // pred_check
              _
            $region30: #{encoder_forward.15} parent=23 // pred_check_branch
              %172 = sbr.rel (0) target = $region32
            $region31: #{encoder_forward.15} parent=23 // pred_region
              %s174 = ssub.s32 16, 1
              loop: start=0, step=1, limit=1
              $region33: #{encoder_forward.15} parent=31 // loop_pre_header
                _
              $region34: #{encoder_forward.15} parent=31 // loop_header
                %s176 = sphi 0, %s180
                %p177 = scmp.ge.s32.totalorder %s176, 1
                %s181 = sphi %s166, %s166
                %s182 = sphi %s162, %s162
              $region35: #{encoder_forward.15} parent=31 // loop_header_branch
                %179 = sbr.rel (%p177) target = $region39
              $region36: #{encoder_forward.15} parent=31 // loop_body
                %v183 = vld [vmem:[%s181] sm:%s174]
                %184 = vst [vmem:[%s182] sm:%s174] %v183
                %v185 = vld [vmem:[%s181 + $0xc] sm:%s174]
                %186 = vst [vmem:[%s182 + $0x4] sm:%s174] %v185
              $region37: #{encoder_forward.15} parent=31 // loop_footer
                %s180 = sadd.s32 1, %s176
              $region38: #{encoder_forward.15} parent=31 // loop_footer_branch
                %175 = sbr.rel target = $region34
              $region39: #{encoder_forward.15} parent=31 // loop_exit
                _
            $region32: #{encoder_forward.15} parent=23 // pred_fallthru
              _
          $region24: #{encoder_forward.15} parent=19 // pred_fallthru
            _
          %211 = vnop
        $region20: #{encoder_forward.15} parent=15 // pred_fallthru
          _
        // Predicated region
        $region58: #{encoder_forward.15} parent=15 // pred_check
          %p212 = pneg %p73
        $region59: #{encoder_forward.15} parent=15 // pred_check_branch
          %214 = sbr.rel (%p212) target = $region61
        $region60: #{encoder_forward.15} parent=15 // pred_region
          %s215 = sand.u32 %s63, 1
          %s216 = sand.u32 %s63, 1
          %s217 = smul.addr %s216, 8
          %s218 = scalar_lea.vmem [#allocation3], %s217
          %s219 = sadd.s32 %s17, 1
          %s220 = smul.addr %s16, 6
          %s221 = sadd.s32 %s219, %s220
          %s222 = smul.addr %s221, 4
          %s223 = scalar_lea.vmem %s1, %s222
          // Predicated region
          $region62: #{encoder_forward.15} parent=60 // pred_check
            _
          $region63: #{encoder_forward.15} parent=60 // pred_check_branch
            %225 = sbr.rel (0) target = $region65
          $region64: #{encoder_forward.15} parent=60 // pred_region
            // Predicated region
            $region66: #{encoder_forward.15} parent=64 // pred_check
              _
            $region67: #{encoder_forward.15} parent=64 // pred_check_branch
              %227 = sbr.rel target = $region69
            $region68: #{encoder_forward.15} parent=64 // pred_region
              // Predicated region
              $region81: #{encoder_forward.15} parent=68 // pred_check
                _
              $region82: #{encoder_forward.15} parent=68 // pred_check_branch
                %245 = sbr.rel (0) target = $region84
              $region83: #{encoder_forward.15} parent=68 // pred_region
                loop: start=0, step=1, limit=1
                $region85: #{encoder_forward.15} parent=83 // loop_pre_header
                  _
                $region86: #{encoder_forward.15} parent=83 // loop_header
                  %s247 = sphi 0, %s251
                  %p248 = scmp.ge.s32.totalorder %s247, 1
                  %s252 = sphi %s223, %s223
                  %s253 = sphi %s218, %s218
                $region87: #{encoder_forward.15} parent=83 // loop_header_branch
                  %250 = sbr.rel (%p248) target = $region91
                $region88: #{encoder_forward.15} parent=83 // loop_body
                  _
                $region89: #{encoder_forward.15} parent=83 // loop_footer
                  %s251 = sadd.s32 1, %s247
                $region90: #{encoder_forward.15} parent=83 // loop_footer_branch
                  %246 = sbr.rel target = $region86
                $region91: #{encoder_forward.15} parent=83 // loop_exit
                  _
                %s255 = ssub.s32 16, 1
                loop: start=0, step=1, limit=1
                $region92: #{encoder_forward.15} parent=83 // loop_pre_header
                  _
                $region93: #{encoder_forward.15} parent=83 // loop_header
                  %s257 = sphi 0, %s261
                  %p258 = scmp.ge.s32.totalorder %s257, 1
                  %s262 = sphi %s223, %s223
                  %s263 = sphi %s218, %s218
                $region94: #{encoder_forward.15} parent=83 // loop_header_branch
                  %260 = sbr.rel (%p258) target = $region98
                $region95: #{encoder_forward.15} parent=83 // loop_body
                  %v264 = vld [vmem:[%s262] sm:%s255]
                  %265 = vst [vmem:[%s263] sm:%s255] %v264
                  %v266 = vld [vmem:[%s262 + $0xc] sm:%s255]
                  %267 = vst [vmem:[%s263 + $0x4] sm:%s255] %v266
                $region96: #{encoder_forward.15} parent=83 // loop_footer
                  %s261 = sadd.s32 1, %s257
                $region97: #{encoder_forward.15} parent=83 // loop_footer_branch
                  %256 = sbr.rel target = $region93
                $region98: #{encoder_forward.15} parent=83 // loop_exit
                  _
              $region84: #{encoder_forward.15} parent=68 // pred_fallthru
                _
            $region69: #{encoder_forward.15} parent=64 // pred_fallthru
              _
            // Predicated region
            $region70: #{encoder_forward.15} parent=64 // pred_check
              _
            $region71: #{encoder_forward.15} parent=64 // pred_check_branch
              %229 = sbr.rel (0) target = $region73
            $region72: #{encoder_forward.15} parent=64 // pred_region
              %s231 = ssub.s32 16, 1
              loop: start=0, step=1, limit=1
              $region74: #{encoder_forward.15} parent=72 // loop_pre_header
                _
              $region75: #{encoder_forward.15} parent=72 // loop_header
                %s233 = sphi 0, %s237
                %p234 = scmp.ge.s32.totalorder %s233, 1
                %s238 = sphi %s223, %s223
                %s239 = sphi %s218, %s218
              $region76: #{encoder_forward.15} parent=72 // loop_header_branch
                %236 = sbr.rel (%p234) target = $region80
              $region77: #{encoder_forward.15} parent=72 // loop_body
                %v240 = vld [vmem:[%s238] sm:%s231]
                %241 = vst [vmem:[%s239] sm:%s231] %v240
                %v242 = vld [vmem:[%s238 + $0xc] sm:%s231]
                %243 = vst [vmem:[%s239 + $0x4] sm:%s231] %v242
              $region78: #{encoder_forward.15} parent=72 // loop_footer
                %s237 = sadd.s32 1, %s233
              $region79: #{encoder_forward.15} parent=72 // loop_footer_branch
                %232 = sbr.rel target = $region75
              $region80: #{encoder_forward.15} parent=72 // loop_exit
                _
            $region73: #{encoder_forward.15} parent=64 // pred_fallthru
              _
          $region65: #{encoder_forward.15} parent=60 // pred_fallthru
            _
          %268 = vnop
        $region61: #{encoder_forward.15} parent=15 // pred_fallthru
          _
        // Predicated region
        $region99: #{encoder_forward.15} parent=15 // pred_check
          %p269 = pneg %p103
        $region100: #{encoder_forward.15} parent=15 // pred_check_branch
          %271 = sbr.rel (%p269) target = $region102
        $region101: #{encoder_forward.15} parent=15 // pred_region
          %s272 = sand.u32 %s93, 1
          %s273 = sand.u32 %s93, 1
          %s274 = smul.addr %s273, 8
          %s275 = scalar_lea.vmem [#allocation4], %s274
          %s276 = sadd.s32 %s17, 2
          %s277 = smul.addr %s16, 6
          %s278 = sadd.s32 %s276, %s277
          %s279 = smul.addr %s278, 4
          %s280 = scalar_lea.vmem %s2, %s279
          // Predicated region
          $region103: #{encoder_forward.15} parent=101 // pred_check
            _
          $region104: #{encoder_forward.15} parent=101 // pred_check_branch
            %282 = sbr.rel (0) target = $region106
          $region105: #{encoder_forward.15} parent=101 // pred_region
            // Predicated region
            $region107: #{encoder_forward.15} parent=105 // pred_check
              _
            $region108: #{encoder_forward.15} parent=105 // pred_check_branch
              %284 = sbr.rel target = $region110
            $region109: #{encoder_forward.15} parent=105 // pred_region
              // Predicated region
              $region122: #{encoder_forward.15} parent=109 // pred_check
                _
              $region123: #{encoder_forward.15} parent=109 // pred_check_branch
                %302 = sbr.rel (0) target = $region125
              $region124: #{encoder_forward.15} parent=109 // pred_region
                loop: start=0, step=1, limit=1
                $region126: #{encoder_forward.15} parent=124 // loop_pre_header
                  _
                $region127: #{encoder_forward.15} parent=124 // loop_header
                  %s304 = sphi 0, %s308
                  %p305 = scmp.ge.s32.totalorder %s304, 1
                  %s309 = sphi %s280, %s280
                  %s310 = sphi %s275, %s275
                $region128: #{encoder_forward.15} parent=124 // loop_header_branch
                  %307 = sbr.rel (%p305) target = $region132
                $region129: #{encoder_forward.15} parent=124 // loop_body
                  _
                $region130: #{encoder_forward.15} parent=124 // loop_footer
                  %s308 = sadd.s32 1, %s304
                $region131: #{encoder_forward.15} parent=124 // loop_footer_branch
                  %303 = sbr.rel target = $region127
                $region132: #{encoder_forward.15} parent=124 // loop_exit
                  _
                %s312 = ssub.s32 16, 1
                loop: start=0, step=1, limit=1
                $region133: #{encoder_forward.15} parent=124 // loop_pre_header
                  _
                $region134: #{encoder_forward.15} parent=124 // loop_header
                  %s314 = sphi 0, %s318
                  %p315 = scmp.ge.s32.totalorder %s314, 1
                  %s319 = sphi %s280, %s280
                  %s320 = sphi %s275, %s275
                $region135: #{encoder_forward.15} parent=124 // loop_header_branch
                  %317 = sbr.rel (%p315) target = $region139
                $region136: #{encoder_forward.15} parent=124 // loop_body
                  %v321 = vld [vmem:[%s319] sm:%s312]
                  %322 = vst [vmem:[%s320] sm:%s312] %v321
                  %v323 = vld [vmem:[%s319 + $0xc] sm:%s312]
                  %324 = vst [vmem:[%s320 + $0x4] sm:%s312] %v323
                $region137: #{encoder_forward.15} parent=124 // loop_footer
                  %s318 = sadd.s32 1, %s314
                $region138: #{encoder_forward.15} parent=124 // loop_footer_branch
                  %313 = sbr.rel target = $region134
                $region139: #{encoder_forward.15} parent=124 // loop_exit
                  _
              $region125: #{encoder_forward.15} parent=109 // pred_fallthru
                _
            $region110: #{encoder_forward.15} parent=105 // pred_fallthru
              _
            // Predicated region
            $region111: #{encoder_forward.15} parent=105 // pred_check
              _
            $region112: #{encoder_forward.15} parent=105 // pred_check_branch
              %286 = sbr.rel (0) target = $region114
            $region113: #{encoder_forward.15} parent=105 // pred_region
              %s288 = ssub.s32 16, 1
              loop: start=0, step=1, limit=1
              $region115: #{encoder_forward.15} parent=113 // loop_pre_header
                _
              $region116: #{encoder_forward.15} parent=113 // loop_header
                %s290 = sphi 0, %s294
                %p291 = scmp.ge.s32.totalorder %s290, 1
                %s295 = sphi %s280, %s280
                %s296 = sphi %s275, %s275
              $region117: #{encoder_forward.15} parent=113 // loop_header_branch
                %293 = sbr.rel (%p291) target = $region121
              $region118: #{encoder_forward.15} parent=113 // loop_body
                %v297 = vld [vmem:[%s295] sm:%s288]
                %298 = vst [vmem:[%s296] sm:%s288] %v297
                %v299 = vld [vmem:[%s295 + $0xc] sm:%s288]
                %300 = vst [vmem:[%s296 + $0x4] sm:%s288] %v299
              $region119: #{encoder_forward.15} parent=113 // loop_footer
                %s294 = sadd.s32 1, %s290
              $region120: #{encoder_forward.15} parent=113 // loop_footer_branch
                %289 = sbr.rel target = $region116
              $region121: #{encoder_forward.15} parent=113 // loop_exit
                _
            $region114: #{encoder_forward.15} parent=105 // pred_fallthru
              _
          $region106: #{encoder_forward.15} parent=101 // pred_fallthru
            _
          %325 = vnop
        $region102: #{encoder_forward.15} parent=15 // pred_fallthru
          _
      $region16: #{encoder_forward.15} parent=5 // pred_fallthru
        _
      %p326 = scmp.le.s32.totalorder 1, %s9
      %p327 = scmp.lt.s32.totalorder %s9, 3
      %p328 = pnand %p326, %p327
      %p329 = pneg %p328
      // Predicated region
      $region140: #{encoder_forward.15} parent=5 // pred_check
        _
      $region141: #{encoder_forward.15} parent=5 // pred_check_branch
        %331 = sbr.rel (%p328) target = $region143
      $region142: #{encoder_forward.15} parent=5 // pred_region
        %s332 = ssub.s32 %s9, 1
        %s333 = sand.u32 %s36, 1
        %s334 = sand.u32 %s36, 1
        %s335 = smul.addr %s334, 8
        %s336 = scalar_lea.vmem [#allocation2], %s335
        // Predicated region
        $region144: #{encoder_forward.15} parent=142 // pred_check
          %p337 = pneg %p49
        $region145: #{encoder_forward.15} parent=142 // pred_check_branch
          %339 = sbr.rel (%p337) target = $region147
        $region146: #{encoder_forward.15} parent=142 // pred_region
          _
        $region147: #{encoder_forward.15} parent=142 // pred_fallthru
          _
        %s340 = sand.u32 %s66, 1
        %s341 = sand.u32 %s66, 1
        %s342 = smul.addr %s341, 8
        %s343 = scalar_lea.vmem [#allocation3], %s342
        // Predicated region
        $region148: #{encoder_forward.15} parent=142 // pred_check
          %p344 = pneg %p79
        $region149: #{encoder_forward.15} parent=142 // pred_check_branch
          %346 = sbr.rel (%p344) target = $region151
        $region150: #{encoder_forward.15} parent=142 // pred_region
          _
        $region151: #{encoder_forward.15} parent=142 // pred_fallthru
          _
        %s347 = sand.u32 %s96, 1
        %s348 = sand.u32 %s96, 1
        %s349 = smul.addr %s348, 8
        %s350 = scalar_lea.vmem [#allocation4], %s349
        // Predicated region
        $region152: #{encoder_forward.15} parent=142 // pred_check
          %p351 = pneg %p109
        $region153: #{encoder_forward.15} parent=142 // pred_check_branch
          %353 = sbr.rel (%p351) target = $region155
        $region154: #{encoder_forward.15} parent=142 // pred_region
          _
        $region155: #{encoder_forward.15} parent=142 // pred_fallthru
          _
        %s354 = sand.u32 %s36, 1
        %s355 = sand.u32 %s36, 1
        %s356 = smul.addr %s355, 8
        %s357 = scalar_lea.vmem [#allocation2], %s356
        %p358 = pneg %p49
        %p359 = pneg %p46
        %s360 = sand.u32 %s66, 1
        %s361 = sand.u32 %s66, 1
        %s362 = smul.addr %s361, 8
        %s363 = scalar_lea.vmem [#allocation3], %s362
        %p364 = pneg %p79
        %p365 = pneg %p76
        %s366 = sand.u32 %s96, 1
        %s367 = sand.u32 %s96, 1
        %s368 = smul.addr %s367, 8
        %s369 = scalar_lea.vmem [#allocation4], %s368
        %p370 = pneg %p109
        %p371 = pneg %p106
        %p372 = pneg %p137
        %p373 = pneg %p134
        %p374 = scmp.lt.s32.totalorder %s18, 1
        %s375 = scalar_select %p374, %s18, 1
        %p376 = scmp.lt.s32.totalorder %s19, 0
        %s377 = scalar_select %p376, %s19, 0
        %s378 = smul.addr %s375, 2
        %s379 = sadd.s32 %s377, %s378
        %s380 = smul.addr %s379, 4
        %s381 = scalar_lea.vmem %s3, %s380
        %s382 = sadd.s32 %s19, 1
        %s383 = sadd.s32 %s19, 2
        %p384 = scmp.lt.s32.totalorder %s18, 1
        %s385 = scalar_select %p384, %s18, 1
        %p386 = scmp.lt.s32.totalorder %s19, 0
        %s387 = scalar_select %p386, %s19, 0
        %s388 = smul.addr %s385, 2
        %s389 = sadd.s32 %s387, %s388
        %s390 = smul.addr %s389, 4
        %s391 = scalar_lea.vmem %s3, %s390
        %v393 = vlaneseq
        %v394 = vand.u32 %v393, 127
        %vm395 = vcmp.lt.s32.totalorder %v394, 4
        %v396 = vld [vmem:[%s336] sm:$0xf]
        %v397 = vld [vmem:[%s336 + $0x4] sm:$0xf]
        %v398 = vld [vmem:[%s343] sm:$0xf]
        %v399 = vld [vmem:[%s343 + $0x4] sm:$0xf]
        %v400 = vld [vmem:[%s350] sm:$0xf]
        %v401 = vld [vmem:[%s350 + $0x4] sm:$0xf]
        %v404 = vunpack.c.l.b16 %v396
        %v405 = vunpack.c.l.b16 %v397
        %v406 = vpack.c.b16 %v405, %v404
        %v409 = vunpack.c.l.b16 %v398
        %v410 = vunpack.c.l.b16 %v399
        %v411 = vpack.c.b16 %v410, %v409
        %vm412 = vcmask 523264
        %v414 = vsel %vm412, %v406, 0
        %v417 = vsel %vm412, %v411, 0
        %419 = vmatprep.subr.bf16.mxu0 0
        %420 = vmatpush1.bf16.xpose.msra.mxu0 0
        %421 = vmatprep.subr.bf16.mxu0 0
        %422 = vmatpush1.bf16.xpose.msra.mxu0 0
        %423 = vmatprep.subr.bf16.mxu0 0
        %424 = vmatpush1.bf16.xpose.msra.mxu0 0
        %425 = vmatprep.subr.bf16.mxu0 0
        %426 = vmatpush1.bf16.xpose.msra.mxu0 0
        %427 = vmatprep.subr.bf16.mxu0 0
        %428 = vmatpush1.bf16.xpose.msra.mxu0 0
        %429 = vmatprep.subr.bf16.mxu0 0
        %430 = vmatpush1.bf16.xpose.msra.mxu0 0
        %431 = vmatprep.subr.bf16.mxu0 0
        %432 = vmatpush1.bf16.xpose.msra.mxu0 0
        %433 = vmatprep.subr.bf16.mxu0 0
        %434 = vmatpush1.bf16.xpose.msra.mxu0 %v417
        %435 = vmatprep.subr.bf16.mxu0 0
        %436 = vmatpush2.bf16.xpose.msra.mxu0 0
        %437 = vmatprep.subr.bf16.mxu0 0
        %438 = vmatpush2.bf16.xpose.msra.mxu0 0
        %439 = vmatprep.subr.bf16.mxu0 0
        %440 = vmatpush2.bf16.xpose.msra.mxu0 0
        %441 = vmatprep.subr.bf16.mxu0 0
        %442 = vmatpush2.bf16.xpose.msra.mxu0 0
        %443 = vmatprep.subr.bf16.mxu0 0
        %444 = vmatpush2.bf16.xpose.msra.mxu0 0
        %445 = vmatprep.subr.bf16.mxu0 0
        %446 = vmatpush2.bf16.xpose.msra.mxu0 0
        %447 = vmatprep.subr.bf16.mxu0 0
        %448 = vmatpush2.bf16.xpose.msra.mxu0 0
        %449 = vmatprep.subr.bf16.mxu0 0
        %450 = vmatpush2.bf16.xpose.msra.mxu0 0
        %451 = vmatprep.mubr.bf16.mxu0 0
        %452 = vmatmul.mubr.bf16.gmra.mxu0 %v414
        %v453 = vpop.f32.mrf.mxu0
        %v454 = vadd.f32 0.0, %v453
        %v455 = vpop.f32.mrf.mxu0
        %v456 = vpop.f32.mrf.mxu0
        %v457 = vadd.f32 0.0, %v456
        %v458 = vpop.f32.mrf.mxu0
        %459 = vdwg.mxu0
        %v460 = vmul.f32 %v454, 0.125
        %v461 = vmul.f32 %v457, 0.125
        %v462 = vsel %vm395, %v460, -1e+30
        %v463 = vsel %vm395, %v461, -1e+30
        %vm464 = vcmask 130048
        %v465 = vsel %vm464, %v462, -inf
        %466 = vmax.xlane.f32.xlu0 %v465
        %v467 = vpop.xlane.xlu0 %466
        %v468 = vsel %vm464, %v463, -inf
        %469 = vmax.xlane.f32.xlu0 %v468
        %v470 = vpop.xlane.xlu0 %469
        %v471 = vsub.f32 %v462, %v467
        %v472 = vsub.f32 %v463, %v470
        %v473 = vmul.f32 %v471, 1.442695
        %v474 = vpow.pop %v473
        %v475 = vmul.f32 %v472, 1.442695
        %v476 = vpow.pop %v475
        %v477 = vsel %vm464, %v474, 0.0
        %478 = vadd.xlane.f32.xlu0 %v477
        %v479 = vpop.xlane.xlu0 %478
        %v480 = vsel %vm464, %v476, 0.0
        %481 = vadd.xlane.f32.xlu0 %v480
        %v482 = vpop.xlane.xlu0 %481
        %v483 = vrcp.pop %v479
        %v484 = vrcp.pop %v482
        %v485 = vpack.c.bf16 %v476, %v474
        %v488 = vunpack.c.l.b16 %v400
        %v489 = vunpack.c.l.b16 %v401
        %v490 = vpack.c.b16 %v489, %v488
        %v493 = vsel %vm464, %v485, 0
        %495 = vmatprep.subr.bf16.mxu0 0
        %496 = vmatpush1.bf16.msra.mxu0 0
        %497 = vmatprep.subr.bf16.mxu0 0
        %498 = vmatpush1.bf16.msra.mxu0 0
        %499 = vmatprep.subr.bf16.mxu0 0
        %500 = vmatpush1.bf16.msra.mxu0 0
        %501 = vmatprep.subr.bf16.mxu0 0
        %502 = vmatpush1.bf16.msra.mxu0 0
        %503 = vmatprep.subr.bf16.mxu0 0
        %504 = vmatpush1.bf16.msra.mxu0 0
        %505 = vmatprep.subr.bf16.mxu0 0
        %506 = vmatpush1.bf16.msra.mxu0 0
        %507 = vmatprep.subr.bf16.mxu0 0
        %508 = vmatpush1.bf16.msra.mxu0 0
        %509 = vmatprep.subr.bf16.mxu0 0
        %510 = vmatpush1.bf16.msra.mxu0 %v490
        %511 = vmatprep.subr.bf16.mxu0 0
        %512 = vmatpush2.bf16.msra.mxu0 0
        %513 = vmatprep.subr.bf16.mxu0 0
        %514 = vmatpush2.bf16.msra.mxu0 0
        %515 = vmatprep.subr.bf16.mxu0 0
        %516 = vmatpush2.bf16.msra.mxu0 0
        %517 = vmatprep.subr.bf16.mxu0 0
        %518 = vmatpush2.bf16.msra.mxu0 0
        %519 = vmatprep.subr.bf16.mxu0 0
        %520 = vmatpush2.bf16.msra.mxu0 0
        %521 = vmatprep.subr.bf16.mxu0 0
        %522 = vmatpush2.bf16.msra.mxu0 0
        %523 = vmatprep.subr.bf16.mxu0 0
        %524 = vmatpush2.bf16.msra.mxu0 0
        %525 = vmatprep.subr.bf16.mxu0 0
        %526 = vmatpush2.bf16.msra.mxu0 0
        %527 = vmatprep.mubr.bf16.mxu0 0
        %528 = vmatmul.mubr.bf16.gmra.mxu0 %v493
        %v529 = vpop.f32.mrf.mxu0
        %v530 = vadd.f32 0.0, %v529
        %v531 = vpop.f32.mrf.mxu0
        %v532 = vpop.f32.mrf.mxu0
        %v533 = vadd.f32 0.0, %v532
        %v534 = vpop.f32.mrf.mxu0
        %535 = vdwg.mxu0
        %v536 = vmul.f32 %v530, %v483
        %v537 = vmul.f32 %v533, %v484
        %v538 = vpack.c.bf16 %v537, %v536
        %v540 = vunpack.c.l.b16 %v538
        %v541 = vunpack.c.h.b16 %v538
        %v542 = vpack.c.b16 %v540, %v540
        %v543 = vpack.c.b16 %v541, %v541
        %vm546 = vcmask 519168
        %547 = vst.msk [vmem:[%s391] sm:$0xf] %vm546, %v542
        %548 = vst.msk [vmem:[%s391 + $0x4] sm:$0xf] %vm546, %v543
        %v549 = vld [vmem:[%s336] sm:$0xf]
        %v550 = vld [vmem:[%s336 + $0x4] sm:$0xf]
        %v551 = vld [vmem:[%s343] sm:$0xf]
        %v552 = vld [vmem:[%s343 + $0x4] sm:$0xf]
        %v553 = vld [vmem:[%s350] sm:$0xf]
        %v554 = vld [vmem:[%s350 + $0x4] sm:$0xf]
        %v557 = vunpack.c.l.b16 %v549
        %v558 = vunpack.c.l.b16 %v550
        %v559 = vpack.c.b16 %v558, %v557
        %560 = vrot.lane.b32.xlu0 %v559, 64
        %v561 = vpop.permute.xlu0 %560
        %v564 = vunpack.c.l.b16 %v551
        %v565 = vunpack.c.l.b16 %v552
        %v566 = vpack.c.b16 %v565, %v564
        %567 = vrot.lane.b32.xlu0 %v566, 64
        %v568 = vpop.permute.xlu0 %567
        %v570 = vsel %vm412, %v561, 0
        %v573 = vsel %vm412, %v568, 0
        %575 = vmatprep.subr.bf16.mxu0 0
        %576 = vmatpush1.bf16.xpose.msra.mxu0 0
        %577 = vmatprep.subr.bf16.mxu0 0
        %578 = vmatpush1.bf16.xpose.msra.mxu0 0
        %579 = vmatprep.subr.bf16.mxu0 0
        %580 = vmatpush1.bf16.xpose.msra.mxu0 0
        %581 = vmatprep.subr.bf16.mxu0 0
        %582 = vmatpush1.bf16.xpose.msra.mxu0 0
        %583 = vmatprep.subr.bf16.mxu0 0
        %584 = vmatpush1.bf16.xpose.msra.mxu0 0
        %585 = vmatprep.subr.bf16.mxu0 0
        %586 = vmatpush1.bf16.xpose.msra.mxu0 0
        %587 = vmatprep.subr.bf16.mxu0 0
        %588 = vmatpush1.bf16.xpose.msra.mxu0 0
        %589 = vmatprep.subr.bf16.mxu0 0
        %590 = vmatpush1.bf16.xpose.msra.mxu0 %v573
        %591 = vmatprep.subr.bf16.mxu0 0
        %592 = vmatpush2.bf16.xpose.msra.mxu0 0
        %593 = vmatprep.subr.bf16.mxu0 0
        %594 = vmatpush2.bf16.xpose.msra.mxu0 0
        %595 = vmatprep.subr.bf16.mxu0 0
        %596 = vmatpush2.bf16.xpose.msra.mxu0 0
        %597 = vmatprep.subr.bf16.mxu0 0
        %598 = vmatpush2.bf16.xpose.msra.mxu0 0
        %599 = vmatprep.subr.bf16.mxu0 0
        %600 = vmatpush2.bf16.xpose.msra.mxu0 0
        %601 = vmatprep.subr.bf16.mxu0 0
        %602 = vmatpush2.bf16.xpose.msra.mxu0 0
        %603 = vmatprep.subr.bf16.mxu0 0
        %604 = vmatpush2.bf16.xpose.msra.mxu0 0
        %605 = vmatprep.subr.bf16.mxu0 0
        %606 = vmatpush2.bf16.xpose.msra.mxu0 0
        %607 = vmatprep.mubr.bf16.mxu0 0
        %608 = vmatmul.mubr.bf16.gmra.mxu0 %v570
        %v609 = vpop.f32.mrf.mxu0
        %v610 = vadd.f32 0.0, %v609
        %v611 = vpop.f32.mrf.mxu0
        %v612 = vpop.f32.mrf.mxu0
        %v613 = vadd.f32 0.0, %v612
        %v614 = vpop.f32.mrf.mxu0
        %615 = vdwg.mxu0
        %v616 = vmul.f32 %v610, 0.125
        %v617 = vmul.f32 %v613, 0.125
        %v618 = vsel %vm395, %v616, -1e+30
        %v619 = vsel %vm395, %v617, -1e+30
        %v620 = vsel %vm464, %v618, -inf
        %621 = vmax.xlane.f32.xlu0 %v620
        %v622 = vpop.xlane.xlu0 %621
        %v623 = vsel %vm464, %v619, -inf
        %624 = vmax.xlane.f32.xlu0 %v623
        %v625 = vpop.xlane.xlu0 %624
        %v626 = vsub.f32 %v618, %v622
        %v627 = vsub.f32 %v619, %v625
        %v628 = vmul.f32 %v626, 1.442695
        %v629 = vpow.pop %v628
        %v630 = vmul.f32 %v627, 1.442695
        %v631 = vpow.pop %v630
        %v632 = vsel %vm464, %v629, 0.0
        %633 = vadd.xlane.f32.xlu0 %v632
        %v634 = vpop.xlane.xlu0 %633
        %v635 = vsel %vm464, %v631, 0.0
        %636 = vadd.xlane.f32.xlu0 %v635
        %v637 = vpop.xlane.xlu0 %636
        %v638 = vrcp.pop %v634
        %v639 = vrcp.pop %v637
        %v640 = vpack.c.bf16 %v631, %v629
        %v643 = vunpack.c.l.b16 %v553
        %v644 = vunpack.c.l.b16 %v554
        %v645 = vpack.c.b16 %v644, %v643
        %646 = vrot.lane.b32.xlu0 %v645, 64
        %v647 = vpop.permute.xlu0 %646
        %v650 = vsel %vm464, %v640, 0
        %652 = vmatprep.subr.bf16.mxu0 0
        %653 = vmatpush1.bf16.msra.mxu0 0
        %654 = vmatprep.subr.bf16.mxu0 0
        %655 = vmatpush1.bf16.msra.mxu0 0
        %656 = vmatprep.subr.bf16.mxu0 0
        %657 = vmatpush1.bf16.msra.mxu0 0
        %658 = vmatprep.subr.bf16.mxu0 0
        %659 = vmatpush1.bf16.msra.mxu0 0
        %660 = vmatprep.subr.bf16.mxu0 0
        %661 = vmatpush1.bf16.msra.mxu0 0
        %662 = vmatprep.subr.bf16.mxu0 0
        %663 = vmatpush1.bf16.msra.mxu0 0
        %664 = vmatprep.subr.bf16.mxu0 0
        %665 = vmatpush1.bf16.msra.mxu0 0
        %666 = vmatprep.subr.bf16.mxu0 0
        %667 = vmatpush1.bf16.msra.mxu0 %v647
        %668 = vmatprep.subr.bf16.mxu0 0
        %669 = vmatpush2.bf16.msra.mxu0 0
        %670 = vmatprep.subr.bf16.mxu0 0
        %671 = vmatpush2.bf16.msra.mxu0 0
        %672 = vmatprep.subr.bf16.mxu0 0
        %673 = vmatpush2.bf16.msra.mxu0 0
        %674 = vmatprep.subr.bf16.mxu0 0
        %675 = vmatpush2.bf16.msra.mxu0 0
        %676 = vmatprep.subr.bf16.mxu0 0
        %677 = vmatpush2.bf16.msra.mxu0 0
        %678 = vmatprep.subr.bf16.mxu0 0
        %679 = vmatpush2.bf16.msra.mxu0 0
        %680 = vmatprep.subr.bf16.mxu0 0
        %681 = vmatpush2.bf16.msra.mxu0 0
        %682 = vmatprep.subr.bf16.mxu0 0
        %683 = vmatpush2.bf16.msra.mxu0 0
        %684 = vmatprep.mubr.bf16.mxu0 0
        %685 = vmatmul.mubr.bf16.gmra.mxu0 %v650
        %v686 = vpop.f32.mrf.mxu0
        %v687 = vadd.f32 0.0, %v686
        %v688 = vpop.f32.mrf.mxu0
        %v689 = vpop.f32.mrf.mxu0
        %v690 = vadd.f32 0.0, %v689
        %v691 = vpop.f32.mrf.mxu0
        %692 = vdwg.mxu0
        %v693 = vmul.f32 %v687, %v638
        %v694 = vmul.f32 %v690, %v639
        %v695 = vpack.c.bf16 %v694, %v693
        %v697 = vunpack.c.l.b16 %v695
        %v698 = vunpack.c.h.b16 %v695
        %v699 = vpack.c.b16 %v697, %v697
        %v700 = vpack.c.b16 %v698, %v698
        %701 = vrot.lane.b32.xlu0 %v699, 64
        %v702 = vpop.permute.xlu0 %701
        %703 = vrot.lane.b32.xlu0 %v700, 64
        %v704 = vpop.permute.xlu0 %703
        %vm707 = vcmask 1043968
        %708 = vst.msk [vmem:[%s391] sm:$0xf] %vm707, %v702
        %709 = vst.msk [vmem:[%s391 + $0x4] sm:$0xf] %vm707, %v704
        %p710 = scmp.lt.s32.totalorder %s18, 1
        %s711 = scalar_select %p710, %s18, 1
        %p712 = scmp.lt.s32.totalorder %s19, 0
        %s713 = scalar_select %p712, %s19, 0
        %s714 = smul.addr %s711, 2
        %s715 = sadd.s32 %s713, %s714
        %s716 = smul.addr %s715, 4
        %s717 = scalar_lea.vmem %s3, %s716
        // Predicated region
        $region156: #{encoder_forward.15} parent=142 // pred_check
          %p718 = pneg %p134
        $region157: #{encoder_forward.15} parent=142 // pred_check_branch
          %720 = sbr.rel (%p718) target = $region159
        $region158: #{encoder_forward.15} parent=142 // pred_region
          _
        $region159: #{encoder_forward.15} parent=142 // pred_fallthru
          _
      $region143: #{encoder_forward.15} parent=5 // pred_fallthru
        _
      %p721 = scmp.le.s32.totalorder 2, %s9
      // Predicated region
      $region160: #{encoder_forward.15} parent=5 // pred_check
        %p722 = pneg %p721
      $region161: #{encoder_forward.15} parent=5 // pred_check_branch
        %724 = sbr.rel (%p722) target = $region163
      $region162: #{encoder_forward.15} parent=5 // pred_region
        %s725 = ssub.s32 %s9, 2
        // Predicated region
        $region164: #{encoder_forward.15} parent=162 // pred_check
          %p726 = pneg %p140
        $region165: #{encoder_forward.15} parent=162 // pred_check_branch
          %728 = sbr.rel (%p726) target = $region167
        $region166: #{encoder_forward.15} parent=162 // pred_region
          %p729 = scmp.lt.s32.totalorder %s20, 1
          %s730 = scalar_select %p729, %s20, 1
          %p731 = scmp.lt.s32.totalorder %s21, 0
          %s732 = scalar_select %p731, %s21, 0
          %s733 = smul.addr %s730, 2
          %s734 = sadd.s32 %s732, %s733
          %s735 = smul.addr %s734, 4
          %s736 = scalar_lea.vmem %s3, %s735
        $region167: #{encoder_forward.15} parent=162 // pred_fallthru
          _
      $region163: #{encoder_forward.15} parent=5 // pred_fallthru
        _
    $region6: #{encoder_forward.15} parent=1 // loop_footer
      %s13 = sadd.s32 1, %s9
    $region7: #{encoder_forward.15} parent=1 // loop_footer_branch
      %8 = sbr.rel target = $region3
    $region8: #{encoder_forward.15} parent=1 // loop_exit
      _

// kernel: encoder_forward.16
$region0: #{encoder_forward.16}
  #allocation0 [shape = 'u32[]', space=smem, size = 0x4, offset = 0x4, fixed_abs, tag = 'smem constant byte address 0x4 - core index']
  #allocation1 [shape = 'u32[144,128]{1,0:T(1,128)}', space=vmem, size = 0x12000, scoped, tag = 'internal scratch']
  %s0 = inlined_call_operand.vmem [shape: bf16[32,128], index: 0, kind: input, shape index: {}]
  %s1 = inlined_call_operand.vmem [shape: bf16[128,128], index: 1, kind: input, shape index: {}]
  %s2 = inlined_call_operand.vmem [shape: f32[1,128], index: 2, kind: input, shape index: {}]
  %s3 = inlined_call_operand.vmem [shape: bf16[32,128], index: 3, kind: input, shape index: {}]
  %s4 = inlined_call_operand.vmem [shape: bf16[32,128], index: 4, kind: output, shape index: {}]
  %s5 = sld [smem:[#allocation0]]
  $region26: #{encoder_forward.16} parent=0
    _
  %s7 = ssub.s32 1, %s5
  %s8 = scalar_select 0, %s7, %s5
  // Predicated region
  $region2: #{encoder_forward.16} parent=0 // pred_check
    _
  $region3: #{encoder_forward.16} parent=0 // pred_check_branch
    %10 = sbr.rel (0) target = $region5
  $region4: #{encoder_forward.16} parent=0 // pred_region
    _
  $region5: #{encoder_forward.16} parent=0 // pred_fallthru
    _
  // Predicated region
  $region6: #{encoder_forward.16} parent=0 // pred_check
    _
  $region7: #{encoder_forward.16} parent=0 // pred_check_branch
    %12 = sbr.rel (0) target = $region9
  $region8: #{encoder_forward.16} parent=0 // pred_region
    _
  $region9: #{encoder_forward.16} parent=0 // pred_fallthru
    _
  // Predicated region
  $region10: #{encoder_forward.16} parent=0 // pred_check
    _
  $region11: #{encoder_forward.16} parent=0 // pred_check_branch
    %14 = sbr.rel (0) target = $region13
  $region12: #{encoder_forward.16} parent=0 // pred_region
    _
  $region13: #{encoder_forward.16} parent=0 // pred_fallthru
    _
  // Predicated region
  $region14: #{encoder_forward.16} parent=0 // pred_check
    _
  $region15: #{encoder_forward.16} parent=0 // pred_check_branch
    %16 = sbr.rel (0) target = $region17
  $region16: #{encoder_forward.16} parent=0 // pred_region
    _
  $region17: #{encoder_forward.16} parent=0 // pred_fallthru
    _
  %v18 = vld [vmem:[%s0] sm:$0xf]
  %v19 = vld [vmem:[%s0 + $0x4] sm:$0xf]
  %v20 = vld [vmem:[%s0 + $0x8] sm:$0xf]
  %v21 = vld [vmem:[%s0 + $0xc] sm:$0xf]
  %v22 = vld [vmem:[%s1] sm:$0xf]
  %v23 = vld [vmem:[%s1 + $0x4] sm:$0xf]
  %v24 = vld [vmem:[%s1 + $0x8] sm:$0xf]
  %v25 = vld [vmem:[%s1 + $0xc] sm:$0xf]
  %v26 = vld [vmem:[%s1 + $0x10] sm:$0xf]
  %v27 = vld [vmem:[%s1 + $0x14] sm:$0xf]
  %v28 = vld [vmem:[%s1 + $0x18] sm:$0xf]
  %v29 = vld [vmem:[%s1 + $0x1c] sm:$0xf]
  %v30 = vld [vmem:[%s1 + $0x20] sm:$0xf]
  %v31 = vld [vmem:[%s1 + $0x24] sm:$0xf]
  %v32 = vld [vmem:[%s1 + $0x28] sm:$0xf]
  %v33 = vld [vmem:[%s1 + $0x2c] sm:$0xf]
  %v34 = vld [vmem:[%s1 + $0x30] sm:$0xf]
  %v35 = vld [vmem:[%s1 + $0x34] sm:$0xf]
  %v36 = vld [vmem:[%s1 + $0x38] sm:$0xf]
  %v37 = vld [vmem:[%s1 + $0x3c] sm:$0xf]
  %v38 = vld [vmem:[%s2] sm:$0x1]
  %v40 = vlaneseq
  %v41 = vshrl.u32 %v40, 7
  %v42 = vsub.s32 0, %v41
  %v43 = vrot.slane %v38, %v42
  %v49 = vunpack.c.l.b16 %v18
  %v50 = vunpack.c.l.b16 %v19
  %v51 = vunpack.c.l.b16 %v20
  %v52 = vunpack.c.l.b16 %v21
  %v53 = vpack.c.b16 %v50, %v49
  %v54 = vpack.c.b16 %v52, %v51
  %v73 = vunpack.c.l.b16 %v22
  %v74 = vunpack.c.l.b16 %v23
  %v75 = vunpack.c.l.b16 %v24
  %v76 = vunpack.c.l.b16 %v25
  %v77 = vunpack.c.l.b16 %v26
  %v78 = vunpack.c.l.b16 %v27
  %v79 = vunpack.c.l.b16 %v28
  %v80 = vunpack.c.l.b16 %v29
  %v81 = vunpack.c.l.b16 %v30
  %v82 = vunpack.c.l.b16 %v31
  %v83 = vunpack.c.l.b16 %v32
  %v84 = vunpack.c.l.b16 %v33
  %v85 = vunpack.c.l.b16 %v34
  %v86 = vunpack.c.l.b16 %v35
  %v87 = vunpack.c.l.b16 %v36
  %v88 = vunpack.c.l.b16 %v37
  %v89 = vpack.c.b16 %v74, %v73
  %v90 = vpack.c.b16 %v76, %v75
  %v91 = vpack.c.b16 %v78, %v77
  %v92 = vpack.c.b16 %v80, %v79
  %v93 = vpack.c.b16 %v82, %v81
  %v94 = vpack.c.b16 %v84, %v83
  %v95 = vpack.c.b16 %v86, %v85
  %v96 = vpack.c.b16 %v88, %v87
  %105 = vmatprep.subr.bf16.mxu0 0
  %106 = vmatpush1.bf16.msra.mxu0 %v96
  %107 = vmatprep.subr.bf16.mxu0 0
  %108 = vmatpush1.bf16.msra.mxu0 %v95
  %109 = vmatprep.subr.bf16.mxu0 0
  %110 = vmatpush1.bf16.msra.mxu0 %v94
  %111 = vmatprep.subr.bf16.mxu0 0
  %112 = vmatpush1.bf16.msra.mxu0 %v93
  %113 = vmatprep.subr.bf16.mxu0 0
  %114 = vmatpush1.bf16.msra.mxu0 %v92
  %115 = vmatprep.subr.bf16.mxu0 0
  %116 = vmatpush1.bf16.msra.mxu0 %v91
  %117 = vmatprep.subr.bf16.mxu0 0
  %118 = vmatpush1.bf16.msra.mxu0 %v90
  %119 = vmatprep.subr.bf16.mxu0 0
  %120 = vmatpush1.bf16.msra.mxu0 %v89
  %121 = vmatprep.subr.bf16.mxu0 0
  %122 = vmatpush2.bf16.msra.mxu0 0
  %123 = vmatprep.subr.bf16.mxu0 0
  %124 = vmatpush2.bf16.msra.mxu0 0
  %125 = vmatprep.subr.bf16.mxu0 0
  %126 = vmatpush2.bf16.msra.mxu0 0
  %127 = vmatprep.subr.bf16.mxu0 0
  %128 = vmatpush2.bf16.msra.mxu0 0
  %129 = vmatprep.subr.bf16.mxu0 0
  %130 = vmatpush2.bf16.msra.mxu0 0
  %131 = vmatprep.subr.bf16.mxu0 0
  %132 = vmatpush2.bf16.msra.mxu0 0
  %133 = vmatprep.subr.bf16.mxu0 0
  %134 = vmatpush2.bf16.msra.mxu0 0
  %135 = vmatprep.subr.bf16.mxu0 0
  %136 = vmatpush2.bf16.msra.mxu0 0
  %137 = vmatprep.mubr.bf16.mxu0 0
  %138 = vmatmul.mubr.bf16.gmra.mxu0 %v53
  %v139 = vpop.f32.mrf.mxu0
  %v140 = vadd.f32 %v43, %v139
  %v141 = vpop.f32.mrf.mxu0
  %v142 = vpop.f32.mrf.mxu0
  %v143 = vadd.f32 %v43, %v142
  %v144 = vpop.f32.mrf.mxu0
  %145 = vmatprep.mubr.bf16.mxu0 0
  %146 = vmatmul.mubr.bf16.gmra.mxu0 %v54
  %v147 = vpop.f32.mrf.mxu0
  %v148 = vadd.f32 %v43, %v147
  %v149 = vpop.f32.mrf.mxu0
  %v150 = vpop.f32.mrf.mxu0
  %v151 = vadd.f32 %v43, %v150
  %v152 = vpop.f32.mrf.mxu0
  %153 = vdwg.mxu0
  %v154 = vld [vmem:[%s3] sm:$0xf]
  %v155 = vld [vmem:[%s3 + $0x4] sm:$0xf]
  %v156 = vld [vmem:[%s3 + $0x8] sm:$0xf]
  %v157 = vld [vmem:[%s3 + $0xc] sm:$0xf]
  %v158 = vunpack.c.l.bf16 %v154
  %v159 = vunpack.c.l.bf16 %v155
  %v160 = vunpack.c.l.bf16 %v156
  %v161 = vunpack.c.l.bf16 %v157
  %v162 = vadd.f32 %v140, %v158
  %v163 = vadd.f32 %v143, %v159
  %v164 = vadd.f32 %v148, %v160
  %v165 = vadd.f32 %v151, %v161
  %v166 = vpack.c.bf16 %v163, %v162
  %v167 = vpack.c.bf16 %v165, %v164
  %v170 = vunpack.c.l.b16 %v166
  %v171 = vunpack.c.h.b16 %v166
  %v172 = vunpack.c.l.b16 %v167
  %v173 = vunpack.c.h.b16 %v167
  %v174 = vpack.c.b16 %v170, %v170
  %v175 = vpack.c.b16 %v171, %v171
  %v176 = vpack.c.b16 %v172, %v172
  %v177 = vpack.c.b16 %v173, %v173
  %182 = vst [vmem:[%s4] sm:$0xf] %v174
  %183 = vst [vmem:[%s4 + $0x4] sm:$0xf] %v175
  %184 = vst [vmem:[%s4 + $0x8] sm:$0xf] %v176
  %185 = vst [vmem:[%s4 + $0xc] sm:$0xf] %v177
  // Predicated region
  $region18: #{encoder_forward.16} parent=0 // pred_check
    _
  $region19: #{encoder_forward.16} parent=0 // pred_check_branch
    %187 = sbr.rel (0) target = $region21
  $region20: #{encoder_forward.16} parent=0 // pred_region
    _
  $region21: #{encoder_forward.16} parent=0 // pred_fallthru
    _
  // Predicated region
  $region22: #{encoder_forward.16} parent=0 // pred_check
    _
  $region23: #{encoder_forward.16} parent=0 // pred_check_branch
    %189 = sbr.rel (0) target = $region25
  $region24: #{encoder_forward.16} parent=0 // pred_region
    _
  $region25: #{encoder_forward.16} parent=0 // pred_fallthru
    _

// kernel: encoder_forward.14
$region0: #{encoder_forward.14}
  #allocation0 [shape = 'u32[]', space=smem, size = 0x4, offset = 0x4, fixed_abs, tag = 'smem constant byte address 0x4 - core index']
  #allocation1 [shape = 'u32[144,128]{1,0:T(1,128)}', space=vmem, size = 0x12000, scoped, tag = 'internal scratch']
  %s0 = inlined_call_operand.vmem [shape: bf16[32,128], index: 0, kind: input, shape index: {}]
  %s1 = inlined_call_operand.vmem [shape: f32[1,128], index: 1, kind: input, shape index: {}]
  %s2 = inlined_call_operand.vmem [shape: f32[1,128], index: 2, kind: input, shape index: {}]
  %s3 = inlined_call_operand.vmem [shape: bf16[128,384], index: 3, kind: input, shape index: {}]
  %s4 = inlined_call_operand.vmem [shape: f32[1,384], index: 4, kind: input, shape index: {}]
  %s5 = inlined_call_operand.vmem [shape: bf16[32,384], index: 5, kind: output, shape index: {}]
  %s6 = sld [smem:[#allocation0]]
  $region30: #{encoder_forward.14} parent=0
    _
  %s8 = ssub.s32 1, %s6
  %s9 = scalar_select 0, %s8, %s6
  // Predicated region
  $region2: #{encoder_forward.14} parent=0 // pred_check
    _
  $region3: #{encoder_forward.14} parent=0 // pred_check_branch
    %11 = sbr.rel (0) target = $region5
  $region4: #{encoder_forward.14} parent=0 // pred_region
    _
  $region5: #{encoder_forward.14} parent=0 // pred_fallthru
    _
  // Predicated region
  $region6: #{encoder_forward.14} parent=0 // pred_check
    _
  $region7: #{encoder_forward.14} parent=0 // pred_check_branch
    %13 = sbr.rel (0) target = $region9
  $region8: #{encoder_forward.14} parent=0 // pred_region
    _
  $region9: #{encoder_forward.14} parent=0 // pred_fallthru
    _
  // Predicated region
  $region10: #{encoder_forward.14} parent=0 // pred_check
    _
  $region11: #{encoder_forward.14} parent=0 // pred_check_branch
    %15 = sbr.rel (0) target = $region13
  $region12: #{encoder_forward.14} parent=0 // pred_region
    _
  $region13: #{encoder_forward.14} parent=0 // pred_fallthru
    _
  // Predicated region
  $region14: #{encoder_forward.14} parent=0 // pred_check
    _
  $region15: #{encoder_forward.14} parent=0 // pred_check_branch
    %17 = sbr.rel (0) target = $region17
  $region16: #{encoder_forward.14} parent=0 // pred_region
    _
  $region17: #{encoder_forward.14} parent=0 // pred_fallthru
    _
  // Predicated region
  $region18: #{encoder_forward.14} parent=0 // pred_check
    _
  $region19: #{encoder_forward.14} parent=0 // pred_check_branch
    %19 = sbr.rel (0) target = $region21
  $region20: #{encoder_forward.14} parent=0 // pred_region
    _
  $region21: #{encoder_forward.14} parent=0 // pred_fallthru
    _
  %v21 = vld [vmem:[%s0] sm:$0xf]
  %v22 = vld [vmem:[%s0 + $0x4] sm:$0xf]
  %v23 = vld [vmem:[%s0 + $0x8] sm:$0xf]
  %v24 = vld [vmem:[%s0 + $0xc] sm:$0xf]
  %v25 = vunpack.c.l.bf16 %v21
  %v26 = vunpack.c.l.bf16 %v22
  %v27 = vunpack.c.l.bf16 %v23
  %v28 = vunpack.c.l.bf16 %v24
  %29 = vadd.xlane.f32.xlu0 %v25
  %v30 = vpop.xlane.xlu0 %29
  %31 = vadd.xlane.f32.xlu0 %v26
  %v32 = vpop.xlane.xlu0 %31
  %33 = vadd.xlane.f32.xlu0 %v27
  %v34 = vpop.xlane.xlu0 %33
  %35 = vadd.xlane.f32.xlu0 %v28
  %v36 = vpop.xlane.xlu0 %35
  %v37 = vrcp.pop 128.0
  %v38 = vmul.f32 %v30, %v37
  %v39 = vmul.f32 %v32, %v37
  %v40 = vmul.f32 %v34, %v37
  %v41 = vmul.f32 %v36, %v37
  %v42 = vsub.f32 %v25, %v38
  %v43 = vsub.f32 %v26, %v39
  %v44 = vsub.f32 %v27, %v40
  %v45 = vsub.f32 %v28, %v41
  %v46 = vmul.f32 %v42, %v42
  %v47 = vmul.f32 %v43, %v43
  %v48 = vmul.f32 %v44, %v44
  %v49 = vmul.f32 %v45, %v45
  %50 = vadd.xlane.f32.xlu0 %v46
  %v51 = vpop.xlane.xlu0 %50
  %52 = vadd.xlane.f32.xlu0 %v47
  %v53 = vpop.xlane.xlu0 %52
  %54 = vadd.xlane.f32.xlu0 %v48
  %v55 = vpop.xlane.xlu0 %54
  %56 = vadd.xlane.f32.xlu0 %v49
  %v57 = vpop.xlane.xlu0 %56
  %v58 = vmul.f32 %v51, %v37
  %v59 = vmul.f32 %v53, %v37
  %v60 = vmul.f32 %v55, %v37
  %v61 = vmul.f32 %v57, %v37
  %v62 = vadd.f32 %v58, 1e-05
  %v63 = vadd.f32 %v59, 1e-05
  %v64 = vadd.f32 %v60, 1e-05
  %v65 = vadd.f32 %v61, 1e-05
  %v66 = vrsqrt.pop %v62
  %v67 = vrsqrt.pop %v63
  %v68 = vrsqrt.pop %v64
  %v69 = vrsqrt.pop %v65
  %v70 = vmul.f32 %v42, %v66
  %v71 = vmul.f32 %v43, %v67
  %v72 = vmul.f32 %v44, %v68
  %v73 = vmul.f32 %v45, %v69
  %v74 = vld [vmem:[%s1] sm:$0x1]
  %v76 = vlaneseq
  %v77 = vshrl.u32 %v76, 7
  %v78 = vsub.s32 0, %v77
  %v79 = vrot.slane %v74, %v78
  %v81 = vmul.f32 %v70, %v79
  %v82 = vmul.f32 %v71, %v79
  %v83 = vmul.f32 %v72, %v79
  %v84 = vmul.f32 %v73, %v79
  %v85 = vld [vmem:[%s2] sm:$0x1]
  %v87 = vlaneseq
  %v88 = vshrl.u32 %v87, 7
  %v89 = vsub.s32 0, %v88
  %v90 = vrot.slane %v85, %v89
  %v92 = vadd.f32 %v81, %v90
  %v93 = vadd.f32 %v82, %v90
  %v94 = vadd.f32 %v83, %v90
  %v95 = vadd.f32 %v84, %v90
  %v96 = vpack.c.bf16 %v93, %v92
  %v97 = vpack.c.bf16 %v95, %v94
  %v98 = vld [vmem:[%s3] sm:$0xff]
  %v99 = vld [vmem:[%s3 + $0x8] sm:$0xf]
  %v100 = vld [vmem:[%s3 + $0xc] sm:$0xff]
  %v101 = vld [vmem:[%s3 + $0x14] sm:$0xf]
  %v102 = vld [vmem:[%s3 + $0x18] sm:$0xff]
  %v103 = vld [vmem:[%s3 + $0x20] sm:$0xf]
  %v104 = vld [vmem:[%s3 + $0x24] sm:$0xff]
  %v105 = vld [vmem:[%s3 + $0x2c] sm:$0xf]
  %v106 = vld [vmem:[%s3 + $0x30] sm:$0xff]
  %v107 = vld [vmem:[%s3 + $0x38] sm:$0xf]
  %v108 = vld [vmem:[%s3 + $0x3c] sm:$0xff]
  %v109 = vld [vmem:[%s3 + $0x44] sm:$0xf]
  %v110 = vld [vmem:[%s3 + $0x48] sm:$0xff]
  %v111 = vld [vmem:[%s3 + $0x50] sm:$0xf]
  %v112 = vld [vmem:[%s3 + $0x54] sm:$0xff]
  %v113 = vld [vmem:[%s3 + $0x5c] sm:$0xf]
  %v114 = vld [vmem:[%s3 + $0x60] sm:$0xff]
  %v115 = vld [vmem:[%s3 + $0x68] sm:$0xf]
  %v116 = vld [vmem:[%s3 + $0x6c] sm:$0xff]
  %v117 = vld [vmem:[%s3 + $0x74] sm:$0xf]
  %v118 = vld [vmem:[%s3 + $0x78] sm:$0xff]
  %v119 = vld [vmem:[%s3 + $0x80] sm:$0xf]
  %v120 = vld [vmem:[%s3 + $0x84] sm:$0xff]
  %v121 = vld [vmem:[%s3 + $0x8c] sm:$0xf]
  %v122 = vld [vmem:[%s3 + $0x90] sm:$0xff]
  %v123 = vld [vmem:[%s3 + $0x98] sm:$0xf]
  %v124 = vld [vmem:[%s3 + $0x9c] sm:$0xff]
  %v125 = vld [vmem:[%s3 + $0xa4] sm:$0xf]
  %v126 = vld [vmem:[%s3 + $0xa8] sm:$0xff]
  %v127 = vld [vmem:[%s3 + $0xb0] sm:$0xf]
  %v128 = vld [vmem:[%s3 + $0xb4] sm:$0xff]
  %v129 = vld [vmem:[%s3 + $0xbc] sm:$0xf]
  %v130 = vld [vmem:[%s4] sm:$0x7]
  %v132 = vlaneseq
  %v133 = vshrl.u32 %v132, 7
  %v134 = vsub.s32 0, %v133
  %v135 = vrot.slane %v130, %v134
  %v136 = vlaneseq
  %v137 = vshrl.u32 %v136, 7
  %v138 = vsub.s32 1, %v137
  %v139 = vrot.slane %v130, %v138
  %v140 = vlaneseq
  %v141 = vshrl.u32 %v140, 7
  %v142 = vsub.s32 2, %v141
  %v143 = vrot.slane %v130, %v142
  %v179 = vunpack.c.l.b16 %v98
  %v180 = vunpack.c.h.b16 %v98
  %v181 = vunpack.c.l.b16 %v99
  %v182 = vunpack.c.l.b16 %v100
  %v183 = vunpack.c.h.b16 %v100
  %v184 = vunpack.c.l.b16 %v101
  %v185 = vunpack.c.l.b16 %v102
  %v186 = vunpack.c.h.b16 %v102
  %v187 = vunpack.c.l.b16 %v103
  %v188 = vunpack.c.l.b16 %v104
  %v189 = vunpack.c.h.b16 %v104
  %v190 = vunpack.c.l.b16 %v105
  %v191 = vunpack.c.l.b16 %v106
  %v192 = vunpack.c.h.b16 %v106
  %v193 = vunpack.c.l.b16 %v107
  %v194 = vunpack.c.l.b16 %v108
  %v195 = vunpack.c.h.b16 %v108
  %v196 = vunpack.c.l.b16 %v109
  %v197 = vunpack.c.l.b16 %v110
  %v198 = vunpack.c.h.b16 %v110
  %v199 = vunpack.c.l.b16 %v111
  %v200 = vunpack.c.l.b16 %v112
  %v201 = vunpack.c.h.b16 %v112
  %v202 = vunpack.c.l.b16 %v113
  %v203 = vunpack.c.l.b16 %v114
  %v204 = vunpack.c.h.b16 %v114
  %v205 = vunpack.c.l.b16 %v115
  %v206 = vunpack.c.l.b16 %v116
  %v207 = vunpack.c.h.b16 %v116
  %v208 = vunpack.c.l.b16 %v117
  %v209 = vunpack.c.l.b16 %v118
  %v210 = vunpack.c.h.b16 %v118
  %v211 = vunpack.c.l.b16 %v119
  %v212 = vunpack.c.l.b16 %v120
  %v213 = vunpack.c.h.b16 %v120
  %v214 = vunpack.c.l.b16 %v121
  %v215 = vunpack.c.l.b16 %v122
  %v216 = vunpack.c.h.b16 %v122
  %v217 = vunpack.c.l.b16 %v123
  %v218 = vunpack.c.l.b16 %v124
  %v219 = vunpack.c.h.b16 %v124
  %v220 = vunpack.c.l.b16 %v125
  %v221 = vunpack.c.l.b16 %v126
  %v222 = vunpack.c.h.b16 %v126
  %v223 = vunpack.c.l.b16 %v127
  %v224 = vunpack.c.l.b16 %v128
  %v225 = vunpack.c.h.b16 %v128
  %v226 = vunpack.c.l.b16 %v129
  %v227 = vpack.c.b16 %v182, %v179
  %v228 = vpack.c.b16 %v183, %v180
  %v229 = vpack.c.b16 %v184, %v181
  %v230 = vpack.c.b16 %v188, %v185
  %v231 = vpack.c.b16 %v189, %v186
  %v232 = vpack.c.b16 %v190, %v187
  %v233 = vpack.c.b16 %v194, %v191
  %v234 = vpack.c.b16 %v195, %v192
  %v235 = vpack.c.b16 %v196, %v193
  %v236 = vpack.c.b16 %v200, %v197
  %v237 = vpack.c.b16 %v201, %v198
  %v238 = vpack.c.b16 %v202, %v199
  %v239 = vpack.c.b16 %v206, %v203
  %v240 = vpack.c.b16 %v207, %v204
  %v241 = vpack.c.b16 %v208, %v205
  %v242 = vpack.c.b16 %v212, %v209
  %v243 = vpack.c.b16 %v213, %v210
  %v244 = vpack.c.b16 %v214, %v211
  %v245 = vpack.c.b16 %v218, %v215
  %v246 = vpack.c.b16 %v219, %v216
  %v247 = vpack.c.b16 %v220, %v217
  %v248 = vpack.c.b16 %v224, %v221
  %v249 = vpack.c.b16 %v225, %v222
  %v250 = vpack.c.b16 %v226, %v223
  %275 = vmatprep.subr.bf16.mxu0 %v249
  %276 = vmatpush1.bf16.msra.mxu0 %v248
  %277 = vmatprep.subr.bf16.mxu0 %v246
  %278 = vmatpush1.bf16.msra.mxu0 %v245
  %279 = vmatprep.subr.bf16.mxu0 %v243
  %280 = vmatpush1.bf16.msra.mxu0 %v242
  %281 = vmatprep.subr.bf16.mxu0 %v240
  %282 = vmatpush1.bf16.msra.mxu0 %v239
  %283 = vmatprep.subr.bf16.mxu0 %v237
  %284 = vmatpush1.bf16.msra.mxu0 %v236
  %285 = vmatprep.subr.bf16.mxu0 %v234
  %286 = vmatpush1.bf16.msra.mxu0 %v233
  %287 = vmatprep.subr.bf16.mxu0 %v231
  %288 = vmatpush1.bf16.msra.mxu0 %v230
  %289 = vmatprep.subr.bf16.mxu0 %v228
  %290 = vmatpush1.bf16.msra.mxu0 %v227
  %291 = vmatprep.subr.bf16.mxu0 0
  %292 = vmatpush2.bf16.msra.mxu0 0
  %293 = vmatprep.subr.bf16.mxu0 0
  %294 = vmatpush2.bf16.msra.mxu0 0
  %295 = vmatprep.subr.bf16.mxu0 0
  %296 = vmatpush2.bf16.msra.mxu0 0
  %297 = vmatprep.subr.bf16.mxu0 0
  %298 = vmatpush2.bf16.msra.mxu0 0
  %299 = vmatprep.subr.bf16.mxu0 0
  %300 = vmatpush2.bf16.msra.mxu0 0
  %301 = vmatprep.subr.bf16.mxu0 0
  %302 = vmatpush2.bf16.msra.mxu0 0
  %303 = vmatprep.subr.bf16.mxu0 0
  %304 = vmatpush2.bf16.msra.mxu0 0
  %305 = vmatprep.subr.bf16.mxu0 0
  %306 = vmatpush2.bf16.msra.mxu0 0
  %307 = vmatprep.mubr.bf16.mxu0 0
  %308 = vmatmul.mubr.bf16.gmra.mxu0 %v96
  %v309 = vpop.f32.mrf.mxu0
  %v310 = vadd.f32 %v135, %v309
  %v311 = vpop.f32.mrf.mxu0
  %v312 = vadd.f32 %v139, %v311
  %v313 = vpop.f32.mrf.mxu0
  %v314 = vadd.f32 %v135, %v313
  %v315 = vpop.f32.mrf.mxu0
  %v316 = vadd.f32 %v139, %v315
  %317 = vmatprep.mubr.bf16.mxu0 0
  %318 = vmatmul.mubr.bf16.gmra.mxu0 %v97
  %v319 = vpop.f32.mrf.mxu0
  %v320 = vadd.f32 %v135, %v319
  %v321 = vpop.f32.mrf.mxu0
  %v322 = vadd.f32 %v139, %v321
  %v323 = vpop.f32.mrf.mxu0
  %v324 = vadd.f32 %v135, %v323
  %v325 = vpop.f32.mrf.mxu0
  %v326 = vadd.f32 %v139, %v325
  %327 = vdwg.mxu0
  %328 = vmatprep.subr.bf16.mxu0 0
  %329 = vmatpush1.bf16.msra.mxu0 %v250
  %330 = vmatprep.subr.bf16.mxu0 0
  %331 = vmatpush1.bf16.msra.mxu0 %v247
  %332 = vmatprep.subr.bf16.mxu0 0
  %333 = vmatpush1.bf16.msra.mxu0 %v244
  %334 = vmatprep.subr.bf16.mxu0 0
  %335 = vmatpush1.bf16.msra.mxu0 %v241
  %336 = vmatprep.subr.bf16.mxu0 0
  %337 = vmatpush1.bf16.msra.mxu0 %v238
  %338 = vmatprep.subr.bf16.mxu0 0
  %339 = vmatpush1.bf16.msra.mxu0 %v235
  %340 = vmatprep.subr.bf16.mxu0 0
  %341 = vmatpush1.bf16.msra.mxu0 %v232
  %342 = vmatprep.subr.bf16.mxu0 0
  %343 = vmatpush1.bf16.msra.mxu0 %v229
  %344 = vmatprep.subr.bf16.mxu0 0
  %345 = vmatpush2.bf16.msra.mxu0 0
  %346 = vmatprep.subr.bf16.mxu0 0
  %347 = vmatpush2.bf16.msra.mxu0 0
  %348 = vmatprep.subr.bf16.mxu0 0
  %349 = vmatpush2.bf16.msra.mxu0 0
  %350 = vmatprep.subr.bf16.mxu0 0
  %351 = vmatpush2.bf16.msra.mxu0 0
  %352 = vmatprep.subr.bf16.mxu0 0
  %353 = vmatpush2.bf16.msra.mxu0 0
  %354 = vmatprep.subr.bf16.mxu0 0
  %355 = vmatpush2.bf16.msra.mxu0 0
  %356 = vmatprep.subr.bf16.mxu0 0
  %357 = vmatpush2.bf16.msra.mxu0 0
  %358 = vmatprep.subr.bf16.mxu0 0
  %359 = vmatpush2.bf16.msra.mxu0 0
  %360 = vmatprep.mubr.bf16.mxu0 0
  %361 = vmatmul.mubr.bf16.gmra.mxu0 %v96
  %v362 = vpop.f32.mrf.mxu0
  %v363 = vadd.f32 %v143, %v362
  %v364 = vpop.f32.mrf.mxu0
  %v365 = vpop.f32.mrf.mxu0
  %v366 = vadd.f32 %v143, %v365
  %v367 = vpop.f32.mrf.mxu0
  %368 = vmatprep.mubr.bf16.mxu0 0
  %369 = vmatmul.mubr.bf16.gmra.mxu0 %v97
  %v370 = vpop.f32.mrf.mxu0
  %v371 = vadd.f32 %v143, %v370
  %v372 = vpop.f32.mrf.mxu0
  %v373 = vpop.f32.mrf.mxu0
  %v374 = vadd.f32 %v143, %v373
  %v375 = vpop.f32.mrf.mxu0
  %376 = vdwg.mxu0
  %v377 = vpack.c.bf16 %v314, %v310
  %v378 = vpack.c.bf16 %v316, %v312
  %v379 = vpack.c.bf16 %v366, %v363
  %v380 = vpack.c.bf16 %v324, %v320
  %v381 = vpack.c.bf16 %v326, %v322
  %v382 = vpack.c.bf16 %v374, %v371
  %v389 = vunpack.c.l.b16 %v377
  %v390 = vunpack.c.l.b16 %v378
  %v391 = vunpack.c.l.b16 %v379
  %v392 = vunpack.c.h.b16 %v377
  %v393 = vunpack.c.h.b16 %v378
  %v394 = vunpack.c.h.b16 %v379
  %v395 = vunpack.c.l.b16 %v380
  %v396 = vunpack.c.l.b16 %v381
  %v397 = vunpack.c.l.b16 %v382
  %v398 = vunpack.c.h.b16 %v380
  %v399 = vunpack.c.h.b16 %v381
  %v400 = vunpack.c.h.b16 %v382
  %v401 = vpack.c.b16 %v390, %v389
  %v402 = vpack.c.b16 %v391, %v391
  %v403 = vpack.c.b16 %v393, %v392
  %v404 = vpack.c.b16 %v394, %v394
  %v405 = vpack.c.b16 %v396, %v395
  %v406 = vpack.c.b16 %v397, %v397
  %v407 = vpack.c.b16 %v399, %v398
  %v408 = vpack.c.b16 %v400, %v400
  %417 = vst [vmem:[%s5] sm:$0xff] %v401
  %418 = vst [vmem:[%s5 + $0x8] sm:$0xf] %v402
  %419 = vst [vmem:[%s5 + $0xc] sm:$0xff] %v403
  %420 = vst [vmem:[%s5 + $0x14] sm:$0xf] %v404
  %421 = vst [vmem:[%s5 + $0x18] sm:$0xff] %v405
  %422 = vst [vmem:[%s5 + $0x20] sm:$0xf] %v406
  %423 = vst [vmem:[%s5 + $0x24] sm:$0xff] %v407
  %424 = vst [vmem:[%s5 + $0x2c] sm:$0xf] %v408
  // Predicated region
  $region22: #{encoder_forward.14} parent=0 // pred_check
    _
  $region23: #{encoder_forward.14} parent=0 // pred_check_branch
    %426 = sbr.rel (0) target = $region25
  $region24: #{encoder_forward.14} parent=0 // pred_region
    _
  $region25: #{encoder_forward.14} parent=0 // pred_fallthru
    _
  // Predicated region
  $region26: #{encoder_forward.14} parent=0 // pred_check
    _
  $region27: #{encoder_forward.14} parent=0 // pred_check_branch
    %428 = sbr.rel (0) target = $region29
  $region28: #{encoder_forward.14} parent=0 // pred_region
    _
  $region29: #{encoder_forward.14} parent=0 // pred_fallthru
    _

// kernel: encoder_forward.13
$region0: #{encoder_forward.13}
  #allocation0 [shape = 'u32[]', space=smem, size = 0x4, offset = 0x4, fixed_abs, tag = 'smem constant byte address 0x4 - core index']
  #allocation1 [shape = 'u32[144,128]{1,0:T(1,128)}', space=vmem, size = 0x12000, scoped, tag = 'internal scratch']
  %s0 = inlined_call_operand.vmem [shape: bf16[32,192], index: 0, kind: input, shape index: {}]
  %s1 = inlined_call_operand.vmem [shape: bf16[192,128], index: 1, kind: input, shape index: {}]
  %s2 = inlined_call_operand.vmem [shape: f32[1,128], index: 2, kind: input, shape index: {}]
  %s3 = inlined_call_operand.vmem [shape: f32[1,128], index: 3, kind: input, shape index: {}]
  %s4 = inlined_call_operand.vmem [shape: bf16[32,128], index: 4, kind: output, shape index: {}]
  %s5 = sld [smem:[#allocation0]]
  $region26: #{encoder_forward.13} parent=0
    _
  %s7 = ssub.s32 1, %s5
  %s8 = scalar_select 0, %s7, %s5
  // Predicated region
  $region2: #{encoder_forward.13} parent=0 // pred_check
    _
  $region3: #{encoder_forward.13} parent=0 // pred_check_branch
    %10 = sbr.rel (0) target = $region5
  $region4: #{encoder_forward.13} parent=0 // pred_region
    _
  $region5: #{encoder_forward.13} parent=0 // pred_fallthru
    _
  // Predicated region
  $region6: #{encoder_forward.13} parent=0 // pred_check
    _
  $region7: #{encoder_forward.13} parent=0 // pred_check_branch
    %12 = sbr.rel (0) target = $region9
  $region8: #{encoder_forward.13} parent=0 // pred_region
    _
  $region9: #{encoder_forward.13} parent=0 // pred_fallthru
    _
  // Predicated region
  $region10: #{encoder_forward.13} parent=0 // pred_check
    _
  $region11: #{encoder_forward.13} parent=0 // pred_check_branch
    %14 = sbr.rel (0) target = $region13
  $region12: #{encoder_forward.13} parent=0 // pred_region
    _
  $region13: #{encoder_forward.13} parent=0 // pred_fallthru
    _
  // Predicated region
  $region14: #{encoder_forward.13} parent=0 // pred_check
    _
  $region15: #{encoder_forward.13} parent=0 // pred_check_branch
    %16 = sbr.rel (0) target = $region17
  $region16: #{encoder_forward.13} parent=0 // pred_region
    _
  $region17: #{encoder_forward.13} parent=0 // pred_fallthru
    _
  %v18 = vld [vmem:[%s0] sm:$0xff]
  %v19 = vld [vmem:[%s0 + $0x8] sm:$0xff]
  %v20 = vld [vmem:[%s0 + $0x10] sm:$0xff]
  %v21 = vld [vmem:[%s0 + $0x18] sm:$0xff]
  %v22 = vld [vmem:[%s1] sm:$0xf]
  %v23 = vld [vmem:[%s1 + $0x4] sm:$0xf]
  %v24 = vld [vmem:[%s1 + $0x8] sm:$0xf]
  %v25 = vld [vmem:[%s1 + $0xc] sm:$0xf]
  %v26 = vld [vmem:[%s1 + $0x10] sm:$0xf]
  %v27 = vld [vmem:[%s1 + $0x14] sm:$0xf]
  %v28 = vld [vmem:[%s1 + $0x18] sm:$0xf]
  %v29 = vld [vmem:[%s1 + $0x1c] sm:$0xf]
  %v30 = vld [vmem:[%s1 + $0x20] sm:$0xf]
  %v31 = vld [vmem:[%s1 + $0x24] sm:$0xf]
  %v32 = vld [vmem:[%s1 + $0x28] sm:$0xf]
  %v33 = vld [vmem:[%s1 + $0x2c] sm:$0xf]
  %v34 = vld [vmem:[%s1 + $0x30] sm:$0xf]
  %v35 = vld [vmem:[%s1 + $0x34] sm:$0xf]
  %v36 = vld [vmem:[%s1 + $0x38] sm:$0xf]
  %v37 = vld [vmem:[%s1 + $0x3c] sm:$0xf]
  %v38 = vld [vmem:[%s1 + $0x40] sm:$0xf]
  %v39 = vld [vmem:[%s1 + $0x44] sm:$0xf]
  %v40 = vld [vmem:[%s1 + $0x48] sm:$0xf]
  %v41 = vld [vmem:[%s1 + $0x4c] sm:$0xf]
  %v42 = vld [vmem:[%s1 + $0x50] sm:$0xf]
  %v43 = vld [vmem:[%s1 + $0x54] sm:$0xf]
  %v44 = vld [vmem:[%s1 + $0x58] sm:$0xf]
  %v45 = vld [vmem:[%s1 + $0x5c] sm:$0xf]
  %v50 = vunpack.c.l.b16 %v18
  %v51 = vunpack.c.h.b16 %v18
  %v52 = vunpack.c.l.b16 %v19
  %v53 = vunpack.c.h.b16 %v19
  %v54 = vunpack.c.l.b16 %v20
  %v55 = vunpack.c.h.b16 %v20
  %v56 = vunpack.c.l.b16 %v21
  %v57 = vunpack.c.h.b16 %v21
  %v58 = vpack.c.b16 %v52, %v50
  %v59 = vpack.c.b16 %v53, %v51
  %v60 = vpack.c.b16 %v56, %v54
  %v61 = vpack.c.b16 %v57, %v55
  %v88 = vunpack.c.l.b16 %v22
  %v89 = vunpack.c.l.b16 %v23
  %v90 = vunpack.c.l.b16 %v24
  %v91 = vunpack.c.l.b16 %v25
  %v92 = vunpack.c.l.b16 %v26
  %v93 = vunpack.c.l.b16 %v27
  %v94 = vunpack.c.l.b16 %v28
  %v95 = vunpack.c.l.b16 %v29
  %v96 = vunpack.c.l.b16 %v30
  %v97 = vunpack.c.l.b16 %v31
  %v98 = vunpack.c.l.b16 %v32
  %v99 = vunpack.c.l.b16 %v33
  %v100 = vunpack.c.l.b16 %v34
  %v101 = vunpack.c.l.b16 %v35
  %v102 = vunpack.c.l.b16 %v36
  %v103 = vunpack.c.l.b16 %v37
  %v104 = vunpack.c.l.b16 %v38
  %v105 = vunpack.c.l.b16 %v39
  %v106 = vunpack.c.l.b16 %v40
  %v107 = vunpack.c.l.b16 %v41
  %v108 = vunpack.c.l.b16 %v42
  %v109 = vunpack.c.l.b16 %v43
  %v110 = vunpack.c.l.b16 %v44
  %v111 = vunpack.c.l.b16 %v45
  %v112 = vpack.c.b16 %v89, %v88
  %v113 = vpack.c.b16 %v91, %v90
  %v114 = vpack.c.b16 %v93, %v92
  %v115 = vpack.c.b16 %v95, %v94
  %v116 = vpack.c.b16 %v97, %v96
  %v117 = vpack.c.b16 %v99, %v98
  %v118 = vpack.c.b16 %v101, %v100
  %v119 = vpack.c.b16 %v103, %v102
  %v120 = vpack.c.b16 %v105, %v104
  %v121 = vpack.c.b16 %v107, %v106
  %v122 = vpack.c.b16 %v109, %v108
  %v123 = vpack.c.b16 %v111, %v110
  %vm136 = vcmask 523264
  %v138 = vsel %vm136, %v59, 0
  %v141 = vsel %vm136, %v61, 0
  %143 = vmatprep.subr.bf16.mxu0 0
  %144 = vmatpush1.bf16.msra.mxu0 %v119
  %145 = vmatprep.subr.bf16.mxu0 0
  %146 = vmatpush1.bf16.msra.mxu0 %v118
  %147 = vmatprep.subr.bf16.mxu0 0
  %148 = vmatpush1.bf16.msra.mxu0 %v117
  %149 = vmatprep.subr.bf16.mxu0 0
  %150 = vmatpush1.bf16.msra.mxu0 %v116
  %151 = vmatprep.subr.bf16.mxu0 0
  %152 = vmatpush1.bf16.msra.mxu0 %v115
  %153 = vmatprep.subr.bf16.mxu0 0
  %154 = vmatpush1.bf16.msra.mxu0 %v114
  %155 = vmatprep.subr.bf16.mxu0 0
  %156 = vmatpush1.bf16.msra.mxu0 %v113
  %157 = vmatprep.subr.bf16.mxu0 0
  %158 = vmatpush1.bf16.msra.mxu0 %v112
  %159 = vmatprep.subr.bf16.mxu0 0
  %160 = vmatpush2.bf16.msra.mxu0 0
  %161 = vmatprep.subr.bf16.mxu0 0
  %162 = vmatpush2.bf16.msra.mxu0 0
  %163 = vmatprep.subr.bf16.mxu0 0
  %164 = vmatpush2.bf16.msra.mxu0 0
  %165 = vmatprep.subr.bf16.mxu0 0
  %166 = vmatpush2.bf16.msra.mxu0 0
  %167 = vmatprep.subr.bf16.mxu0 0
  %168 = vmatpush2.bf16.msra.mxu0 %v123
  %169 = vmatprep.subr.bf16.mxu0 0
  %170 = vmatpush2.bf16.msra.mxu0 %v122
  %171 = vmatprep.subr.bf16.mxu0 0
  %172 = vmatpush2.bf16.msra.mxu0 %v121
  %173 = vmatprep.subr.bf16.mxu0 0
  %174 = vmatpush2.bf16.msra.mxu0 %v120
  %175 = vmatprep.mubr.bf16.mxu0 %v138
  %176 = vmatmul.mubr.bf16.gmra.mxu0 %v58
  %v177 = vpop.f32.mrf.mxu0
  %v178 = vadd.f32 0.0, %v177
  %v179 = vpop.f32.mrf.mxu0
  %v180 = vpop.f32.mrf.mxu0
  %v181 = vadd.f32 0.0, %v180
  %v182 = vpop.f32.mrf.mxu0
  %183 = vmatprep.mubr.bf16.mxu0 %v141
  %184 = vmatmul.mubr.bf16.gmra.mxu0 %v60
  %v185 = vpop.f32.mrf.mxu0
  %v186 = vadd.f32 0.0, %v185
  %v187 = vpop.f32.mrf.mxu0
  %v188 = vpop.f32.mrf.mxu0
  %v189 = vadd.f32 0.0, %v188
  %v190 = vpop.f32.mrf.mxu0
  %191 = vdwg.mxu0
  %192 = vadd.xlane.f32.xlu0 %v178
  %v193 = vpop.xlane.xlu0 %192
  %194 = vadd.xlane.f32.xlu0 %v181
  %v195 = vpop.xlane.xlu0 %194
  %196 = vadd.xlane.f32.xlu0 %v186
  %v197 = vpop.xlane.xlu0 %196
  %198 = vadd.xlane.f32.xlu0 %v189
  %v199 = vpop.xlane.xlu0 %198
  %v200 = vrcp.pop 128.0
  %v201 = vmul.f32 %v193, %v200
  %v202 = vmul.f32 %v195, %v200
  %v203 = vmul.f32 %v197, %v200
  %v204 = vmul.f32 %v199, %v200
  %v205 = vsub.f32 %v178, %v201
  %v206 = vsub.f32 %v181, %v202
  %v207 = vsub.f32 %v186, %v203
  %v208 = vsub.f32 %v189, %v204
  %v209 = vmul.f32 %v205, %v205
  %v210 = vmul.f32 %v206, %v206
  %v211 = vmul.f32 %v207, %v207
  %v212 = vmul.f32 %v208, %v208
  %213 = vadd.xlane.f32.xlu0 %v209
  %v214 = vpop.xlane.xlu0 %213
  %215 = vadd.xlane.f32.xlu0 %v210
  %v216 = vpop.xlane.xlu0 %215
  %217 = vadd.xlane.f32.xlu0 %v211
  %v218 = vpop.xlane.xlu0 %217
  %219 = vadd.xlane.f32.xlu0 %v212
  %v220 = vpop.xlane.xlu0 %219
  %v221 = vmul.f32 %v214, %v200
  %v222 = vmul.f32 %v216, %v200
  %v223 = vmul.f32 %v218, %v200
  %v224 = vmul.f32 %v220, %v200
  %v225 = vadd.f32 %v221, 1e-05
  %v226 = vadd.f32 %v222, 1e-05
  %v227 = vadd.f32 %v223, 1e-05
  %v228 = vadd.f32 %v224, 1e-05
  %v229 = vrsqrt.pop %v225
  %v230 = vrsqrt.pop %v226
  %v231 = vrsqrt.pop %v227
  %v232 = vrsqrt.pop %v228
  %v233 = vmul.f32 %v205, %v229
  %v234 = vmul.f32 %v206, %v230
  %v235 = vmul.f32 %v207, %v231
  %v236 = vmul.f32 %v208, %v232
  %v237 = vld [vmem:[%s2] sm:$0x1]
  %v239 = vlaneseq
  %v240 = vshrl.u32 %v239, 7
  %v241 = vsub.s32 0, %v240
  %v242 = vrot.slane %v237, %v241
  %v244 = vmul.f32 %v233, %v242
  %v245 = vmul.f32 %v234, %v242
  %v246 = vmul.f32 %v235, %v242
  %v247 = vmul.f32 %v236, %v242
  %v248 = vld [vmem:[%s3] sm:$0x1]
  %v250 = vlaneseq
  %v251 = vshrl.u32 %v250, 7
  %v252 = vsub.s32 0, %v251
  %v253 = vrot.slane %v248, %v252
  %v255 = vadd.f32 %v244, %v253
  %v256 = vadd.f32 %v245, %v253
  %v257 = vadd.f32 %v246, %v253
  %v258 = vadd.f32 %v247, %v253
  %v259 = vpack.c.bf16 %v256, %v255
  %v260 = vpack.c.bf16 %v258, %v257
  %v263 = vunpack.c.l.b16 %v259
  %v264 = vunpack.c.h.b16 %v259
  %v265 = vunpack.c.l.b16 %v260
  %v266 = vunpack.c.h.b16 %v260
  %v267 = vpack.c.b16 %v263, %v263
  %v268 = vpack.c.b16 %v264, %v264
  %v269 = vpack.c.b16 %v265, %v265
  %v270 = vpack.c.b16 %v266, %v266
  %275 = vst [vmem:[%s4] sm:$0xf] %v267
  %276 = vst [vmem:[%s4 + $0x4] sm:$0xf] %v268
  %277 = vst [vmem:[%s4 + $0x8] sm:$0xf] %v269
  %278 = vst [vmem:[%s4 + $0xc] sm:$0xf] %v270
  // Predicated region
  $region18: #{encoder_forward.13} parent=0 // pred_check
    _
  $region19: #{encoder_forward.13} parent=0 // pred_check_branch
    %280 = sbr.rel (0) target = $region21
  $region20: #{encoder_forward.13} parent=0 // pred_region
    _
  $region21: #{encoder_forward.13} parent=0 // pred_fallthru
    _
  // Predicated region
  $region22: #{encoder_forward.13} parent=0 // pred_check
    _
  $region23: #{encoder_forward.13} parent=0 // pred_check_branch
    %282 = sbr.rel (0) target = $region25
  $region24: #{encoder_forward.13} parent=0 // pred_region
    _
  $region25: #{encoder_forward.13} parent=0 // pred_fallthru
    _

// kernel: encoder_forward.25
$region0: #{encoder_forward.25}
  #allocation0 [shape = 'u32[]', space=smem, size = 0x4, offset = 0x4, fixed_abs, tag = 'smem constant byte address 0x4 - core index']
  #allocation1 [shape = 'u32[144,128]{1,0:T(1,128)}', space=vmem, size = 0x12000, scoped, tag = 'internal scratch']
  %s0 = inlined_call_operand.vmem [shape: bf16[32,128], index: 0, kind: input, shape index: {}]
  %s1 = inlined_call_operand.vmem [shape: bf16[128,128], index: 1, kind: input, shape index: {}]
  %s2 = inlined_call_operand.vmem [shape: f32[1,128], index: 2, kind: input, shape index: {}]
  %s3 = inlined_call_operand.vmem [shape: f32[32,128], index: 3, kind: output, shape index: {}]
  %s4 = sld [smem:[#allocation0]]
  $region22: #{encoder_forward.25} parent=0
    _
  %s6 = ssub.s32 1, %s4
  %s7 = scalar_select 0, %s6, %s4
  // Predicated region
  $region2: #{encoder_forward.25} parent=0 // pred_check
    _
  $region3: #{encoder_forward.25} parent=0 // pred_check_branch
    %9 = sbr.rel (0) target = $region5
  $region4: #{encoder_forward.25} parent=0 // pred_region
    _
  $region5: #{encoder_forward.25} parent=0 // pred_fallthru
    _
  // Predicated region
  $region6: #{encoder_forward.25} parent=0 // pred_check
    _
  $region7: #{encoder_forward.25} parent=0 // pred_check_branch
    %11 = sbr.rel (0) target = $region9
  $region8: #{encoder_forward.25} parent=0 // pred_region
    _
  $region9: #{encoder_forward.25} parent=0 // pred_fallthru
    _
  // Predicated region
  $region10: #{encoder_forward.25} parent=0 // pred_check
    _
  $region11: #{encoder_forward.25} parent=0 // pred_check_branch
    %13 = sbr.rel (0) target = $region13
  $region12: #{encoder_forward.25} parent=0 // pred_region
    _
  $region13: #{encoder_forward.25} parent=0 // pred_fallthru
    _
  %v15 = vld [vmem:[%s0] sm:$0xf]
  %v16 = vld [vmem:[%s0 + $0x4] sm:$0xf]
  %v17 = vld [vmem:[%s0 + $0x8] sm:$0xf]
  %v18 = vld [vmem:[%s0 + $0xc] sm:$0xf]
  %v19 = vld [vmem:[%s1] sm:$0xf]
  %v20 = vld [vmem:[%s1 + $0x4] sm:$0xf]
  %v21 = vld [vmem:[%s1 + $0x8] sm:$0xf]
  %v22 = vld [vmem:[%s1 + $0xc] sm:$0xf]
  %v23 = vld [vmem:[%s1 + $0x10] sm:$0xf]
  %v24 = vld [vmem:[%s1 + $0x14] sm:$0xf]
  %v25 = vld [vmem:[%s1 + $0x18] sm:$0xf]
  %v26 = vld [vmem:[%s1 + $0x1c] sm:$0xf]
  %v27 = vld [vmem:[%s1 + $0x20] sm:$0xf]
  %v28 = vld [vmem:[%s1 + $0x24] sm:$0xf]
  %v29 = vld [vmem:[%s1 + $0x28] sm:$0xf]
  %v30 = vld [vmem:[%s1 + $0x2c] sm:$0xf]
  %v31 = vld [vmem:[%s1 + $0x30] sm:$0xf]
  %v32 = vld [vmem:[%s1 + $0x34] sm:$0xf]
  %v33 = vld [vmem:[%s1 + $0x38] sm:$0xf]
  %v34 = vld [vmem:[%s1 + $0x3c] sm:$0xf]
  %v35 = vld [vmem:[%s2] sm:$0x1]
  %v37 = vlaneseq
  %v38 = vshrl.u32 %v37, 7
  %v39 = vsub.s32 0, %v38
  %v40 = vrot.slane %v35, %v39
  %v46 = vunpack.c.l.b16 %v15
  %v47 = vunpack.c.l.b16 %v16
  %v48 = vunpack.c.l.b16 %v17
  %v49 = vunpack.c.l.b16 %v18
  %v50 = vpack.c.b16 %v47, %v46
  %v51 = vpack.c.b16 %v49, %v48
  %v70 = vunpack.c.l.b16 %v19
  %v71 = vunpack.c.l.b16 %v20
  %v72 = vunpack.c.l.b16 %v21
  %v73 = vunpack.c.l.b16 %v22
  %v74 = vunpack.c.l.b16 %v23
  %v75 = vunpack.c.l.b16 %v24
  %v76 = vunpack.c.l.b16 %v25
  %v77 = vunpack.c.l.b16 %v26
  %v78 = vunpack.c.l.b16 %v27
  %v79 = vunpack.c.l.b16 %v28
  %v80 = vunpack.c.l.b16 %v29
  %v81 = vunpack.c.l.b16 %v30
  %v82 = vunpack.c.l.b16 %v31
  %v83 = vunpack.c.l.b16 %v32
  %v84 = vunpack.c.l.b16 %v33
  %v85 = vunpack.c.l.b16 %v34
  %v86 = vpack.c.b16 %v71, %v70
  %v87 = vpack.c.b16 %v73, %v72
  %v88 = vpack.c.b16 %v75, %v74
  %v89 = vpack.c.b16 %v77, %v76
  %v90 = vpack.c.b16 %v79, %v78
  %v91 = vpack.c.b16 %v81, %v80
  %v92 = vpack.c.b16 %v83, %v82
  %v93 = vpack.c.b16 %v85, %v84
  %102 = vmatprep.subr.bf16.mxu0 0
  %103 = vmatpush1.bf16.msra.mxu0 %v93
  %104 = vmatprep.subr.bf16.mxu0 0
  %105 = vmatpush1.bf16.msra.mxu0 %v92
  %106 = vmatprep.subr.bf16.mxu0 0
  %107 = vmatpush1.bf16.msra.mxu0 %v91
  %108 = vmatprep.subr.bf16.mxu0 0
  %109 = vmatpush1.bf16.msra.mxu0 %v90
  %110 = vmatprep.subr.bf16.mxu0 0
  %111 = vmatpush1.bf16.msra.mxu0 %v89
  %112 = vmatprep.subr.bf16.mxu0 0
  %113 = vmatpush1.bf16.msra.mxu0 %v88
  %114 = vmatprep.subr.bf16.mxu0 0
  %115 = vmatpush1.bf16.msra.mxu0 %v87
  %116 = vmatprep.subr.bf16.mxu0 0
  %117 = vmatpush1.bf16.msra.mxu0 %v86
  %118 = vmatprep.subr.bf16.mxu0 0
  %119 = vmatpush2.bf16.msra.mxu0 0
  %120 = vmatprep.subr.bf16.mxu0 0
  %121 = vmatpush2.bf16.msra.mxu0 0
  %122 = vmatprep.subr.bf16.mxu0 0
  %123 = vmatpush2.bf16.msra.mxu0 0
  %124 = vmatprep.subr.bf16.mxu0 0
  %125 = vmatpush2.bf16.msra.mxu0 0
  %126 = vmatprep.subr.bf16.mxu0 0
  %127 = vmatpush2.bf16.msra.mxu0 0
  %128 = vmatprep.subr.bf16.mxu0 0
  %129 = vmatpush2.bf16.msra.mxu0 0
  %130 = vmatprep.subr.bf16.mxu0 0
  %131 = vmatpush2.bf16.msra.mxu0 0
  %132 = vmatprep.subr.bf16.mxu0 0
  %133 = vmatpush2.bf16.msra.mxu0 0
  %134 = vmatprep.mubr.bf16.mxu0 0
  %135 = vmatmul.mubr.bf16.gmra.mxu0 %v50
  %v136 = vpop.f32.mrf.mxu0
  %v137 = vadd.f32 %v40, %v136
  %v138 = vpop.f32.mrf.mxu0
  %v139 = vpop.f32.mrf.mxu0
  %v140 = vadd.f32 %v40, %v139
  %v141 = vpop.f32.mrf.mxu0
  %142 = vmatprep.mubr.bf16.mxu0 0
  %143 = vmatmul.mubr.bf16.gmra.mxu0 %v51
  %v144 = vpop.f32.mrf.mxu0
  %v145 = vadd.f32 %v40, %v144
  %v146 = vpop.f32.mrf.mxu0
  %v147 = vpop.f32.mrf.mxu0
  %v148 = vadd.f32 %v40, %v147
  %v149 = vpop.f32.mrf.mxu0
  %150 = vdwg.mxu0
  %151 = vst [vmem:[%s3] sm:$0xff] %v137
  %152 = vst [vmem:[%s3 + $0x8] sm:$0xff] %v140
  %153 = vst [vmem:[%s3 + $0x10] sm:$0xff] %v145
  %154 = vst [vmem:[%s3 + $0x18] sm:$0xff] %v148
  // Predicated region
  $region14: #{encoder_forward.25} parent=0 // pred_check
    _
  $region15: #{encoder_forward.25} parent=0 // pred_check_branch
    %156 = sbr.rel (0) target = $region17
  $region16: #{encoder_forward.25} parent=0 // pred_region
    _
  $region17: #{encoder_forward.25} parent=0 // pred_fallthru
    _
  // Predicated region
  $region18: #{encoder_forward.25} parent=0 // pred_check
    _
  $region19: #{encoder_forward.25} parent=0 // pred_check_branch
    %158 = sbr.rel (0) target = $region21
  $region20: #{encoder_forward.25} parent=0 // pred_region
    _
  $region21: #{encoder_forward.25} parent=0 // pred_fallthru
    _

// kernel: encoder_forward.24
$region0: #{encoder_forward.24}
  #allocation0 [shape = 'u32[]', space=smem, size = 0x4, offset = 0x4, fixed_abs, tag = 'smem constant byte address 0x4 - core index']
  #allocation1 [shape = 'u32[144,128]{1,0:T(1,128)}', space=vmem, size = 0x12000, scoped, tag = 'internal scratch']
  %s0 = inlined_call_operand.vmem [shape: bf16[32,128], index: 0, kind: input, shape index: {}]
  %s1 = inlined_call_operand.vmem [shape: bf16[128,128], index: 1, kind: input, shape index: {}]
  %s2 = inlined_call_operand.vmem [shape: f32[1,128], index: 2, kind: input, shape index: {}]
  %s3 = inlined_call_operand.vmem [shape: bf16[32,128], index: 3, kind: output, shape index: {}]
  %s4 = sld [smem:[#allocation0]]
  $region22: #{encoder_forward.24} parent=0
    _
  %s6 = ssub.s32 1, %s4
  %s7 = scalar_select 0, %s6, %s4
  // Predicated region
  $region2: #{encoder_forward.24} parent=0 // pred_check
    _
  $region3: #{encoder_forward.24} parent=0 // pred_check_branch
    %9 = sbr.rel (0) target = $region5
  $region4: #{encoder_forward.24} parent=0 // pred_region
    _
  $region5: #{encoder_forward.24} parent=0 // pred_fallthru
    _
  // Predicated region
  $region6: #{encoder_forward.24} parent=0 // pred_check
    _
  $region7: #{encoder_forward.24} parent=0 // pred_check_branch
    %11 = sbr.rel (0) target = $region9
  $region8: #{encoder_forward.24} parent=0 // pred_region
    _
  $region9: #{encoder_forward.24} parent=0 // pred_fallthru
    _
  // Predicated region
  $region10: #{encoder_forward.24} parent=0 // pred_check
    _
  $region11: #{encoder_forward.24} parent=0 // pred_check_branch
    %13 = sbr.rel (0) target = $region13
  $region12: #{encoder_forward.24} parent=0 // pred_region
    _
  $region13: #{encoder_forward.24} parent=0 // pred_fallthru
    _
  %v15 = vld [vmem:[%s0] sm:$0xf]
  %v16 = vld [vmem:[%s0 + $0x4] sm:$0xf]
  %v17 = vld [vmem:[%s0 + $0x8] sm:$0xf]
  %v18 = vld [vmem:[%s0 + $0xc] sm:$0xf]
  %v19 = vld [vmem:[%s1] sm:$0xf]
  %v20 = vld [vmem:[%s1 + $0x4] sm:$0xf]
  %v21 = vld [vmem:[%s1 + $0x8] sm:$0xf]
  %v22 = vld [vmem:[%s1 + $0xc] sm:$0xf]
  %v23 = vld [vmem:[%s1 + $0x10] sm:$0xf]
  %v24 = vld [vmem:[%s1 + $0x14] sm:$0xf]
  %v25 = vld [vmem:[%s1 + $0x18] sm:$0xf]
  %v26 = vld [vmem:[%s1 + $0x1c] sm:$0xf]
  %v27 = vld [vmem:[%s1 + $0x20] sm:$0xf]
  %v28 = vld [vmem:[%s1 + $0x24] sm:$0xf]
  %v29 = vld [vmem:[%s1 + $0x28] sm:$0xf]
  %v30 = vld [vmem:[%s1 + $0x2c] sm:$0xf]
  %v31 = vld [vmem:[%s1 + $0x30] sm:$0xf]
  %v32 = vld [vmem:[%s1 + $0x34] sm:$0xf]
  %v33 = vld [vmem:[%s1 + $0x38] sm:$0xf]
  %v34 = vld [vmem:[%s1 + $0x3c] sm:$0xf]
  %v35 = vld [vmem:[%s2] sm:$0x1]
  %v37 = vlaneseq
  %v38 = vshrl.u32 %v37, 7
  %v39 = vsub.s32 0, %v38
  %v40 = vrot.slane %v35, %v39
  %v46 = vunpack.c.l.b16 %v15
  %v47 = vunpack.c.l.b16 %v16
  %v48 = vunpack.c.l.b16 %v17
  %v49 = vunpack.c.l.b16 %v18
  %v50 = vpack.c.b16 %v47, %v46
  %v51 = vpack.c.b16 %v49, %v48
  %v70 = vunpack.c.l.b16 %v19
  %v71 = vunpack.c.l.b16 %v20
  %v72 = vunpack.c.l.b16 %v21
  %v73 = vunpack.c.l.b16 %v22
  %v74 = vunpack.c.l.b16 %v23
  %v75 = vunpack.c.l.b16 %v24
  %v76 = vunpack.c.l.b16 %v25
  %v77 = vunpack.c.l.b16 %v26
  %v78 = vunpack.c.l.b16 %v27
  %v79 = vunpack.c.l.b16 %v28
  %v80 = vunpack.c.l.b16 %v29
  %v81 = vunpack.c.l.b16 %v30
  %v82 = vunpack.c.l.b16 %v31
  %v83 = vunpack.c.l.b16 %v32
  %v84 = vunpack.c.l.b16 %v33
  %v85 = vunpack.c.l.b16 %v34
  %v86 = vpack.c.b16 %v71, %v70
  %v87 = vpack.c.b16 %v73, %v72
  %v88 = vpack.c.b16 %v75, %v74
  %v89 = vpack.c.b16 %v77, %v76
  %v90 = vpack.c.b16 %v79, %v78
  %v91 = vpack.c.b16 %v81, %v80
  %v92 = vpack.c.b16 %v83, %v82
  %v93 = vpack.c.b16 %v85, %v84
  %102 = vmatprep.subr.bf16.mxu0 0
  %103 = vmatpush1.bf16.msra.mxu0 %v93
  %104 = vmatprep.subr.bf16.mxu0 0
  %105 = vmatpush1.bf16.msra.mxu0 %v92
  %106 = vmatprep.subr.bf16.mxu0 0
  %107 = vmatpush1.bf16.msra.mxu0 %v91
  %108 = vmatprep.subr.bf16.mxu0 0
  %109 = vmatpush1.bf16.msra.mxu0 %v90
  %110 = vmatprep.subr.bf16.mxu0 0
  %111 = vmatpush1.bf16.msra.mxu0 %v89
  %112 = vmatprep.subr.bf16.mxu0 0
  %113 = vmatpush1.bf16.msra.mxu0 %v88
  %114 = vmatprep.subr.bf16.mxu0 0
  %115 = vmatpush1.bf16.msra.mxu0 %v87
  %116 = vmatprep.subr.bf16.mxu0 0
  %117 = vmatpush1.bf16.msra.mxu0 %v86
  %118 = vmatprep.subr.bf16.mxu0 0
  %119 = vmatpush2.bf16.msra.mxu0 0
  %120 = vmatprep.subr.bf16.mxu0 0
  %121 = vmatpush2.bf16.msra.mxu0 0
  %122 = vmatprep.subr.bf16.mxu0 0
  %123 = vmatpush2.bf16.msra.mxu0 0
  %124 = vmatprep.subr.bf16.mxu0 0
  %125 = vmatpush2.bf16.msra.mxu0 0
  %126 = vmatprep.subr.bf16.mxu0 0
  %127 = vmatpush2.bf16.msra.mxu0 0
  %128 = vmatprep.subr.bf16.mxu0 0
  %129 = vmatpush2.bf16.msra.mxu0 0
  %130 = vmatprep.subr.bf16.mxu0 0
  %131 = vmatpush2.bf16.msra.mxu0 0
  %132 = vmatprep.subr.bf16.mxu0 0
  %133 = vmatpush2.bf16.msra.mxu0 0
  %134 = vmatprep.mubr.bf16.mxu0 0
  %135 = vmatmul.mubr.bf16.gmra.mxu0 %v50
  %v136 = vpop.f32.mrf.mxu0
  %v137 = vadd.f32 %v40, %v136
  %v138 = vpop.f32.mrf.mxu0
  %v139 = vpop.f32.mrf.mxu0
  %v140 = vadd.f32 %v40, %v139
  %v141 = vpop.f32.mrf.mxu0
  %142 = vmatprep.mubr.bf16.mxu0 0
  %143 = vmatmul.mubr.bf16.gmra.mxu0 %v51
  %v144 = vpop.f32.mrf.mxu0
  %v145 = vadd.f32 %v40, %v144
  %v146 = vpop.f32.mrf.mxu0
  %v147 = vpop.f32.mrf.mxu0
  %v148 = vadd.f32 %v40, %v147
  %v149 = vpop.f32.mrf.mxu0
  %150 = vdwg.mxu0
  %v151 = vmul.f32 %v137, 0.5
  %v152 = vmul.f32 %v140, 0.5
  %v153 = vmul.f32 %v145, 0.5
  %v154 = vmul.f32 %v148, 0.5
  %v155 = vmul.f32 %v137, 0.044715
  %v156 = vmul.f32 %v140, 0.044715
  %v157 = vmul.f32 %v145, 0.044715
  %v158 = vmul.f32 %v148, 0.044715
  %v159 = vmul.f32 %v155, %v137
  %v160 = vmul.f32 %v156, %v140
  %v161 = vmul.f32 %v157, %v145
  %v162 = vmul.f32 %v158, %v148
  %v163 = vmul.f32 %v159, %v137
  %v164 = vmul.f32 %v160, %v140
  %v165 = vmul.f32 %v161, %v145
  %v166 = vmul.f32 %v162, %v148
  %v167 = vadd.f32 %v137, %v163
  %v168 = vadd.f32 %v140, %v164
  %v169 = vadd.f32 %v145, %v165
  %v170 = vadd.f32 %v148, %v166
  %v171 = vmul.f32 %v167, 0.7978846
  %v172 = vmul.f32 %v168, 0.7978846
  %v173 = vmul.f32 %v169, 0.7978846
  %v174 = vmul.f32 %v170, 0.7978846
  %v175 = vtanh.pop %v171
  %v176 = vtanh.pop %v172
  %v177 = vtanh.pop %v173
  %v178 = vtanh.pop %v174
  %v179 = vadd.f32 %v175, 1.0
  %v180 = vadd.f32 %v176, 1.0
  %v181 = vadd.f32 %v177, 1.0
  %v182 = vadd.f32 %v178, 1.0
  %v183 = vmul.f32 %v151, %v179
  %v184 = vmul.f32 %v152, %v180
  %v185 = vmul.f32 %v153, %v181
  %v186 = vmul.f32 %v154, %v182
  %v187 = vpack.c.bf16 %v184, %v183
  %v188 = vpack.c.bf16 %v186, %v185
  %v191 = vunpack.c.l.b16 %v187
  %v192 = vunpack.c.h.b16 %v187
  %v193 = vunpack.c.l.b16 %v188
  %v194 = vunpack.c.h.b16 %v188
  %v195 = vpack.c.b16 %v191, %v191
  %v196 = vpack.c.b16 %v192, %v192
  %v197 = vpack.c.b16 %v193, %v193
  %v198 = vpack.c.b16 %v194, %v194
  %203 = vst [vmem:[%s3] sm:$0xf] %v195
  %204 = vst [vmem:[%s3 + $0x4] sm:$0xf] %v196
  %205 = vst [vmem:[%s3 + $0x8] sm:$0xf] %v197
  %206 = vst [vmem:[%s3 + $0xc] sm:$0xf] %v198
  // Predicated region
  $region14: #{encoder_forward.24} parent=0 // pred_check
    _
  $region15: #{encoder_forward.24} parent=0 // pred_check_branch
    %208 = sbr.rel (0) target = $region17
  $region16: #{encoder_forward.24} parent=0 // pred_region
    _
  $region17: #{encoder_forward.24} parent=0 // pred_fallthru
    _
  // Predicated region
  $region18: #{encoder_forward.24} parent=0 // pred_check
    _
  $region19: #{encoder_forward.24} parent=0 // pred_check_branch
    %210 = sbr.rel (0) target = $region21
  $region20: #{encoder_forward.24} parent=0 // pred_region
    _
  $region21: #{encoder_forward.24} parent=0 // pred_fallthru
    _

// kernel: encoder_forward.18
$region0: #{encoder_forward.18}
  #allocation0 [shape = 'u32[]', space=smem, size = 0x4, offset = 0x4, fixed_abs, tag = 'smem constant byte address 0x4 - core index']
  #allocation1 [shape = 'u32[144,128]{1,0:T(1,128)}', space=vmem, size = 0x12000, scoped, tag = 'internal scratch']
  %s0 = inlined_call_operand.vmem [shape: bf16[32,512], index: 0, kind: input, shape index: {}]
  %s1 = inlined_call_operand.vmem [shape: bf16[512,128], index: 1, kind: input, shape index: {}]
  %s2 = inlined_call_operand.vmem [shape: f32[1,128], index: 2, kind: input, shape index: {}]
  %s3 = inlined_call_operand.vmem [shape: bf16[32,128], index: 3, kind: input, shape index: {}]
  %s4 = inlined_call_operand.vmem [shape: bf16[32,128], index: 4, kind: output, shape index: {}]
  %s5 = sld [smem:[#allocation0]]
  $region26: #{encoder_forward.18} parent=0
    _
  %s7 = ssub.s32 1, %s5
  %s8 = scalar_select 0, %s7, %s5
  // Predicated region
  $region2: #{encoder_forward.18} parent=0 // pred_check
    _
  $region3: #{encoder_forward.18} parent=0 // pred_check_branch
    %10 = sbr.rel (0) target = $region5
  $region4: #{encoder_forward.18} parent=0 // pred_region
    _
  $region5: #{encoder_forward.18} parent=0 // pred_fallthru
    _
  // Predicated region
  $region6: #{encoder_forward.18} parent=0 // pred_check
    _
  $region7: #{encoder_forward.18} parent=0 // pred_check_branch
    %12 = sbr.rel (0) target = $region9
  $region8: #{encoder_forward.18} parent=0 // pred_region
    _
  $region9: #{encoder_forward.18} parent=0 // pred_fallthru
    _
  // Predicated region
  $region10: #{encoder_forward.18} parent=0 // pred_check
    _
  $region11: #{encoder_forward.18} parent=0 // pred_check_branch
    %14 = sbr.rel (0) target = $region13
  $region12: #{encoder_forward.18} parent=0 // pred_region
    _
  $region13: #{encoder_forward.18} parent=0 // pred_fallthru
    _
  // Predicated region
  $region14: #{encoder_forward.18} parent=0 // pred_check
    _
  $region15: #{encoder_forward.18} parent=0 // pred_check_branch
    %16 = sbr.rel (0) target = $region17
  $region16: #{encoder_forward.18} parent=0 // pred_region
    _
  $region17: #{encoder_forward.18} parent=0 // pred_fallthru
    _
  %v18 = vld [vmem:[%s0] sm:$0xff]
  %v19 = vld [vmem:[%s0 + $0x8] sm:$0xff]
  %v20 = vld [vmem:[%s0 + $0x10] sm:$0xff]
  %v21 = vld [vmem:[%s0 + $0x18] sm:$0xff]
  %v22 = vld [vmem:[%s0 + $0x20] sm:$0xff]
  %v23 = vld [vmem:[%s0 + $0x28] sm:$0xff]
  %v24 = vld [vmem:[%s0 + $0x30] sm:$0xff]
  %v25 = vld [vmem:[%s0 + $0x38] sm:$0xff]
  %v26 = vld [vmem:[%s1] sm:$0xf]
  %v27 = vld [vmem:[%s1 + $0x4] sm:$0xf]
  %v28 = vld [vmem:[%s1 + $0x8] sm:$0xf]
  %v29 = vld [vmem:[%s1 + $0xc] sm:$0xf]
  %v30 = vld [vmem:[%s1 + $0x10] sm:$0xf]
  %v31 = vld [vmem:[%s1 + $0x14] sm:$0xf]
  %v32 = vld [vmem:[%s1 + $0x18] sm:$0xf]
  %v33 = vld [vmem:[%s1 + $0x1c] sm:$0xf]
  %v34 = vld [vmem:[%s1 + $0x20] sm:$0xf]
  %v35 = vld [vmem:[%s1 + $0x24] sm:$0xf]
  %v36 = vld [vmem:[%s1 + $0x28] sm:$0xf]
  %v37 = vld [vmem:[%s1 + $0x2c] sm:$0xf]
  %v38 = vld [vmem:[%s1 + $0x30] sm:$0xf]
  %v39 = vld [vmem:[%s1 + $0x34] sm:$0xf]
  %v40 = vld [vmem:[%s1 + $0x38] sm:$0xf]
  %v41 = vld [vmem:[%s1 + $0x3c] sm:$0xf]
  %v42 = vld [vmem:[%s1 + $0x40] sm:$0xf]
  %v43 = vld [vmem:[%s1 + $0x44] sm:$0xf]
  %v44 = vld [vmem:[%s1 + $0x48] sm:$0xf]
  %v45 = vld [vmem:[%s1 + $0x4c] sm:$0xf]
  %v46 = vld [vmem:[%s1 + $0x50] sm:$0xf]
  %v47 = vld [vmem:[%s1 + $0x54] sm:$0xf]
  %v48 = vld [vmem:[%s1 + $0x58] sm:$0xf]
  %v49 = vld [vmem:[%s1 + $0x5c] sm:$0xf]
  %v50 = vld [vmem:[%s1 + $0x60] sm:$0xf]
  %v51 = vld [vmem:[%s1 + $0x64] sm:$0xf]
  %v52 = vld [vmem:[%s1 + $0x68] sm:$0xf]
  %v53 = vld [vmem:[%s1 + $0x6c] sm:$0xf]
  %v54 = vld [vmem:[%s1 + $0x70] sm:$0xf]
  %v55 = vld [vmem:[%s1 + $0x74] sm:$0xf]
  %v56 = vld [vmem:[%s1 + $0x78] sm:$0xf]
  %v57 = vld [vmem:[%s1 + $0x7c] sm:$0xf]
  %v58 = vld [vmem:[%s1 + $0x80] sm:$0xf]
  %v59 = vld [vmem:[%s1 + $0x84] sm:$0xf]
  %v60 = vld [vmem:[%s1 + $0x88] sm:$0xf]
  %v61 = vld [vmem:[%s1 + $0x8c] sm:$0xf]
  %v62 = vld [vmem:[%s1 + $0x90] sm:$0xf]
  %v63 = vld [vmem:[%s1 + $0x94] sm:$0xf]
  %v64 = vld [vmem:[%s1 + $0x98] sm:$0xf]
  %v65 = vld [vmem:[%s1 + $0x9c] sm:$0xf]
  %v66 = vld [vmem:[%s1 + $0xa0] sm:$0xf]
  %v67 = vld [vmem:[%s1 + $0xa4] sm:$0xf]
  %v68 = vld [vmem:[%s1 + $0xa8] sm:$0xf]
  %v69 = vld [vmem:[%s1 + $0xac] sm:$0xf]
  %v70 = vld [vmem:[%s1 + $0xb0] sm:$0xf]
  %v71 = vld [vmem:[%s1 + $0xb4] sm:$0xf]
  %v72 = vld [vmem:[%s1 + $0xb8] sm:$0xf]
  %v73 = vld [vmem:[%s1 + $0xbc] sm:$0xf]
  %v74 = vld [vmem:[%s1 + $0xc0] sm:$0xf]
  %v75 = vld [vmem:[%s1 + $0xc4] sm:$0xf]
  %v76 = vld [vmem:[%s1 + $0xc8] sm:$0xf]
  %v77 = vld [vmem:[%s1 + $0xcc] sm:$0xf]
  %v78 = vld [vmem:[%s1 + $0xd0] sm:$0xf]
  %v79 = vld [vmem:[%s1 + $0xd4] sm:$0xf]
  %v80 = vld [vmem:[%s1 + $0xd8] sm:$0xf]
  %v81 = vld [vmem:[%s1 + $0xdc] sm:$0xf]
  %v82 = vld [vmem:[%s1 + $0xe0] sm:$0xf]
  %v83 = vld [vmem:[%s1 + $0xe4] sm:$0xf]
  %v84 = vld [vmem:[%s1 + $0xe8] sm:$0xf]
  %v85 = vld [vmem:[%s1 + $0xec] sm:$0xf]
  %v86 = vld [vmem:[%s1 + $0xf0] sm:$0xf]
  %v87 = vld [vmem:[%s1 + $0xf4] sm:$0xf]
  %v88 = vld [vmem:[%s1 + $0xf8] sm:$0xf]
  %v89 = vld [vmem:[%s1 + $0xfc] sm:$0xf]
  %v90 = vld [vmem:[%s2] sm:$0x1]
  %v92 = vlaneseq
  %v93 = vshrl.u32 %v92, 7
  %v94 = vsub.s32 0, %v93
  %v95 = vrot.slane %v90, %v94
  %v105 = vunpack.c.l.b16 %v18
  %v106 = vunpack.c.h.b16 %v18
  %v107 = vunpack.c.l.b16 %v19
  %v108 = vunpack.c.h.b16 %v19
  %v109 = vunpack.c.l.b16 %v20
  %v110 = vunpack.c.h.b16 %v20
  %v111 = vunpack.c.l.b16 %v21
  %v112 = vunpack.c.h.b16 %v21
  %v113 = vunpack.c.l.b16 %v22
  %v114 = vunpack.c.h.b16 %v22
  %v115 = vunpack.c.l.b16 %v23
  %v116 = vunpack.c.h.b16 %v23
  %v117 = vunpack.c.l.b16 %v24
  %v118 = vunpack.c.h.b16 %v24
  %v119 = vunpack.c.l.b16 %v25
  %v120 = vunpack.c.h.b16 %v25
  %v121 = vpack.c.b16 %v109, %v105
  %v122 = vpack.c.b16 %v110, %v106
  %v123 = vpack.c.b16 %v111, %v107
  %v124 = vpack.c.b16 %v112, %v108
  %v125 = vpack.c.b16 %v117, %v113
  %v126 = vpack.c.b16 %v118, %v114
  %v127 = vpack.c.b16 %v119, %v115
  %v128 = vpack.c.b16 %v120, %v116
  %v201 = vunpack.c.l.b16 %v26
  %v202 = vunpack.c.l.b16 %v27
  %v203 = vunpack.c.l.b16 %v28
  %v204 = vunpack.c.l.b16 %v29
  %v205 = vunpack.c.l.b16 %v30
  %v206 = vunpack.c.l.b16 %v31
  %v207 = vunpack.c.l.b16 %v32
  %v208 = vunpack.c.l.b16 %v33
  %v209 = vunpack.c.l.b16 %v34
  %v210 = vunpack.c.l.b16 %v35
  %v211 = vunpack.c.l.b16 %v36
  %v212 = vunpack.c.l.b16 %v37
  %v213 = vunpack.c.l.b16 %v38
  %v214 = vunpack.c.l.b16 %v39
  %v215 = vunpack.c.l.b16 %v40
  %v216 = vunpack.c.l.b16 %v41
  %v217 = vunpack.c.l.b16 %v42
  %v218 = vunpack.c.l.b16 %v43
  %v219 = vunpack.c.l.b16 %v44
  %v220 = vunpack.c.l.b16 %v45
  %v221 = vunpack.c.l.b16 %v46
  %v222 = vunpack.c.l.b16 %v47
  %v223 = vunpack.c.l.b16 %v48
  %v224 = vunpack.c.l.b16 %v49
  %v225 = vunpack.c.l.b16 %v50
  %v226 = vunpack.c.l.b16 %v51
  %v227 = vunpack.c.l.b16 %v52
  %v228 = vunpack.c.l.b16 %v53
  %v229 = vunpack.c.l.b16 %v54
  %v230 = vunpack.c.l.b16 %v55
  %v231 = vunpack.c.l.b16 %v56
  %v232 = vunpack.c.l.b16 %v57
  %v233 = vunpack.c.l.b16 %v58
  %v234 = vunpack.c.l.b16 %v59
  %v235 = vunpack.c.l.b16 %v60
  %v236 = vunpack.c.l.b16 %v61
  %v237 = vunpack.c.l.b16 %v62
  %v238 = vunpack.c.l.b16 %v63
  %v239 = vunpack.c.l.b16 %v64
  %v240 = vunpack.c.l.b16 %v65
  %v241 = vunpack.c.l.b16 %v66
  %v242 = vunpack.c.l.b16 %v67
  %v243 = vunpack.c.l.b16 %v68
  %v244 = vunpack.c.l.b16 %v69
  %v245 = vunpack.c.l.b16 %v70
  %v246 = vunpack.c.l.b16 %v71
  %v247 = vunpack.c.l.b16 %v72
  %v248 = vunpack.c.l.b16 %v73
  %v249 = vunpack.c.l.b16 %v74
  %v250 = vunpack.c.l.b16 %v75
  %v251 = vunpack.c.l.b16 %v76
  %v252 = vunpack.c.l.b16 %v77
  %v253 = vunpack.c.l.b16 %v78
  %v254 = vunpack.c.l.b16 %v79
  %v255 = vunpack.c.l.b16 %v80
  %v256 = vunpack.c.l.b16 %v81
  %v257 = vunpack.c.l.b16 %v82
  %v258 = vunpack.c.l.b16 %v83
  %v259 = vunpack.c.l.b16 %v84
  %v260 = vunpack.c.l.b16 %v85
  %v261 = vunpack.c.l.b16 %v86
  %v262 = vunpack.c.l.b16 %v87
  %v263 = vunpack.c.l.b16 %v88
  %v264 = vunpack.c.l.b16 %v89
  %v265 = vpack.c.b16 %v202, %v201
  %v266 = vpack.c.b16 %v204, %v203
  %v267 = vpack.c.b16 %v206, %v205
  %v268 = vpack.c.b16 %v208, %v207
  %v269 = vpack.c.b16 %v210, %v209
  %v270 = vpack.c.b16 %v212, %v211
  %v271 = vpack.c.b16 %v214, %v213
  %v272 = vpack.c.b16 %v216, %v215
  %v273 = vpack.c.b16 %v218, %v217
  %v274 = vpack.c.b16 %v220, %v219
  %v275 = vpack.c.b16 %v222, %v221
  %v276 = vpack.c.b16 %v224, %v223
  %v277 = vpack.c.b16 %v226, %v225
  %v278 = vpack.c.b16 %v228, %v227
  %v279 = vpack.c.b16 %v230, %v229
  %v280 = vpack.c.b16 %v232, %v231
  %v281 = vpack.c.b16 %v234, %v233
  %v282 = vpack.c.b16 %v236, %v235
  %v283 = vpack.c.b16 %v238, %v237
  %v284 = vpack.c.b16 %v240, %v239
  %v285 = vpack.c.b16 %v242, %v241
  %v286 = vpack.c.b16 %v244, %v243
  %v287 = vpack.c.b16 %v246, %v245
  %v288 = vpack.c.b16 %v248, %v247
  %v289 = vpack.c.b16 %v250, %v249
  %v290 = vpack.c.b16 %v252, %v251
  %v291 = vpack.c.b16 %v254, %v253
  %v292 = vpack.c.b16 %v256, %v255
  %v293 = vpack.c.b16 %v258, %v257
  %v294 = vpack.c.b16 %v260, %v259
  %v295 = vpack.c.b16 %v262, %v261
  %v296 = vpack.c.b16 %v264, %v263
  %329 = vmatprep.subr.bf16.mxu0 0
  %330 = vmatpush1.bf16.msra.mxu0 %v272
  %331 = vmatprep.subr.bf16.mxu0 0
  %332 = vmatpush1.bf16.msra.mxu0 %v271
  %333 = vmatprep.subr.bf16.mxu0 0
  %334 = vmatpush1.bf16.msra.mxu0 %v270
  %335 = vmatprep.subr.bf16.mxu0 0
  %336 = vmatpush1.bf16.msra.mxu0 %v269
  %337 = vmatprep.subr.bf16.mxu0 0
  %338 = vmatpush1.bf16.msra.mxu0 %v268
  %339 = vmatprep.subr.bf16.mxu0 0
  %340 = vmatpush1.bf16.msra.mxu0 %v267
  %341 = vmatprep.subr.bf16.mxu0 0
  %342 = vmatpush1.bf16.msra.mxu0 %v266
  %343 = vmatprep.subr.bf16.mxu0 0
  %344 = vmatpush1.bf16.msra.mxu0 %v265
  %345 = vmatprep.subr.bf16.mxu0 0
  %346 = vmatpush2.bf16.msra.mxu0 %v280
  %347 = vmatprep.subr.bf16.mxu0 0
  %348 = vmatpush2.bf16.msra.mxu0 %v279
  %349 = vmatprep.subr.bf16.mxu0 0
  %350 = vmatpush2.bf16.msra.mxu0 %v278
  %351 = vmatprep.subr.bf16.mxu0 0
  %352 = vmatpush2.bf16.msra.mxu0 %v277
  %353 = vmatprep.subr.bf16.mxu0 0
  %354 = vmatpush2.bf16.msra.mxu0 %v276
  %355 = vmatprep.subr.bf16.mxu0 0
  %356 = vmatpush2.bf16.msra.mxu0 %v275
  %357 = vmatprep.subr.bf16.mxu0 0
  %358 = vmatpush2.bf16.msra.mxu0 %v274
  %359 = vmatprep.subr.bf16.mxu0 0
  %360 = vmatpush2.bf16.msra.mxu0 %v273
  %361 = vmatprep.mubr.bf16.mxu0 %v122
  %362 = vmatmul.mubr.bf16.gmra.mxu0 %v121
  %v363 = vpop.f32.mrf.mxu0
  %v364 = vadd.f32 %v95, %v363
  %v365 = vpop.f32.mrf.mxu0
  %v366 = vpop.f32.mrf.mxu0
  %v367 = vadd.f32 %v95, %v366
  %v368 = vpop.f32.mrf.mxu0
  %369 = vmatprep.mubr.bf16.mxu0 %v126
  %370 = vmatmul.mubr.bf16.gmra.mxu0 %v125
  %v371 = vpop.f32.mrf.mxu0
  %v372 = vadd.f32 %v95, %v371
  %v373 = vpop.f32.mrf.mxu0
  %v374 = vpop.f32.mrf.mxu0
  %v375 = vadd.f32 %v95, %v374
  %v376 = vpop.f32.mrf.mxu0
  %377 = vdwg.mxu0
  %378 = vmatprep.subr.bf16.mxu0 0
  %379 = vmatpush1.bf16.msra.mxu0 %v288
  %380 = vmatprep.subr.bf16.mxu0 0
  %381 = vmatpush1.bf16.msra.mxu0 %v287
  %382 = vmatprep.subr.bf16.mxu0 0
  %383 = vmatpush1.bf16.msra.mxu0 %v286
  %384 = vmatprep.subr.bf16.mxu0 0
  %385 = vmatpush1.bf16.msra.mxu0 %v285
  %386 = vmatprep.subr.bf16.mxu0 0
  %387 = vmatpush1.bf16.msra.mxu0 %v284
  %388 = vmatprep.subr.bf16.mxu0 0
  %389 = vmatpush1.bf16.msra.mxu0 %v283
  %390 = vmatprep.subr.bf16.mxu0 0
  %391 = vmatpush1.bf16.msra.mxu0 %v282
  %392 = vmatprep.subr.bf16.mxu0 0
  %393 = vmatpush1.bf16.msra.mxu0 %v281
  %394 = vmatprep.subr.bf16.mxu0 0
  %395 = vmatpush2.bf16.msra.mxu0 %v296
  %396 = vmatprep.subr.bf16.mxu0 0
  %397 = vmatpush2.bf16.msra.mxu0 %v295
  %398 = vmatprep.subr.bf16.mxu0 0
  %399 = vmatpush2.bf16.msra.mxu0 %v294
  %400 = vmatprep.subr.bf16.mxu0 0
  %401 = vmatpush2.bf16.msra.mxu0 %v293
  %402 = vmatprep.subr.bf16.mxu0 0
  %403 = vmatpush2.bf16.msra.mxu0 %v292
  %404 = vmatprep.subr.bf16.mxu0 0
  %405 = vmatpush2.bf16.msra.mxu0 %v291
  %406 = vmatprep.subr.bf16.mxu0 0
  %407 = vmatpush2.bf16.msra.mxu0 %v290
  %408 = vmatprep.subr.bf16.mxu0 0
  %409 = vmatpush2.bf16.msra.mxu0 %v289
  %410 = vmatprep.mubr.bf16.mxu0 %v124
  %411 = vmatmul.mubr.bf16.gmra.mxu0 %v123
  %v412 = vpop.f32.mrf.mxu0
  %v413 = vadd.f32 %v364, %v412
  %v414 = vpop.f32.mrf.mxu0
  %v415 = vpop.f32.mrf.mxu0
  %v416 = vadd.f32 %v367, %v415
  %v417 = vpop.f32.mrf.mxu0
  %418 = vmatprep.mubr.bf16.mxu0 %v128
  %419 = vmatmul.mubr.bf16.gmra.mxu0 %v127
  %v420 = vpop.f32.mrf.mxu0
  %v421 = vadd.f32 %v372, %v420
  %v422 = vpop.f32.mrf.mxu0
  %v423 = vpop.f32.mrf.mxu0
  %v424 = vadd.f32 %v375, %v423
  %v425 = vpop.f32.mrf.mxu0
  %426 = vdwg.mxu0
  %v427 = vld [vmem:[%s3] sm:$0xf]
  %v428 = vld [vmem:[%s3 + $0x4] sm:$0xf]
  %v429 = vld [vmem:[%s3 + $0x8] sm:$0xf]
  %v430 = vld [vmem:[%s3 + $0xc] sm:$0xf]
  %v431 = vunpack.c.l.bf16 %v427
  %v432 = vunpack.c.l.bf16 %v428
  %v433 = vunpack.c.l.bf16 %v429
  %v434 = vunpack.c.l.bf16 %v430
  %v435 = vadd.f32 %v413, %v431
  %v436 = vadd.f32 %v416, %v432
  %v437 = vadd.f32 %v421, %v433
  %v438 = vadd.f32 %v424, %v434
  %v439 = vpack.c.bf16 %v436, %v435
  %v440 = vpack.c.bf16 %v438, %v437
  %v443 = vunpack.c.l.b16 %v439
  %v444 = vunpack.c.h.b16 %v439
  %v445 = vunpack.c.l.b16 %v440
  %v446 = vunpack.c.h.b16 %v440
  %v447 = vpack.c.b16 %v443, %v443
  %v448 = vpack.c.b16 %v444, %v444
  %v449 = vpack.c.b16 %v445, %v445
  %v450 = vpack.c.b16 %v446, %v446
  %455 = vst [vmem:[%s4] sm:$0xf] %v447
  %456 = vst [vmem:[%s4 + $0x4] sm:$0xf] %v448
  %457 = vst [vmem:[%s4 + $0x8] sm:$0xf] %v449
  %458 = vst [vmem:[%s4 + $0xc] sm:$0xf] %v450
  // Predicated region
  $region18: #{encoder_forward.18} parent=0 // pred_check
    _
  $region19: #{encoder_forward.18} parent=0 // pred_check_branch
    %460 = sbr.rel (0) target = $region21
  $region20: #{encoder_forward.18} parent=0 // pred_region
    _
  $region21: #{encoder_forward.18} parent=0 // pred_fallthru
    _
  // Predicated region
  $region22: #{encoder_forward.18} parent=0 // pred_check
    _
  $region23: #{encoder_forward.18} parent=0 // pred_check_branch
    %462 = sbr.rel (0) target = $region25
  $region24: #{encoder_forward.18} parent=0 // pred_region
    _
  $region25: #{encoder_forward.18} parent=0 // pred_fallthru
    _

// kernel: encoder_forward.17
$region0: #{encoder_forward.17}
  #allocation0 [shape = 'u32[]', space=smem, size = 0x4, offset = 0x4, fixed_abs, tag = 'smem constant byte address 0x4 - core index']
  #allocation1 [shape = 'u32[144,128]{1,0:T(1,128)}', space=vmem, size = 0x12000, scoped, tag = 'internal scratch']
  %s0 = inlined_call_operand.vmem [shape: bf16[32,128], index: 0, kind: input, shape index: {}]
  %s1 = inlined_call_operand.vmem [shape: f32[1,128], index: 1, kind: input, shape index: {}]
  %s2 = inlined_call_operand.vmem [shape: f32[1,128], index: 2, kind: input, shape index: {}]
  %s3 = inlined_call_operand.vmem [shape: bf16[128,512], index: 3, kind: input, shape index: {}]
  %s4 = inlined_call_operand.vmem [shape: f32[1,512], index: 4, kind: input, shape index: {}]
  %s5 = inlined_call_operand.vmem [shape: bf16[32,512], index: 5, kind: output, shape index: {}]
  %s6 = sld [smem:[#allocation0]]
  $region30: #{encoder_forward.17} parent=0
    _
  %s8 = ssub.s32 1, %s6
  %s9 = scalar_select 0, %s8, %s6
  // Predicated region
  $region2: #{encoder_forward.17} parent=0 // pred_check
    _
  $region3: #{encoder_forward.17} parent=0 // pred_check_branch
    %11 = sbr.rel (0) target = $region5
  $region4: #{encoder_forward.17} parent=0 // pred_region
    _
  $region5: #{encoder_forward.17} parent=0 // pred_fallthru
    _
  // Predicated region
  $region6: #{encoder_forward.17} parent=0 // pred_check
    _
  $region7: #{encoder_forward.17} parent=0 // pred_check_branch
    %13 = sbr.rel (0) target = $region9
  $region8: #{encoder_forward.17} parent=0 // pred_region
    _
  $region9: #{encoder_forward.17} parent=0 // pred_fallthru
    _
  // Predicated region
  $region10: #{encoder_forward.17} parent=0 // pred_check
    _
  $region11: #{encoder_forward.17} parent=0 // pred_check_branch
    %15 = sbr.rel (0) target = $region13
  $region12: #{encoder_forward.17} parent=0 // pred_region
    _
  $region13: #{encoder_forward.17} parent=0 // pred_fallthru
    _
  // Predicated region
  $region14: #{encoder_forward.17} parent=0 // pred_check
    _
  $region15: #{encoder_forward.17} parent=0 // pred_check_branch
    %17 = sbr.rel (0) target = $region17
  $region16: #{encoder_forward.17} parent=0 // pred_region
    _
  $region17: #{encoder_forward.17} parent=0 // pred_fallthru
    _
  // Predicated region
  $region18: #{encoder_forward.17} parent=0 // pred_check
    _
  $region19: #{encoder_forward.17} parent=0 // pred_check_branch
    %19 = sbr.rel (0) target = $region21
  $region20: #{encoder_forward.17} parent=0 // pred_region
    _
  $region21: #{encoder_forward.17} parent=0 // pred_fallthru
    _
  %v21 = vld [vmem:[%s0] sm:$0xf]
  %v22 = vld [vmem:[%s0 + $0x4] sm:$0xf]
  %v23 = vld [vmem:[%s0 + $0x8] sm:$0xf]
  %v24 = vld [vmem:[%s0 + $0xc] sm:$0xf]
  %v25 = vunpack.c.l.bf16 %v21
  %v26 = vunpack.c.l.bf16 %v22
  %v27 = vunpack.c.l.bf16 %v23
  %v28 = vunpack.c.l.bf16 %v24
  %29 = vadd.xlane.f32.xlu0 %v25
  %v30 = vpop.xlane.xlu0 %29
  %31 = vadd.xlane.f32.xlu0 %v26
  %v32 = vpop.xlane.xlu0 %31
  %33 = vadd.xlane.f32.xlu0 %v27
  %v34 = vpop.xlane.xlu0 %33
  %35 = vadd.xlane.f32.xlu0 %v28
  %v36 = vpop.xlane.xlu0 %35
  %v37 = vrcp.pop 128.0
  %v38 = vmul.f32 %v30, %v37
  %v39 = vmul.f32 %v32, %v37
  %v40 = vmul.f32 %v34, %v37
  %v41 = vmul.f32 %v36, %v37
  %v42 = vsub.f32 %v25, %v38
  %v43 = vsub.f32 %v26, %v39
  %v44 = vsub.f32 %v27, %v40
  %v45 = vsub.f32 %v28, %v41
  %v46 = vmul.f32 %v42, %v42
  %v47 = vmul.f32 %v43, %v43
  %v48 = vmul.f32 %v44, %v44
  %v49 = vmul.f32 %v45, %v45
  %50 = vadd.xlane.f32.xlu0 %v46
  %v51 = vpop.xlane.xlu0 %50
  %52 = vadd.xlane.f32.xlu0 %v47
  %v53 = vpop.xlane.xlu0 %52
  %54 = vadd.xlane.f32.xlu0 %v48
  %v55 = vpop.xlane.xlu0 %54
  %56 = vadd.xlane.f32.xlu0 %v49
  %v57 = vpop.xlane.xlu0 %56
  %v58 = vmul.f32 %v51, %v37
  %v59 = vmul.f32 %v53, %v37
  %v60 = vmul.f32 %v55, %v37
  %v61 = vmul.f32 %v57, %v37
  %v62 = vadd.f32 %v58, 1e-05
  %v63 = vadd.f32 %v59, 1e-05
  %v64 = vadd.f32 %v60, 1e-05
  %v65 = vadd.f32 %v61, 1e-05
  %v66 = vrsqrt.pop %v62
  %v67 = vrsqrt.pop %v63
  %v68 = vrsqrt.pop %v64
  %v69 = vrsqrt.pop %v65
  %v70 = vmul.f32 %v42, %v66
  %v71 = vmul.f32 %v43, %v67
  %v72 = vmul.f32 %v44, %v68
  %v73 = vmul.f32 %v45, %v69
  %v74 = vld [vmem:[%s1] sm:$0x1]
  %v76 = vlaneseq
  %v77 = vshrl.u32 %v76, 7
  %v78 = vsub.s32 0, %v77
  %v79 = vrot.slane %v74, %v78
  %v81 = vmul.f32 %v70, %v79
  %v82 = vmul.f32 %v71, %v79
  %v83 = vmul.f32 %v72, %v79
  %v84 = vmul.f32 %v73, %v79
  %v85 = vld [vmem:[%s2] sm:$0x1]
  %v87 = vlaneseq
  %v88 = vshrl.u32 %v87, 7
  %v89 = vsub.s32 0, %v88
  %v90 = vrot.slane %v85, %v89
  %v92 = vadd.f32 %v81, %v90
  %v93 = vadd.f32 %v82, %v90
  %v94 = vadd.f32 %v83, %v90
  %v95 = vadd.f32 %v84, %v90
  %v96 = vpack.c.bf16 %v93, %v92
  %v97 = vpack.c.bf16 %v95, %v94
  %v98 = vld [vmem:[%s3] sm:$0xff]
  %v99 = vld [vmem:[%s3 + $0x8] sm:$0xff]
  %v100 = vld [vmem:[%s3 + $0x10] sm:$0xff]
  %v101 = vld [vmem:[%s3 + $0x18] sm:$0xff]
  %v102 = vld [vmem:[%s3 + $0x20] sm:$0xff]
  %v103 = vld [vmem:[%s3 + $0x28] sm:$0xff]
  %v104 = vld [vmem:[%s3 + $0x30] sm:$0xff]
  %v105 = vld [vmem:[%s3 + $0x38] sm:$0xff]
  %v106 = vld [vmem:[%s3 + $0x40] sm:$0xff]
  %v107 = vld [vmem:[%s3 + $0x48] sm:$0xff]
  %v108 = vld [vmem:[%s3 + $0x50] sm:$0xff]
  %v109 = vld [vmem:[%s3 + $0x58] sm:$0xff]
  %v110 = vld [vmem:[%s3 + $0x60] sm:$0xff]
  %v111 = vld [vmem:[%s3 + $0x68] sm:$0xff]
  %v112 = vld [vmem:[%s3 + $0x70] sm:$0xff]
  %v113 = vld [vmem:[%s3 + $0x78] sm:$0xff]
  %v114 = vld [vmem:[%s3 + $0x80] sm:$0xff]
  %v115 = vld [vmem:[%s3 + $0x88] sm:$0xff]
  %v116 = vld [vmem:[%s3 + $0x90] sm:$0xff]
  %v117 = vld [vmem:[%s3 + $0x98] sm:$0xff]
  %v118 = vld [vmem:[%s3 + $0xa0] sm:$0xff]
  %v119 = vld [vmem:[%s3 + $0xa8] sm:$0xff]
  %v120 = vld [vmem:[%s3 + $0xb0] sm:$0xff]
  %v121 = vld [vmem:[%s3 + $0xb8] sm:$0xff]
  %v122 = vld [vmem:[%s3 + $0xc0] sm:$0xff]
  %v123 = vld [vmem:[%s3 + $0xc8] sm:$0xff]
  %v124 = vld [vmem:[%s3 + $0xd0] sm:$0xff]
  %v125 = vld [vmem:[%s3 + $0xd8] sm:$0xff]
  %v126 = vld [vmem:[%s3 + $0xe0] sm:$0xff]
  %v127 = vld [vmem:[%s3 + $0xe8] sm:$0xff]
  %v128 = vld [vmem:[%s3 + $0xf0] sm:$0xff]
  %v129 = vld [vmem:[%s3 + $0xf8] sm:$0xff]
  %v130 = vld [vmem:[%s4] sm:$0xf]
  %v132 = vlaneseq
  %v133 = vshrl.u32 %v132, 7
  %v134 = vsub.s32 0, %v133
  %v135 = vrot.slane %v130, %v134
  %v136 = vlaneseq
  %v137 = vshrl.u32 %v136, 7
  %v138 = vsub.s32 1, %v137
  %v139 = vrot.slane %v130, %v138
  %v140 = vlaneseq
  %v141 = vshrl.u32 %v140, 7
  %v142 = vsub.s32 2, %v141
  %v143 = vrot.slane %v130, %v142
  %v144 = vlaneseq
  %v145 = vshrl.u32 %v144, 7
  %v146 = vsub.s32 3, %v145
  %v147 = vrot.slane %v130, %v146
  %v184 = vunpack.c.l.b16 %v98
  %v185 = vunpack.c.h.b16 %v98
  %v186 = vunpack.c.l.b16 %v99
  %v187 = vunpack.c.h.b16 %v99
  %v188 = vunpack.c.l.b16 %v100
  %v189 = vunpack.c.h.b16 %v100
  %v190 = vunpack.c.l.b16 %v101
  %v191 = vunpack.c.h.b16 %v101
  %v192 = vunpack.c.l.b16 %v102
  %v193 = vunpack.c.h.b16 %v102
  %v194 = vunpack.c.l.b16 %v103
  %v195 = vunpack.c.h.b16 %v103
  %v196 = vunpack.c.l.b16 %v104
  %v197 = vunpack.c.h.b16 %v104
  %v198 = vunpack.c.l.b16 %v105
  %v199 = vunpack.c.h.b16 %v105
  %v200 = vunpack.c.l.b16 %v106
  %v201 = vunpack.c.h.b16 %v106
  %v202 = vunpack.c.l.b16 %v107
  %v203 = vunpack.c.h.b16 %v107
  %v204 = vunpack.c.l.b16 %v108
  %v205 = vunpack.c.h.b16 %v108
  %v206 = vunpack.c.l.b16 %v109
  %v207 = vunpack.c.h.b16 %v109
  %v208 = vunpack.c.l.b16 %v110
  %v209 = vunpack.c.h.b16 %v110
  %v210 = vunpack.c.l.b16 %v111
  %v211 = vunpack.c.h.b16 %v111
  %v212 = vunpack.c.l.b16 %v112
  %v213 = vunpack.c.h.b16 %v112
  %v214 = vunpack.c.l.b16 %v113
  %v215 = vunpack.c.h.b16 %v113
  %v216 = vunpack.c.l.b16 %v114
  %v217 = vunpack.c.h.b16 %v114
  %v218 = vunpack.c.l.b16 %v115
  %v219 = vunpack.c.h.b16 %v115
  %v220 = vunpack.c.l.b16 %v116
  %v221 = vunpack.c.h.b16 %v116
  %v222 = vunpack.c.l.b16 %v117
  %v223 = vunpack.c.h.b16 %v117
  %v224 = vunpack.c.l.b16 %v118
  %v225 = vunpack.c.h.b16 %v118
  %v226 = vunpack.c.l.b16 %v119
  %v227 = vunpack.c.h.b16 %v119
  %v228 = vunpack.c.l.b16 %v120
  %v229 = vunpack.c.h.b16 %v120
  %v230 = vunpack.c.l.b16 %v121
  %v231 = vunpack.c.h.b16 %v121
  %v232 = vunpack.c.l.b16 %v122
  %v233 = vunpack.c.h.b16 %v122
  %v234 = vunpack.c.l.b16 %v123
  %v235 = vunpack.c.h.b16 %v123
  %v236 = vunpack.c.l.b16 %v124
  %v237 = vunpack.c.h.b16 %v124
  %v238 = vunpack.c.l.b16 %v125
  %v239 = vunpack.c.h.b16 %v125
  %v240 = vunpack.c.l.b16 %v126
  %v241 = vunpack.c.h.b16 %v126
  %v242 = vunpack.c.l.b16 %v127
  %v243 = vunpack.c.h.b16 %v127
  %v244 = vunpack.c.l.b16 %v128
  %v245 = vunpack.c.h.b16 %v128
  %v246 = vunpack.c.l.b16 %v129
  %v247 = vunpack.c.h.b16 %v129
  %v248 = vpack.c.b16 %v188, %v184
  %v249 = vpack.c.b16 %v189, %v185
  %v250 = vpack.c.b16 %v190, %v186
  %v251 = vpack.c.b16 %v191, %v187
  %v252 = vpack.c.b16 %v196, %v192
  %v253 = vpack.c.b16 %v197, %v193
  %v254 = vpack.c.b16 %v198, %v194
  %v255 = vpack.c.b16 %v199, %v195
  %v256 = vpack.c.b16 %v204, %v200
  %v257 = vpack.c.b16 %v205, %v201
  %v258 = vpack.c.b16 %v206, %v202
  %v259 = vpack.c.b16 %v207, %v203
  %v260 = vpack.c.b16 %v212, %v208
  %v261 = vpack.c.b16 %v213, %v209
  %v262 = vpack.c.b16 %v214, %v210
  %v263 = vpack.c.b16 %v215, %v211
  %v264 = vpack.c.b16 %v220, %v216
  %v265 = vpack.c.b16 %v221, %v217
  %v266 = vpack.c.b16 %v222, %v218
  %v267 = vpack.c.b16 %v223, %v219
  %v268 = vpack.c.b16 %v228, %v224
  %v269 = vpack.c.b16 %v229, %v225
  %v270 = vpack.c.b16 %v230, %v226
  %v271 = vpack.c.b16 %v231, %v227
  %v272 = vpack.c.b16 %v236, %v232
  %v273 = vpack.c.b16 %v237, %v233
  %v274 = vpack.c.b16 %v238, %v234
  %v275 = vpack.c.b16 %v239, %v235
  %v276 = vpack.c.b16 %v244, %v240
  %v277 = vpack.c.b16 %v245, %v241
  %v278 = vpack.c.b16 %v246, %v242
  %v279 = vpack.c.b16 %v247, %v243
  %312 = vmatprep.subr.bf16.mxu0 %v277
  %313 = vmatpush1.bf16.msra.mxu0 %v276
  %314 = vmatprep.subr.bf16.mxu0 %v273
  %315 = vmatpush1.bf16.msra.mxu0 %v272
  %316 = vmatprep.subr.bf16.mxu0 %v269
  %317 = vmatpush1.bf16.msra.mxu0 %v268
  %318 = vmatprep.subr.bf16.mxu0 %v265
  %319 = vmatpush1.bf16.msra.mxu0 %v264
  %320 = vmatprep.subr.bf16.mxu0 %v261
  %321 = vmatpush1.bf16.msra.mxu0 %v260
  %322 = vmatprep.subr.bf16.mxu0 %v257
  %323 = vmatpush1.bf16.msra.mxu0 %v256
  %324 = vmatprep.subr.bf16.mxu0 %v253
  %325 = vmatpush1.bf16.msra.mxu0 %v252
  %326 = vmatprep.subr.bf16.mxu0 %v249
  %327 = vmatpush1.bf16.msra.mxu0 %v248
  %328 = vmatprep.subr.bf16.mxu0 0
  %329 = vmatpush2.bf16.msra.mxu0 0
  %330 = vmatprep.subr.bf16.mxu0 0
  %331 = vmatpush2.bf16.msra.mxu0 0
  %332 = vmatprep.subr.bf16.mxu0 0
  %333 = vmatpush2.bf16.msra.mxu0 0
  %334 = vmatprep.subr.bf16.mxu0 0
  %335 = vmatpush2.bf16.msra.mxu0 0
  %336 = vmatprep.subr.bf16.mxu0 0
  %337 = vmatpush2.bf16.msra.mxu0 0
  %338 = vmatprep.subr.bf16.mxu0 0
  %339 = vmatpush2.bf16.msra.mxu0 0
  %340 = vmatprep.subr.bf16.mxu0 0
  %341 = vmatpush2.bf16.msra.mxu0 0
  %342 = vmatprep.subr.bf16.mxu0 0
  %343 = vmatpush2.bf16.msra.mxu0 0
  %344 = vmatprep.mubr.bf16.mxu0 0
  %345 = vmatmul.mubr.bf16.gmra.mxu0 %v96
  %v346 = vpop.f32.mrf.mxu0
  %v347 = vadd.f32 %v135, %v346
  %v348 = vpop.f32.mrf.mxu0
  %v349 = vadd.f32 %v139, %v348
  %v350 = vpop.f32.mrf.mxu0
  %v351 = vadd.f32 %v135, %v350
  %v352 = vpop.f32.mrf.mxu0
  %v353 = vadd.f32 %v139, %v352
  %354 = vmatprep.mubr.bf16.mxu0 0
  %355 = vmatmul.mubr.bf16.gmra.mxu0 %v97
  %v356 = vpop.f32.mrf.mxu0
  %v357 = vadd.f32 %v135, %v356
  %v358 = vpop.f32.mrf.mxu0
  %v359 = vadd.f32 %v139, %v358
  %v360 = vpop.f32.mrf.mxu0
  %v361 = vadd.f32 %v135, %v360
  %v362 = vpop.f32.mrf.mxu0
  %v363 = vadd.f32 %v139, %v362
  %364 = vdwg.mxu0
  %365 = vmatprep.subr.bf16.mxu0 %v279
  %366 = vmatpush1.bf16.msra.mxu0 %v278
  %367 = vmatprep.subr.bf16.mxu0 %v275
  %368 = vmatpush1.bf16.msra.mxu0 %v274
  %369 = vmatprep.subr.bf16.mxu0 %v271
  %370 = vmatpush1.bf16.msra.mxu0 %v270
  %371 = vmatprep.subr.bf16.mxu0 %v267
  %372 = vmatpush1.bf16.msra.mxu0 %v266
  %373 = vmatprep.subr.bf16.mxu0 %v263
  %374 = vmatpush1.bf16.msra.mxu0 %v262
  %375 = vmatprep.subr.bf16.mxu0 %v259
  %376 = vmatpush1.bf16.msra.mxu0 %v258
  %377 = vmatprep.subr.bf16.mxu0 %v255
  %378 = vmatpush1.bf16.msra.mxu0 %v254
  %379 = vmatprep.subr.bf16.mxu0 %v251
  %380 = vmatpush1.bf16.msra.mxu0 %v250
  %381 = vmatprep.subr.bf16.mxu0 0
  %382 = vmatpush2.bf16.msra.mxu0 0
  %383 = vmatprep.subr.bf16.mxu0 0
  %384 = vmatpush2.bf16.msra.mxu0 0
  %385 = vmatprep.subr.bf16.mxu0 0
  %386 = vmatpush2.bf16.msra.mxu0 0
  %387 = vmatprep.subr.bf16.mxu0 0
  %388 = vmatpush2.bf16.msra.mxu0 0
  %389 = vmatprep.subr.bf16.mxu0 0
  %390 = vmatpush2.bf16.msra.mxu0 0
  %391 = vmatprep.subr.bf16.mxu0 0
  %392 = vmatpush2.bf16.msra.mxu0 0
  %393 = vmatprep.subr.bf16.mxu0 0
  %394 = vmatpush2.bf16.msra.mxu0 0
  %395 = vmatprep.subr.bf16.mxu0 0
  %396 = vmatpush2.bf16.msra.mxu0 0
  %397 = vmatprep.mubr.bf16.mxu0 0
  %398 = vmatmul.mubr.bf16.gmra.mxu0 %v96
  %v399 = vpop.f32.mrf.mxu0
  %v400 = vadd.f32 %v143, %v399
  %v401 = vpop.f32.mrf.mxu0
  %v402 = vadd.f32 %v147, %v401
  %v403 = vpop.f32.mrf.mxu0
  %v404 = vadd.f32 %v143, %v403
  %v405 = vpop.f32.mrf.mxu0
  %v406 = vadd.f32 %v147, %v405
  %407 = vmatprep.mubr.bf16.mxu0 0
  %408 = vmatmul.mubr.bf16.gmra.mxu0 %v97
  %v409 = vpop.f32.mrf.mxu0
  %v410 = vadd.f32 %v143, %v409
  %v411 = vpop.f32.mrf.mxu0
  %v412 = vadd.f32 %v147, %v411
  %v413 = vpop.f32.mrf.mxu0
  %v414 = vadd.f32 %v143, %v413
  %v415 = vpop.f32.mrf.mxu0
  %v416 = vadd.f32 %v147, %v415
  %417 = vdwg.mxu0
  %v418 = vmul.f32 %v347, 1.702
  %v419 = vmul.f32 %v349, 1.702
  %v420 = vmul.f32 %v400, 1.702
  %v421 = vmul.f32 %v402, 1.702
  %v422 = vmul.f32 %v351, 1.702
  %v423 = vmul.f32 %v353, 1.702
  %v424 = vmul.f32 %v404, 1.702
  %v425 = vmul.f32 %v406, 1.702
  %v426 = vmul.f32 %v357, 1.702
  %v427 = vmul.f32 %v359, 1.702
  %v428 = vmul.f32 %v410, 1.702
  %v429 = vmul.f32 %v412, 1.702
  %v430 = vmul.f32 %v361, 1.702
  %v431 = vmul.f32 %v363, 1.702
  %v432 = vmul.f32 %v414, 1.702
  %v433 = vmul.f32 %v416, 1.702
  %v434 = vxor.u32 %v418, 2147483648
  %v435 = vxor.u32 %v419, 2147483648
  %v436 = vxor.u32 %v420, 2147483648
  %v437 = vxor.u32 %v421, 2147483648
  %v438 = vxor.u32 %v422, 2147483648
  %v439 = vxor.u32 %v423, 2147483648
  %v440 = vxor.u32 %v424, 2147483648
  %v441 = vxor.u32 %v425, 2147483648
  %v442 = vxor.u32 %v426, 2147483648
  %v443 = vxor.u32 %v427, 2147483648
  %v444 = vxor.u32 %v428, 2147483648
  %v445 = vxor.u32 %v429, 2147483648
  %v446 = vxor.u32 %v430, 2147483648
  %v447 = vxor.u32 %v431, 2147483648
  %v448 = vxor.u32 %v432, 2147483648
  %v449 = vxor.u32 %v433, 2147483648
  %v450 = vmul.f32 %v434, 1.442695
  %v451 = vpow.pop %v450
  %v452 = vmul.f32 %v435, 1.442695
  %v453 = vpow.pop %v452
  %v454 = vmul.f32 %v436, 1.442695
  %v455 = vpow.pop %v454
  %v456 = vmul.f32 %v437, 1.442695
  %v457 = vpow.pop %v456
  %v458 = vmul.f32 %v438, 1.442695
  %v459 = vpow.pop %v458
  %v460 = vmul.f32 %v439, 1.442695
  %v461 = vpow.pop %v460
  %v462 = vmul.f32 %v440, 1.442695
  %v463 = vpow.pop %v462
  %v464 = vmul.f32 %v441, 1.442695
  %v465 = vpow.pop %v464
  %v466 = vmul.f32 %v442, 1.442695
  %v467 = vpow.pop %v466
  %v468 = vmul.f32 %v443, 1.442695
  %v469 = vpow.pop %v468
  %v470 = vmul.f32 %v444, 1.442695
  %v471 = vpow.pop %v470
  %v472 = vmul.f32 %v445, 1.442695
  %v473 = vpow.pop %v472
  %v474 = vmul.f32 %v446, 1.442695
  %v475 = vpow.pop %v474
  %v476 = vmul.f32 %v447, 1.442695
  %v477 = vpow.pop %v476
  %v478 = vmul.f32 %v448, 1.442695
  %v479 = vpow.pop %v478
  %v480 = vmul.f32 %v449, 1.442695
  %v481 = vpow.pop %v480
  %v482 = vadd.f32 %v451, 1.0
  %v483 = vadd.f32 %v453, 1.0
  %v484 = vadd.f32 %v455, 1.0
  %v485 = vadd.f32 %v457, 1.0
  %v486 = vadd.f32 %v459, 1.0
  %v487 = vadd.f32 %v461, 1.0
  %v488 = vadd.f32 %v463, 1.0
  %v489 = vadd.f32 %v465, 1.0
  %v490 = vadd.f32 %v467, 1.0
  %v491 = vadd.f32 %v469, 1.0
  %v492 = vadd.f32 %v471, 1.0
  %v493 = vadd.f32 %v473, 1.0
  %v494 = vadd.f32 %v475, 1.0
  %v495 = vadd.f32 %v477, 1.0
  %v496 = vadd.f32 %v479, 1.0
  %v497 = vadd.f32 %v481, 1.0
  %v498 = vrcp.pop %v482
  %v499 = vmul.f32 1.0, %v498
  %v500 = vrcp.pop %v483
  %v501 = vmul.f32 1.0, %v500
  %v502 = vrcp.pop %v484
  %v503 = vmul.f32 1.0, %v502
  %v504 = vrcp.pop %v485
  %v505 = vmul.f32 1.0, %v504
  %v506 = vrcp.pop %v486
  %v507 = vmul.f32 1.0, %v506
  %v508 = vrcp.pop %v487
  %v509 = vmul.f32 1.0, %v508
  %v510 = vrcp.pop %v488
  %v511 = vmul.f32 1.0, %v510
  %v512 = vrcp.pop %v489
  %v513 = vmul.f32 1.0, %v512
  %v514 = vrcp.pop %v490
  %v515 = vmul.f32 1.0, %v514
  %v516 = vrcp.pop %v491
  %v517 = vmul.f32 1.0, %v516
  %v518 = vrcp.pop %v492
  %v519 = vmul.f32 1.0, %v518
  %v520 = vrcp.pop %v493
  %v521 = vmul.f32 1.0, %v520
  %v522 = vrcp.pop %v494
  %v523 = vmul.f32 1.0, %v522
  %v524 = vrcp.pop %v495
  %v525 = vmul.f32 1.0, %v524
  %v526 = vrcp.pop %v496
  %v527 = vmul.f32 1.0, %v526
  %v528 = vrcp.pop %v497
  %v529 = vmul.f32 1.0, %v528
  %v530 = vmul.f32 %v347, %v499
  %v531 = vmul.f32 %v349, %v501
  %v532 = vmul.f32 %v400, %v503
  %v533 = vmul.f32 %v402, %v505
  %v534 = vmul.f32 %v351, %v507
  %v535 = vmul.f32 %v353, %v509
  %v536 = vmul.f32 %v404, %v511
  %v537 = vmul.f32 %v406, %v513
  %v538 = vmul.f32 %v357, %v515
  %v539 = vmul.f32 %v359, %v517
  %v540 = vmul.f32 %v410, %v519
  %v541 = vmul.f32 %v412, %v521
  %v542 = vmul.f32 %v361, %v523
  %v543 = vmul.f32 %v363, %v525
  %v544 = vmul.f32 %v414, %v527
  %v545 = vmul.f32 %v416, %v529
  %v546 = vpack.c.bf16 %v534, %v530
  %v547 = vpack.c.bf16 %v535, %v531
  %v548 = vpack.c.bf16 %v536, %v532
  %v549 = vpack.c.bf16 %v537, %v533
  %v550 = vpack.c.bf16 %v542, %v538
  %v551 = vpack.c.bf16 %v543, %v539
  %v552 = vpack.c.bf16 %v544, %v540
  %v553 = vpack.c.bf16 %v545, %v541
  %v562 = vunpack.c.l.b16 %v546
  %v563 = vunpack.c.l.b16 %v547
  %v564 = vunpack.c.l.b16 %v548
  %v565 = vunpack.c.l.b16 %v549
  %v566 = vunpack.c.h.b16 %v546
  %v567 = vunpack.c.h.b16 %v547
  %v568 = vunpack.c.h.b16 %v548
  %v569 = vunpack.c.h.b16 %v549
  %v570 = vunpack.c.l.b16 %v550
  %v571 = vunpack.c.l.b16 %v551
  %v572 = vunpack.c.l.b16 %v552
  %v573 = vunpack.c.l.b16 %v553
  %v574 = vunpack.c.h.b16 %v550
  %v575 = vunpack.c.h.b16 %v551
  %v576 = vunpack.c.h.b16 %v552
  %v577 = vunpack.c.h.b16 %v553
  %v578 = vpack.c.b16 %v563, %v562
  %v579 = vpack.c.b16 %v565, %v564
  %v580 = vpack.c.b16 %v567, %v566
  %v581 = vpack.c.b16 %v569, %v568
  %v582 = vpack.c.b16 %v571, %v570
  %v583 = vpack.c.b16 %v573, %v572
  %v584 = vpack.c.b16 %v575, %v574
  %v585 = vpack.c.b16 %v577, %v576
  %594 = vst [vmem:[%s5] sm:$0xff] %v578
  %595 = vst [vmem:[%s5 + $0x8] sm:$0xff] %v579
  %596 = vst [vmem:[%s5 + $0x10] sm:$0xff] %v580
  %597 = vst [vmem:[%s5 + $0x18] sm:$0xff] %v581
  %598 = vst [vmem:[%s5 + $0x20] sm:$0xff] %v582
  %599 = vst [vmem:[%s5 + $0x28] sm:$0xff] %v583
  %600 = vst [vmem:[%s5 + $0x30] sm:$0xff] %v584
  %601 = vst [vmem:[%s5 + $0x38] sm:$0xff] %v585
  // Predicated region
  $region22: #{encoder_forward.17} parent=0 // pred_check
    _
  $region23: #{encoder_forward.17} parent=0 // pred_check_branch
    %603 = sbr.rel (0) target = $region25
  $region24: #{encoder_forward.17} parent=0 // pred_region
    _
  $region25: #{encoder_forward.17} parent=0 // pred_fallthru
    _
  // Predicated region
  $region26: #{encoder_forward.17} parent=0 // pred_check
    _
  $region27: #{encoder_forward.17} parent=0 // pred_check_branch
    %605 = sbr.rel (0) target = $region29
  $region28: #{encoder_forward.17} parent=0 // pred_region
    _
  $region29: #{encoder_forward.17} parent=0 // pred_fallthru
    _

</llo_original>
